<compile_context>
chip_gen: v5e
topology: v5e:2x2
jax: 0.10.0
libtpu: 0.0.40
codegen_flags: <defaults>
</compile_context>

<pallas_src>
import functools

import jax
import jax.numpy as jnp
from jax.experimental import pallas as pl
from jax.experimental.pallas import tpu as pltpu

HIDDEN = 512        # hidden width of the AAE MLP encoder / decoder
LANE = 128          # TPU lane width


def _round_up(x, m):
    return (x + m - 1) // m * m


def _aae_kernel(x_ref,
                we1_ref, be1_ref, we2_ref, be2_ref, we3_ref, be3_ref,
                wd1_ref, bd1_ref, wd2_ref, bd2_ref, wd3_ref, bd3_ref,
                out_ref):
    """Fused encoder + decoder forward for one (TM, D) activation tile.

    Weights (bf16) are pinned VMEM-resident across the batch grid; all six
    matmuls hit the MXU back-to-back with f32 accumulation and no HBM round
    trips for intermediate activations.
    """
    leaky = lambda h: jnp.where(h > 0, h, 0.2 * h)

    def dense(h, w_ref, b_ref):
        # cast activations to the weight dtype (bf16) on the VPU, then
        # bf16 x bf16 -> f32 accumulate on the MXU, f32 bias add on the VPU.
        return jnp.dot(h.astype(w_ref.dtype), w_ref[...],
                       preferred_element_type=jnp.float32) + b_ref[...]

    x = x_ref[...]                                   # (TM, D) f32

    # ---------------- Encoder_aae ----------------
    h = leaky(dense(x, we1_ref, be1_ref))
    h = leaky(dense(h, we2_ref, be2_ref))
    z = dense(h, we3_ref, be3_ref)                   # (TM, latent_pad), no activation

    # ---------------- Decoder ----------------
    h = leaky(dense(z, wd1_ref, bd1_ref))
    h = leaky(dense(h, wd2_ref, bd2_ref))
    h = dense(h, wd3_ref, bd3_ref)
    out_ref[...] = jnp.tanh(h)                       # (TM, D) f32


def init_aae_params(key, d_in, latent, hidden=HIDDEN):
    """Deterministic synthetic parameters (Kaiming-ish scaling).

    Weights are stored in bfloat16 (the DMA-bound resource); biases stay f32.
    The latent bottleneck is zero-padded to a full 128-lane width, which is
    mathematically identical to the unpadded model (z has no activation and
    the padded columns of we3 / rows of wd1 are zero).
    """
    ks = jax.random.split(key, 6)
    lat_pad = max(_round_up(latent, LANE), LANE)

    def lin(k, fan_in, fan_out, *, fan_in_eff=None,
            zero_cols_from=None, zero_rows_from=None):
        w = (jax.random.normal(k, (fan_in, fan_out), jnp.float32)
             / jnp.sqrt(jnp.float32(fan_in_eff if fan_in_eff else fan_in)))
        if zero_cols_from is not None:
            w = w.at[:, zero_cols_from:].set(0.0)
        if zero_rows_from is not None:
            w = w.at[zero_rows_from:, :].set(0.0)
        b = jnp.zeros((1, fan_out), jnp.float32)
        return w.astype(jnp.bfloat16), b

    we1, be1 = lin(ks[0], d_in, hidden)
    we2, be2 = lin(ks[1], hidden, hidden)
    we3, be3 = lin(ks[2], hidden, lat_pad, zero_cols_from=latent)
    wd1, bd1 = lin(ks[3], lat_pad, hidden, fan_in_eff=latent,
                   zero_rows_from=latent)
    wd2, bd2 = lin(ks[4], hidden, hidden)
    wd3, bd3 = lin(ks[5], hidden, d_in)
    return (we1, be1, we2, be2, we3, be3, wd1, bd1, wd2, bd2, wd3, bd3)


@functools.partial(jax.jit, static_argnames=("tm",))
def _aae_recon_flat(x_flat_padded, params, *, tm):
    """Run the fused kernel over the padded, flattened batch."""
    m_pad, d = x_flat_padded.shape
    assert m_pad % tm == 0
    grid = (m_pad // tm,)

    hidden = params[0].shape[1]
    lat_pad = params[6].shape[0]

    # Resident across the whole grid (index_map -> (0, 0)): weights & biases
    # are DMA'd once and reused for every batch tile.
    def resident_spec(arr):
        return pl.BlockSpec(arr.shape, lambda i: (0, 0))

    in_specs = [pl.BlockSpec((tm, d), lambda i: (i, 0))]          # activations
    in_specs += [resident_spec(p) for p in params]                # weights/biases
    out_specs = pl.BlockSpec((tm, d), lambda i: (i, 0))

    # Advisory cost so XLA schedules neighbors sensibly.
    flops = 2 * m_pad * (d * hidden + hidden * hidden + hidden * lat_pad
                         + lat_pad * hidden + hidden * hidden + hidden * d)
    bytes_accessed = (sum(int(p.size) * p.dtype.itemsize for p in params)
                      + x_flat_padded.size * x_flat_padded.dtype.itemsize
                      + m_pad * d * 4)
    cost = pl.CostEstimate(flops=flops,
                           transcendentals=m_pad * d,
                           bytes_accessed=bytes_accessed)

    return pl.pallas_call(
        _aae_kernel,
        out_shape=jax.ShapeDtypeStruct((m_pad, d), jnp.float32),
        grid_spec=pltpu.PrefetchScalarGridSpec(
            num_scalar_prefetch=0,
            grid=grid,
            in_specs=in_specs,
            out_specs=out_specs,
        ),
        compiler_params=pltpu.CompilerParams(
            dimension_semantics=("parallel",),
            vmem_limit_bytes=48 * 1024 * 1024,
        ),
        cost_estimate=cost,
    )(x_flat_padded, *params)


def aae_forward(x, params):
    """JAX equivalent of AAE.forward: returns (x, decoder(encoder(x)))."""
    n, c, h, w = x.shape
    d = c * h * w

    # Flatten (metadata-only) and pad the batch to a sublane/MXU-friendly tile
    # so the grid divides evenly; padded rows are discarded afterwards.  The
    # f32 -> bf16 cast happens inside the kernel, not in a separate XLA pass.
    x_flat = x.reshape(n, d).astype(jnp.float32)
    m_pad = _round_up(n, 8)
    if m_pad <= 8:
        tm = m_pad                                    # single small tile
    else:
        # Aim for >= 2 grid steps (v7x 2-TC sharding), capped at 256 rows.
        tm = min(256, _round_up(m_pad // 2, 8))
        m_pad = _round_up(m_pad, tm)
    if m_pad != n:
        x_flat = jnp.pad(x_flat, ((0, m_pad - n), (0, 0)))

    recon_flat = _aae_recon_flat(x_flat, params, tm=tm)
    return x, recon_flat[:n].reshape(n, c, h, w)


def _aae_reference(x, params):
    """Pure-JAX reference (same mixed-precision math) for correctness check."""
    we1, be1, we2, be2, we3, be3, wd1, bd1, wd2, bd2, wd3, bd3 = params
    leaky = lambda h: jnp.where(h > 0, h, 0.2 * h)
    dense = lambda h, w, b: jnp.dot(h.astype(w.dtype), w,
                                    preferred_element_type=jnp.float32) + b
    n = x.shape[0]
    h = x.reshape(n, -1).astype(jnp.float32)
    h = leaky(dense(h, we1, be1))
    h = leaky(dense(h, we2, be2))
    z = dense(h, we3, be3)
    h = leaky(dense(z, wd1, bd1))
    h = leaky(dense(h, wd2, bd2))
    return jnp.tanh(dense(h, wd3, bd3)).reshape(x.shape)


if __name__ == "__main__":
    # Small shapes consistent with the module: opt.channels=4, opt.img_size=16,
    # opt.latent=32, batch=2.
    batch, channels, img_size, latent = 2, 4, 16, 32
    key = jax.random.PRNGKey(0)
    k_x, k_p = jax.random.split(key)

    x = jax.random.normal(k_x, (batch, channels, img_size, img_size), jnp.float32)
    params = init_aae_params(k_p, channels * img_size * img_size, latent)

    x_out, recon = aae_forward(x, params)
    jax.block_until_ready((x_out, recon))

    assert x_out.shape == (batch, channels, img_size, img_size)
    assert recon.shape == (batch, channels, img_size, img_size)
    assert recon.dtype == jnp.float32
    assert bool(jnp.all(jnp.isfinite(recon)))

    ref = _aae_reference(x, params)
    assert bool(jnp.allclose(recon, ref, atol=5e-2, rtol=5e-2))
    print("KERNEL_OK")
</pallas_src>

<mosaic_0001>
module attributes {stable_mosaic.version = 11 : i64} {
  func.func @_aae_kernel(%arg0: i32, %arg1: memref<8x1024xf32, #tpu.memory_space<vmem>>, %arg2: memref<1024x512xbf16, #tpu.memory_space<vmem>>, %arg3: memref<1x512xf32, #tpu.memory_space<vmem>>, %arg4: memref<512x512xbf16, #tpu.memory_space<vmem>>, %arg5: memref<1x512xf32, #tpu.memory_space<vmem>>, %arg6: memref<512x128xbf16, #tpu.memory_space<vmem>>, %arg7: memref<1x128xf32, #tpu.memory_space<vmem>>, %arg8: memref<128x512xbf16, #tpu.memory_space<vmem>>, %arg9: memref<1x512xf32, #tpu.memory_space<vmem>>, %arg10: memref<512x512xbf16, #tpu.memory_space<vmem>>, %arg11: memref<1x512xf32, #tpu.memory_space<vmem>>, %arg12: memref<512x1024xbf16, #tpu.memory_space<vmem>>, %arg13: memref<1x1024xf32, #tpu.memory_space<vmem>>, %arg14: memref<8x1024xf32, #tpu.memory_space<vmem>>) attributes {dimension_semantics = [#tpu.dimension_semantics<parallel>], iteration_bounds = array<i64: 1>, scalar_prefetch = 0 : i64, scratch_operands = 0 : i64, tpu.core_type = #tpu.core_type<tc>, window_params = [{transform_indices = @transform_0, window_bounds = array<i64: 8, 1024>}, {pipeline_mode = #tpu.pipeline_mode<synchronous>, transform_indices = @transform_1, window_bounds = array<i64: 1024, 512>}, {pipeline_mode = #tpu.pipeline_mode<synchronous>, transform_indices = @transform_2, window_bounds = array<i64: 1, 512>}, {pipeline_mode = #tpu.pipeline_mode<synchronous>, transform_indices = @transform_3, window_bounds = array<i64: 512, 512>}, {pipeline_mode = #tpu.pipeline_mode<synchronous>, transform_indices = @transform_4, window_bounds = array<i64: 1, 512>}, {pipeline_mode = #tpu.pipeline_mode<synchronous>, transform_indices = @transform_5, window_bounds = array<i64: 512, 128>}, {pipeline_mode = #tpu.pipeline_mode<synchronous>, transform_indices = @transform_6, window_bounds = array<i64: 1, 128>}, {pipeline_mode = #tpu.pipeline_mode<synchronous>, transform_indices = @transform_7, window_bounds = array<i64: 128, 512>}, {pipeline_mode = #tpu.pipeline_mode<synchronous>, transform_indices = @transform_8, window_bounds = array<i64: 1, 512>}, {pipeline_mode = #tpu.pipeline_mode<synchronous>, transform_indices = @transform_9, window_bounds = array<i64: 512, 512>}, {pipeline_mode = #tpu.pipeline_mode<synchronous>, transform_indices = @transform_10, window_bounds = array<i64: 1, 512>}, {pipeline_mode = #tpu.pipeline_mode<synchronous>, transform_indices = @transform_11, window_bounds = array<i64: 512, 1024>}, {pipeline_mode = #tpu.pipeline_mode<synchronous>, transform_indices = @transform_12, window_bounds = array<i64: 1, 1024>}, {transform_indices = @transform_13, window_bounds = array<i64: 8, 1024>}]} {
    %c0 = arith.constant 0 : index
    %c0_0 = arith.constant 0 : index
    %0 = vector.load %arg1[%c0, %c0_0] : memref<8x1024xf32, #tpu.memory_space<vmem>>, vector<8x1024xf32>
    %1 = arith.truncf %0 : vector<8x1024xf32> to vector<8x1024xbf16>
    %c0_1 = arith.constant 0 : index
    %c0_2 = arith.constant 0 : index
    %2 = vector.load %arg2[%c0_1, %c0_2] : memref<1024x512xbf16, #tpu.memory_space<vmem>>, vector<1024x512xbf16>
    %cst = arith.constant dense<0.000000e+00> : vector<8x512xf32>
    %3 = tpu.matmul %1, %2, %cst {dimension_numbers = #tpu.dot_dimension_numbers<[1], [0], [0], [1], [0, 0, 1, 1], [], []>} : vector<8x1024xbf16>, vector<1024x512xbf16>, vector<8x512xf32> -> vector<8x512xf32>
    %c0_3 = arith.constant 0 : index
    %c0_4 = arith.constant 0 : index
    %4 = vector.load %arg3[%c0_3, %c0_4] : memref<1x512xf32, #tpu.memory_space<vmem>>, vector<1x512xf32>
    %5 = vector.broadcast %4 : vector<1x512xf32> to vector<8x512xf32>
    %6 = arith.addf %3, %5 : vector<8x512xf32>
    %cst_5 = arith.constant 0.000000e+00 : f32
    %7 = vector.broadcast %cst_5 : f32 to vector<8x512xf32>
    %8 = arith.cmpf ogt, %6, %7 : vector<8x512xf32>
    %cst_6 = arith.constant 2.000000e-01 : f32
    %9 = vector.broadcast %cst_6 : f32 to vector<8x512xf32>
    %10 = arith.mulf %9, %6 : vector<8x512xf32>
    %11 = arith.select %8, %6, %10 : vector<8x512xi1>, vector<8x512xf32>
    %12 = arith.truncf %11 : vector<8x512xf32> to vector<8x512xbf16>
    %c0_7 = arith.constant 0 : index
    %c0_8 = arith.constant 0 : index
    %13 = vector.load %arg4[%c0_7, %c0_8] : memref<512x512xbf16, #tpu.memory_space<vmem>>, vector<512x512xbf16>
    %cst_9 = arith.constant dense<0.000000e+00> : vector<8x512xf32>
    %14 = tpu.matmul %12, %13, %cst_9 {dimension_numbers = #tpu.dot_dimension_numbers<[1], [0], [0], [1], [0, 0, 1, 1], [], []>} : vector<8x512xbf16>, vector<512x512xbf16>, vector<8x512xf32> -> vector<8x512xf32>
    %c0_10 = arith.constant 0 : index
    %c0_11 = arith.constant 0 : index
    %15 = vector.load %arg5[%c0_10, %c0_11] : memref<1x512xf32, #tpu.memory_space<vmem>>, vector<1x512xf32>
    %16 = vector.broadcast %15 : vector<1x512xf32> to vector<8x512xf32>
    %17 = arith.addf %14, %16 : vector<8x512xf32>
    %cst_12 = arith.constant 0.000000e+00 : f32
    %18 = vector.broadcast %cst_12 : f32 to vector<8x512xf32>
    %19 = arith.cmpf ogt, %17, %18 : vector<8x512xf32>
    %cst_13 = arith.constant 2.000000e-01 : f32
    %20 = vector.broadcast %cst_13 : f32 to vector<8x512xf32>
    %21 = arith.mulf %20, %17 : vector<8x512xf32>
    %22 = arith.select %19, %17, %21 : vector<8x512xi1>, vector<8x512xf32>
    %23 = arith.truncf %22 : vector<8x512xf32> to vector<8x512xbf16>
    %c0_14 = arith.constant 0 : index
    %c0_15 = arith.constant 0 : index
    %24 = vector.load %arg6[%c0_14, %c0_15] : memref<512x128xbf16, #tpu.memory_space<vmem>>, vector<512x128xbf16>
    %cst_16 = arith.constant dense<0.000000e+00> : vector<8x128xf32>
    %25 = tpu.matmul %23, %24, %cst_16 {dimension_numbers = #tpu.dot_dimension_numbers<[1], [0], [0], [1], [0, 0, 1, 1], [], []>} : vector<8x512xbf16>, vector<512x128xbf16>, vector<8x128xf32> -> vector<8x128xf32>
    %c0_17 = arith.constant 0 : index
    %c0_18 = arith.constant 0 : index
    %26 = vector.load %arg7[%c0_17, %c0_18] : memref<1x128xf32, #tpu.memory_space<vmem>>, vector<1x128xf32>
    %27 = vector.broadcast %26 : vector<1x128xf32> to vector<8x128xf32>
    %28 = arith.addf %25, %27 : vector<8x128xf32>
    %29 = arith.truncf %28 : vector<8x128xf32> to vector<8x128xbf16>
    %c0_19 = arith.constant 0 : index
    %c0_20 = arith.constant 0 : index
    %30 = vector.load %arg8[%c0_19, %c0_20] : memref<128x512xbf16, #tpu.memory_space<vmem>>, vector<128x512xbf16>
    %cst_21 = arith.constant dense<0.000000e+00> : vector<8x512xf32>
    %31 = tpu.matmul %29, %30, %cst_21 {dimension_numbers = #tpu.dot_dimension_numbers<[1], [0], [0], [1], [0, 0, 1, 1], [], []>} : vector<8x128xbf16>, vector<128x512xbf16>, vector<8x512xf32> -> vector<8x512xf32>
    %c0_22 = arith.constant 0 : index
    %c0_23 = arith.constant 0 : index
    %32 = vector.load %arg9[%c0_22, %c0_23] : memref<1x512xf32, #tpu.memory_space<vmem>>, vector<1x512xf32>
    %33 = vector.broadcast %32 : vector<1x512xf32> to vector<8x512xf32>
    %34 = arith.addf %31, %33 : vector<8x512xf32>
    %cst_24 = arith.constant 0.000000e+00 : f32
    %35 = vector.broadcast %cst_24 : f32 to vector<8x512xf32>
    %36 = arith.cmpf ogt, %34, %35 : vector<8x512xf32>
    %cst_25 = arith.constant 2.000000e-01 : f32
    %37 = vector.broadcast %cst_25 : f32 to vector<8x512xf32>
    %38 = arith.mulf %37, %34 : vector<8x512xf32>
    %39 = arith.select %36, %34, %38 : vector<8x512xi1>, vector<8x512xf32>
    %40 = arith.truncf %39 : vector<8x512xf32> to vector<8x512xbf16>
    %c0_26 = arith.constant 0 : index
    %c0_27 = arith.constant 0 : index
    %41 = vector.load %arg10[%c0_26, %c0_27] : memref<512x512xbf16, #tpu.memory_space<vmem>>, vector<512x512xbf16>
    %cst_28 = arith.constant dense<0.000000e+00> : vector<8x512xf32>
    %42 = tpu.matmul %40, %41, %cst_28 {dimension_numbers = #tpu.dot_dimension_numbers<[1], [0], [0], [1], [0, 0, 1, 1], [], []>} : vector<8x512xbf16>, vector<512x512xbf16>, vector<8x512xf32> -> vector<8x512xf32>
    %c0_29 = arith.constant 0 : index
    %c0_30 = arith.constant 0 : index
    %43 = vector.load %arg11[%c0_29, %c0_30] : memref<1x512xf32, #tpu.memory_space<vmem>>, vector<1x512xf32>
    %44 = vector.broadcast %43 : vector<1x512xf32> to vector<8x512xf32>
    %45 = arith.addf %42, %44 : vector<8x512xf32>
    %cst_31 = arith.constant 0.000000e+00 : f32
    %46 = vector.broadcast %cst_31 : f32 to vector<8x512xf32>
    %47 = arith.cmpf ogt, %45, %46 : vector<8x512xf32>
    %cst_32 = arith.constant 2.000000e-01 : f32
    %48 = vector.broadcast %cst_32 : f32 to vector<8x512xf32>
    %49 = arith.mulf %48, %45 : vector<8x512xf32>
    %50 = arith.select %47, %45, %49 : vector<8x512xi1>, vector<8x512xf32>
    %51 = arith.truncf %50 : vector<8x512xf32> to vector<8x512xbf16>
    %c0_33 = arith.constant 0 : index
    %c0_34 = arith.constant 0 : index
    %52 = vector.load %arg12[%c0_33, %c0_34] : memref<512x1024xbf16, #tpu.memory_space<vmem>>, vector<512x1024xbf16>
    %cst_35 = arith.constant dense<0.000000e+00> : vector<8x1024xf32>
    %53 = tpu.matmul %51, %52, %cst_35 {dimension_numbers = #tpu.dot_dimension_numbers<[1], [0], [0], [1], [0, 0, 1, 1], [], []>} : vector<8x512xbf16>, vector<512x1024xbf16>, vector<8x1024xf32> -> vector<8x1024xf32>
    %c0_36 = arith.constant 0 : index
    %c0_37 = arith.constant 0 : index
    %54 = vector.load %arg13[%c0_36, %c0_37] : memref<1x1024xf32, #tpu.memory_space<vmem>>, vector<1x1024xf32>
    %55 = vector.broadcast %54 : vector<1x1024xf32> to vector<8x1024xf32>
    %56 = arith.addf %53, %55 : vector<8x1024xf32>
    %57 = math.tanh %56 : vector<8x1024xf32>
    %c0_38 = arith.constant 0 : index
    %c0_39 = arith.constant 0 : index
    %58 = vector.load %arg14[%c0_38, %c0_39] : memref<8x1024xf32, #tpu.memory_space<vmem>>, vector<8x1024xf32>
    tpu.vector_store %arg14[%c0_38, %c0_39], %57 {strides = array<i32>} : memref<8x1024xf32, #tpu.memory_space<vmem>>, vector<8x1024xf32>,
    return
  }
  func.func @transform_0(%arg0: i32) -> (i32, i32) {
    %c0_i32 = arith.constant 0 : i32
    %c0_i32_0 = arith.constant 0 : i32
    return %arg0, %c0_i32 : i32, i32
  }
  func.func @transform_1(%arg0: i32) -> (i32, i32) {
    %c0_i32 = arith.constant 0 : i32
    %c0_i32_0 = arith.constant 0 : i32
    %c0_i32_1 = arith.constant 0 : i32
    return %c0_i32, %c0_i32_0 : i32, i32
  }
  func.func @transform_2(%arg0: i32) -> (i32, i32) {
    %c0_i32 = arith.constant 0 : i32
    %c0_i32_0 = arith.constant 0 : i32
    %c0_i32_1 = arith.constant 0 : i32
    return %c0_i32, %c0_i32_0 : i32, i32
  }
  func.func @transform_3(%arg0: i32) -> (i32, i32) {
    %c0_i32 = arith.constant 0 : i32
    %c0_i32_0 = arith.constant 0 : i32
    %c0_i32_1 = arith.constant 0 : i32
    return %c0_i32, %c0_i32_0 : i32, i32
  }
  func.func @transform_4(%arg0: i32) -> (i32, i32) {
    %c0_i32 = arith.constant 0 : i32
    %c0_i32_0 = arith.constant 0 : i32
    %c0_i32_1 = arith.constant 0 : i32
    return %c0_i32, %c0_i32_0 : i32, i32
  }
  func.func @transform_5(%arg0: i32) -> (i32, i32) {
    %c0_i32 = arith.constant 0 : i32
    %c0_i32_0 = arith.constant 0 : i32
    %c0_i32_1 = arith.constant 0 : i32
    return %c0_i32, %c0_i32_0 : i32, i32
  }
  func.func @transform_6(%arg0: i32) -> (i32, i32) {
    %c0_i32 = arith.constant 0 : i32
    %c0_i32_0 = arith.constant 0 : i32
    %c0_i32_1 = arith.constant 0 : i32
    return %c0_i32, %c0_i32_0 : i32, i32
  }
  func.func @transform_7(%arg0: i32) -> (i32, i32) {
    %c0_i32 = arith.constant 0 : i32
    %c0_i32_0 = arith.constant 0 : i32
    %c0_i32_1 = arith.constant 0 : i32
    return %c0_i32, %c0_i32_0 : i32, i32
  }
  func.func @transform_8(%arg0: i32) -> (i32, i32) {
    %c0_i32 = arith.constant 0 : i32
    %c0_i32_0 = arith.constant 0 : i32
    %c0_i32_1 = arith.constant 0 : i32
    return %c0_i32, %c0_i32_0 : i32, i32
  }
  func.func @transform_9(%arg0: i32) -> (i32, i32) {
    %c0_i32 = arith.constant 0 : i32
    %c0_i32_0 = arith.constant 0 : i32
    %c0_i32_1 = arith.constant 0 : i32
    return %c0_i32, %c0_i32_0 : i32, i32
  }
  func.func @transform_10(%arg0: i32) -> (i32, i32) {
    %c0_i32 = arith.constant 0 : i32
    %c0_i32_0 = arith.constant 0 : i32
    %c0_i32_1 = arith.constant 0 : i32
    return %c0_i32, %c0_i32_0 : i32, i32
  }
  func.func @transform_11(%arg0: i32) -> (i32, i32) {
    %c0_i32 = arith.constant 0 : i32
    %c0_i32_0 = arith.constant 0 : i32
    %c0_i32_1 = arith.constant 0 : i32
    return %c0_i32, %c0_i32_0 : i32, i32
  }
  func.func @transform_12(%arg0: i32) -> (i32, i32) {
    %c0_i32 = arith.constant 0 : i32
    %c0_i32_0 = arith.constant 0 : i32
    %c0_i32_1 = arith.constant 0 : i32
    return %c0_i32, %c0_i32_0 : i32, i32
  }
  func.func @transform_13(%arg0: i32) -> (i32, i32) {
    %c0_i32 = arith.constant 0 : i32
    %c0_i32_0 = arith.constant 0 : i32
    return %arg0, %c0_i32 : i32, i32
  }
}

</mosaic_0001>

<llo_original>
// kernel: _aae_recon_flat.1
$region0: #{_aae_recon_flat.1}
  #allocation0 [shape = 'u32[]', space=smem, size = 0x4, offset = 0x4, fixed_abs, tag = 'smem constant byte address 0x4 - core index']
  #allocation1 [shape = 'u32[72,128]{1,0:T(1,128)}', space=vmem, size = 0x9000, scoped, tag = 'internal scratch']
  %s0 = inlined_call_operand.hbm [shape: f32[8,1024], index: 0, kind: input, shape index: {}]
  %s1 = inlined_call_operand.hbm [shape: bf16[1024,512], index: 1, kind: input, shape index: {}]
  %s2 = inlined_call_operand.hbm [shape: f32[1,512], index: 2, kind: input, shape index: {}]
  %s3 = inlined_call_operand.hbm [shape: bf16[512,512], index: 3, kind: input, shape index: {}]
  %s4 = inlined_call_operand.hbm [shape: f32[1,512], index: 4, kind: input, shape index: {}]
  %s5 = inlined_call_operand.hbm [shape: bf16[512,128], index: 5, kind: input, shape index: {}]
  %s6 = inlined_call_operand.vmem [shape: f32[1,128], index: 6, kind: input, shape index: {}]
  %s7 = inlined_call_operand.hbm [shape: bf16[128,512], index: 7, kind: input, shape index: {}]
  %s8 = inlined_call_operand.hbm [shape: f32[1,512], index: 8, kind: input, shape index: {}]
  %s9 = inlined_call_operand.hbm [shape: bf16[512,512], index: 9, kind: input, shape index: {}]
  %s10 = inlined_call_operand.hbm [shape: f32[1,512], index: 10, kind: input, shape index: {}]
  %s11 = inlined_call_operand.hbm [shape: bf16[512,1024], index: 11, kind: input, shape index: {}]
  %s12 = inlined_call_operand.vmem [shape: f32[1,1024], index: 12, kind: input, shape index: {}]
  %s13 = inlined_call_operand.hbm [shape: f32[8,1024], index: 13, kind: output, shape index: {}]
  %s14 = sld [smem:[#allocation0]]
  $region106: #{_aae_recon_flat.1} parent=0
    _
  %s16 = ssub.s32 1, %s14
  %s17 = scalar_select 0, %s16, %s14
  $region1: #{_aae_recon_flat.1} parent=0
    #allocation2 [shape = 'u8[32768]{0}', space=vmem, size = 0x8000, scoped, tag = 'input window, operand 0, single buffered']
    #allocation3 [shape = 's32[1]{0}', space=sflag, size = 0x4, scoped, tag = 'scoped memory for _aae_recon_flat.1']
    #allocation4 [shape = 's32[1]{0}', space=sflag, size = 0x4, scoped, tag = 'scoped memory for _aae_recon_flat.1']
    #allocation5 [shape = 'u8[1048576]{0}', space=vmem, size = 0x100000, scoped, tag = 'input window, operand 1, single buffered']
    #allocation6 [shape = 's32[1]{0}', space=sflag, size = 0x4, scoped, tag = 'scoped memory for _aae_recon_flat.1']
    #allocation7 [shape = 'u8[2048]{0}', space=vmem, size = 0x800, scoped, tag = 'input window, operand 2, single buffered']
    #allocation8 [shape = 'u8[524288]{0}', space=vmem, size = 0x80000, scoped, tag = 'input window, operand 3, single buffered']
    #allocation9 [shape = 's32[1]{0}', space=sflag, size = 0x4, scoped, tag = 'scoped memory for _aae_recon_flat.1']
    #allocation10 [shape = 'u8[2048]{0}', space=vmem, size = 0x800, scoped, tag = 'input window, operand 4, single buffered']
    #allocation11 [shape = 'u8[131072]{0}', space=vmem, size = 0x20000, scoped, tag = 'input window, operand 5, single buffered']
    #allocation12 [shape = 's32[1]{0}', space=sflag, size = 0x4, scoped, tag = 'scoped memory for _aae_recon_flat.1']
    #allocation13 [shape = 'u8[131072]{0}', space=vmem, size = 0x20000, scoped, tag = 'input window, operand 7, single buffered']
    #allocation14 [shape = 'u8[2048]{0}', space=vmem, size = 0x800, scoped, tag = 'input window, operand 8, single buffered']
    #allocation15 [shape = 's32[1]{0}', space=sflag, size = 0x4, scoped, tag = 'scoped memory for _aae_recon_flat.1']
    #allocation16 [shape = 'u8[524288]{0}', space=vmem, size = 0x80000, scoped, tag = 'input window, operand 9, single buffered']
    #allocation17 [shape = 'u8[2048]{0}', space=vmem, size = 0x800, scoped, tag = 'input window, operand 10, single buffered']
    #allocation18 [shape = 's32[1]{0}', space=sflag, size = 0x4, scoped, tag = 'scoped memory for _aae_recon_flat.1']
    #allocation19 [shape = 'u8[1048576]{0}', space=vmem, size = 0x100000, scoped, tag = 'input window, operand 11, single buffered']
    #allocation20 [shape = 'u8[32768]{0}', space=vmem, size = 0x8000, scoped, tag = 'output window, operand 0, single buffered']
    %18 = vsyncpa [#allocation3], 0
    %19 = vsyncpa [#allocation6], 0
    %20 = vsyncpa [#allocation9], 0
    %21 = vsyncpa [#allocation12], 0
    %22 = vsyncpa [#allocation15], 0
    %23 = vsyncpa [#allocation18], 0
    %24 = vsyncpa [#allocation4], 0
    // Predicated region
    $region2: #{_aae_recon_flat.1} parent=1 // pred_check
      _
    $region3: #{_aae_recon_flat.1} parent=1 // pred_check_branch
      %26 = sbr.rel (0) target = $region5
    $region4: #{_aae_recon_flat.1} parent=1 // pred_region
      %28 = vsyncadd [#allocation3], 0
      %s30 = sshll.u32 %s0, 4
      %s31 = int_to_ptr.hbm [resolvable:$true] %s30
      %s32 = sshll.u32 [#allocation2], 4
      %s33 = int_to_ptr.vmem [resolvable:$true] %s32
      %35 = dma.hbm_to_vmem [thread:$0]  %s31, 1024, %s33, [#allocation3]
    $region5: #{_aae_recon_flat.1} parent=1 // pred_fallthru
      _
    // Predicated region
    $region6: #{_aae_recon_flat.1} parent=1 // pred_check
      _
    $region7: #{_aae_recon_flat.1} parent=1 // pred_check_branch
      %37 = sbr.rel (0) target = $region9
    $region8: #{_aae_recon_flat.1} parent=1 // pred_region
      %39 = vsyncadd [#allocation6], 0
      %s40 = sshll.u32 %s1, 4
      %s41 = int_to_ptr.hbm [resolvable:$true] %s40
      %s42 = sshll.u32 [#allocation5], 4
      %s43 = int_to_ptr.vmem [resolvable:$true] %s42
      %48 = dma.hbm_to_vmem [thread:$0]  %s41, 32768, %s43, [#allocation6], 256, 256, 16
    $region9: #{_aae_recon_flat.1} parent=1 // pred_fallthru
      _
    // Predicated region
    $region10: #{_aae_recon_flat.1} parent=1 // pred_check
      _
    $region11: #{_aae_recon_flat.1} parent=1 // pred_check_branch
      %50 = sbr.rel (0) target = $region13
    $region12: #{_aae_recon_flat.1} parent=1 // pred_region
      %52 = vsyncadd [#allocation6], 0
      %s54 = sshll.u32 %s2, 4
      %s55 = int_to_ptr.hbm [resolvable:$true] %s54
      %s56 = sshll.u32 [#allocation7], 4
      %s57 = int_to_ptr.vmem [resolvable:$true] %s56
      %59 = dma.hbm_to_vmem [thread:$0]  %s55, 64, %s57, [#allocation6]
    $region13: #{_aae_recon_flat.1} parent=1 // pred_fallthru
      _
    // Predicated region
    $region14: #{_aae_recon_flat.1} parent=1 // pred_check
      _
    $region15: #{_aae_recon_flat.1} parent=1 // pred_check_branch
      %61 = sbr.rel (0) target = $region17
    $region16: #{_aae_recon_flat.1} parent=1 // pred_region
      %63 = vsyncadd [#allocation9], 0
      %s64 = sshll.u32 %s3, 4
      %s65 = int_to_ptr.hbm [resolvable:$true] %s64
      %s66 = sshll.u32 [#allocation8], 4
      %s67 = int_to_ptr.vmem [resolvable:$true] %s66
      %72 = dma.hbm_to_vmem [thread:$0]  %s65, 16384, %s67, [#allocation9], 256, 256, 16
    $region17: #{_aae_recon_flat.1} parent=1 // pred_fallthru
      _
    // Predicated region
    $region18: #{_aae_recon_flat.1} parent=1 // pred_check
      _
    $region19: #{_aae_recon_flat.1} parent=1 // pred_check_branch
      %74 = sbr.rel (0) target = $region21
    $region20: #{_aae_recon_flat.1} parent=1 // pred_region
      %76 = vsyncadd [#allocation9], 0
      %s78 = sshll.u32 %s4, 4
      %s79 = int_to_ptr.hbm [resolvable:$true] %s78
      %s80 = sshll.u32 [#allocation10], 4
      %s81 = int_to_ptr.vmem [resolvable:$true] %s80
      %83 = dma.hbm_to_vmem [thread:$0]  %s79, 64, %s81, [#allocation9]
    $region21: #{_aae_recon_flat.1} parent=1 // pred_fallthru
      _
    // Predicated region
    $region22: #{_aae_recon_flat.1} parent=1 // pred_check
      _
    $region23: #{_aae_recon_flat.1} parent=1 // pred_check_branch
      %85 = sbr.rel (0) target = $region25
    $region24: #{_aae_recon_flat.1} parent=1 // pred_region
      %87 = vsyncadd [#allocation12], 0
      %s88 = sshll.u32 %s5, 4
      %s89 = int_to_ptr.hbm [resolvable:$true] %s88
      %s90 = sshll.u32 [#allocation11], 4
      %s91 = int_to_ptr.vmem [resolvable:$true] %s90
      %96 = dma.hbm_to_vmem [thread:$0]  %s89, 4096, %s91, [#allocation12], 64, 64, 4
    $region25: #{_aae_recon_flat.1} parent=1 // pred_fallthru
      _
    // Predicated region
    $region26: #{_aae_recon_flat.1} parent=1 // pred_check
      _
    $region27: #{_aae_recon_flat.1} parent=1 // pred_check_branch
      %98 = sbr.rel (0) target = $region29
    $region28: #{_aae_recon_flat.1} parent=1 // pred_region
      _
    $region29: #{_aae_recon_flat.1} parent=1 // pred_fallthru
      _
    // Predicated region
    $region30: #{_aae_recon_flat.1} parent=1 // pred_check
      _
    $region31: #{_aae_recon_flat.1} parent=1 // pred_check_branch
      %100 = sbr.rel (0) target = $region33
    $region32: #{_aae_recon_flat.1} parent=1 // pred_region
      %102 = vsyncadd [#allocation12], 0
      %s103 = sshll.u32 %s7, 4
      %s104 = int_to_ptr.hbm [resolvable:$true] %s103
      %s105 = sshll.u32 [#allocation13], 4
      %s106 = int_to_ptr.vmem [resolvable:$true] %s105
      %111 = dma.hbm_to_vmem [thread:$0]  %s104, 4096, %s106, [#allocation12], 256, 256, 16
    $region33: #{_aae_recon_flat.1} parent=1 // pred_fallthru
      _
    // Predicated region
    $region34: #{_aae_recon_flat.1} parent=1 // pred_check
      _
    $region35: #{_aae_recon_flat.1} parent=1 // pred_check_branch
      %113 = sbr.rel (0) target = $region37
    $region36: #{_aae_recon_flat.1} parent=1 // pred_region
      %115 = vsyncadd [#allocation15], 0
      %s117 = sshll.u32 %s8, 4
      %s118 = int_to_ptr.hbm [resolvable:$true] %s117
      %s119 = sshll.u32 [#allocation14], 4
      %s120 = int_to_ptr.vmem [resolvable:$true] %s119
      %122 = dma.hbm_to_vmem [thread:$0]  %s118, 64, %s120, [#allocation15]
    $region37: #{_aae_recon_flat.1} parent=1 // pred_fallthru
      _
    // Predicated region
    $region38: #{_aae_recon_flat.1} parent=1 // pred_check
      _
    $region39: #{_aae_recon_flat.1} parent=1 // pred_check_branch
      %124 = sbr.rel (0) target = $region41
    $region40: #{_aae_recon_flat.1} parent=1 // pred_region
      %126 = vsyncadd [#allocation15], 0
      %s127 = sshll.u32 %s9, 4
      %s128 = int_to_ptr.hbm [resolvable:$true] %s127
      %s129 = sshll.u32 [#allocation16], 4
      %s130 = int_to_ptr.vmem [resolvable:$true] %s129
      %135 = dma.hbm_to_vmem [thread:$0]  %s128, 16384, %s130, [#allocation15], 256, 256, 16
    $region41: #{_aae_recon_flat.1} parent=1 // pred_fallthru
      _
    // Predicated region
    $region42: #{_aae_recon_flat.1} parent=1 // pred_check
      _
    $region43: #{_aae_recon_flat.1} parent=1 // pred_check_branch
      %137 = sbr.rel (0) target = $region45
    $region44: #{_aae_recon_flat.1} parent=1 // pred_region
      %139 = vsyncadd [#allocation18], 0
      %s141 = sshll.u32 %s10, 4
      %s142 = int_to_ptr.hbm [resolvable:$true] %s141
      %s143 = sshll.u32 [#allocation17], 4
      %s144 = int_to_ptr.vmem [resolvable:$true] %s143
      %146 = dma.hbm_to_vmem [thread:$0]  %s142, 64, %s144, [#allocation18]
    $region45: #{_aae_recon_flat.1} parent=1 // pred_fallthru
      _
    // Predicated region
    $region46: #{_aae_recon_flat.1} parent=1 // pred_check
      _
    $region47: #{_aae_recon_flat.1} parent=1 // pred_check_branch
      %148 = sbr.rel (0) target = $region49
    $region48: #{_aae_recon_flat.1} parent=1 // pred_region
      %150 = vsyncadd [#allocation18], 0
      %s151 = sshll.u32 %s11, 4
      %s152 = int_to_ptr.hbm [resolvable:$true] %s151
      %s153 = sshll.u32 [#allocation19], 4
      %s154 = int_to_ptr.vmem [resolvable:$true] %s153
      %159 = dma.hbm_to_vmem [thread:$0]  %s152, 32768, %s154, [#allocation18], 512, 512, 32
    $region49: #{_aae_recon_flat.1} parent=1 // pred_fallthru
      _
    // Predicated region
    $region50: #{_aae_recon_flat.1} parent=1 // pred_check
      _
    $region51: #{_aae_recon_flat.1} parent=1 // pred_check_branch
      %161 = sbr.rel (0) target = $region53
    $region52: #{_aae_recon_flat.1} parent=1 // pred_region
      _
    $region53: #{_aae_recon_flat.1} parent=1 // pred_fallthru
      _
    // Predicated region
    $region54: #{_aae_recon_flat.1} parent=1 // pred_check
      _
    $region55: #{_aae_recon_flat.1} parent=1 // pred_check_branch
      %163 = sbr.rel (0) target = $region57
    $region56: #{_aae_recon_flat.1} parent=1 // pred_region
      %165 = dma.done [#allocation3], 1024
    $region57: #{_aae_recon_flat.1} parent=1 // pred_fallthru
      _
    // Predicated region
    $region58: #{_aae_recon_flat.1} parent=1 // pred_check
      _
    $region59: #{_aae_recon_flat.1} parent=1 // pred_check_branch
      %167 = sbr.rel (0) target = $region61
    $region60: #{_aae_recon_flat.1} parent=1 // pred_region
      %169 = dma.done [#allocation6], 32768
    $region61: #{_aae_recon_flat.1} parent=1 // pred_fallthru
      _
    // Predicated region
    $region62: #{_aae_recon_flat.1} parent=1 // pred_check
      _
    $region63: #{_aae_recon_flat.1} parent=1 // pred_check_branch
      %171 = sbr.rel (0) target = $region65
    $region64: #{_aae_recon_flat.1} parent=1 // pred_region
      %173 = dma.done [#allocation6], 64
    $region65: #{_aae_recon_flat.1} parent=1 // pred_fallthru
      _
    // Predicated region
    $region66: #{_aae_recon_flat.1} parent=1 // pred_check
      _
    $region67: #{_aae_recon_flat.1} parent=1 // pred_check_branch
      %175 = sbr.rel (0) target = $region69
    $region68: #{_aae_recon_flat.1} parent=1 // pred_region
      %177 = dma.done [#allocation9], 16384
    $region69: #{_aae_recon_flat.1} parent=1 // pred_fallthru
      _
    // Predicated region
    $region70: #{_aae_recon_flat.1} parent=1 // pred_check
      _
    $region71: #{_aae_recon_flat.1} parent=1 // pred_check_branch
      %179 = sbr.rel (0) target = $region73
    $region72: #{_aae_recon_flat.1} parent=1 // pred_region
      %181 = dma.done [#allocation9], 64
    $region73: #{_aae_recon_flat.1} parent=1 // pred_fallthru
      _
    // Predicated region
    $region74: #{_aae_recon_flat.1} parent=1 // pred_check
      _
    $region75: #{_aae_recon_flat.1} parent=1 // pred_check_branch
      %183 = sbr.rel (0) target = $region77
    $region76: #{_aae_recon_flat.1} parent=1 // pred_region
      %185 = dma.done [#allocation12], 4096
    $region77: #{_aae_recon_flat.1} parent=1 // pred_fallthru
      _
    // Predicated region
    $region78: #{_aae_recon_flat.1} parent=1 // pred_check
      _
    $region79: #{_aae_recon_flat.1} parent=1 // pred_check_branch
      %187 = sbr.rel (0) target = $region81
    $region80: #{_aae_recon_flat.1} parent=1 // pred_region
      %189 = dma.done [#allocation12], 4096
    $region81: #{_aae_recon_flat.1} parent=1 // pred_fallthru
      _
    // Predicated region
    $region82: #{_aae_recon_flat.1} parent=1 // pred_check
      _
    $region83: #{_aae_recon_flat.1} parent=1 // pred_check_branch
      %191 = sbr.rel (0) target = $region85
    $region84: #{_aae_recon_flat.1} parent=1 // pred_region
      %193 = dma.done [#allocation15], 64
    $region85: #{_aae_recon_flat.1} parent=1 // pred_fallthru
      _
    // Predicated region
    $region86: #{_aae_recon_flat.1} parent=1 // pred_check
      _
    $region87: #{_aae_recon_flat.1} parent=1 // pred_check_branch
      %195 = sbr.rel (0) target = $region89
    $region88: #{_aae_recon_flat.1} parent=1 // pred_region
      %197 = dma.done [#allocation15], 16384
    $region89: #{_aae_recon_flat.1} parent=1 // pred_fallthru
      _
    // Predicated region
    $region90: #{_aae_recon_flat.1} parent=1 // pred_check
      _
    $region91: #{_aae_recon_flat.1} parent=1 // pred_check_branch
      %199 = sbr.rel (0) target = $region93
    $region92: #{_aae_recon_flat.1} parent=1 // pred_region
      %201 = dma.done [#allocation18], 64
    $region93: #{_aae_recon_flat.1} parent=1 // pred_fallthru
      _
    // Predicated region
    $region94: #{_aae_recon_flat.1} parent=1 // pred_check
      _
    $region95: #{_aae_recon_flat.1} parent=1 // pred_check_branch
      %203 = sbr.rel (0) target = $region97
    $region96: #{_aae_recon_flat.1} parent=1 // pred_region
      %205 = dma.done [#allocation18], 32768
    $region97: #{_aae_recon_flat.1} parent=1 // pred_fallthru
      _
    %v206 = vld [vmem:[#allocation2] sm:$0xff]
    %v207 = vld [vmem:[#allocation2 + $0x8] sm:$0xff]
    %v208 = vld [vmem:[#allocation2 + $0x10] sm:$0xff]
    %v209 = vld [vmem:[#allocation2 + $0x18] sm:$0xff]
    %v210 = vld [vmem:[#allocation2 + $0x20] sm:$0xff]
    %v211 = vld [vmem:[#allocation2 + $0x28] sm:$0xff]
    %v212 = vld [vmem:[#allocation2 + $0x30] sm:$0xff]
    %v213 = vld [vmem:[#allocation2 + $0x38] sm:$0xff]
    %v214 = vpack.c.bf16 %v206, %v206
    %v215 = vpack.c.bf16 %v207, %v207
    %v216 = vpack.c.bf16 %v208, %v208
    %v217 = vpack.c.bf16 %v209, %v209
    %v218 = vpack.c.bf16 %v210, %v210
    %v219 = vpack.c.bf16 %v211, %v211
    %v220 = vpack.c.bf16 %v212, %v212
    %v221 = vpack.c.bf16 %v213, %v213
    %v222 = vld [vmem:[#allocation5] sm:$0xff]
    %v223 = vld [vmem:[#allocation5 + $0x8] sm:$0xff]
    %v224 = vld [vmem:[#allocation5 + $0x10] sm:$0xff]
    %v225 = vld [vmem:[#allocation5 + $0x18] sm:$0xff]
    %v226 = vld [vmem:[#allocation5 + $0x20] sm:$0xff]
    %v227 = vld [vmem:[#allocation5 + $0x28] sm:$0xff]
    %v228 = vld [vmem:[#allocation5 + $0x30] sm:$0xff]
    %v229 = vld [vmem:[#allocation5 + $0x38] sm:$0xff]
    %v230 = vld [vmem:[#allocation5 + $0x40] sm:$0xff]
    %v231 = vld [vmem:[#allocation5 + $0x48] sm:$0xff]
    %v232 = vld [vmem:[#allocation5 + $0x50] sm:$0xff]
    %v233 = vld [vmem:[#allocation5 + $0x58] sm:$0xff]
    %v234 = vld [vmem:[#allocation5 + $0x60] sm:$0xff]
    %v235 = vld [vmem:[#allocation5 + $0x68] sm:$0xff]
    %v236 = vld [vmem:[#allocation5 + $0x70] sm:$0xff]
    %v237 = vld [vmem:[#allocation5 + $0x78] sm:$0xff]
    %v238 = vld [vmem:[#allocation5 + $0x80] sm:$0xff]
    %v239 = vld [vmem:[#allocation5 + $0x88] sm:$0xff]
    %v240 = vld [vmem:[#allocation5 + $0x90] sm:$0xff]
    %v241 = vld [vmem:[#allocation5 + $0x98] sm:$0xff]
    %v242 = vld [vmem:[#allocation5 + $0xa0] sm:$0xff]
    %v243 = vld [vmem:[#allocation5 + $0xa8] sm:$0xff]
    %v244 = vld [vmem:[#allocation5 + $0xb0] sm:$0xff]
    %v245 = vld [vmem:[#allocation5 + $0xb8] sm:$0xff]
    %v246 = vld [vmem:[#allocation5 + $0xc0] sm:$0xff]
    %v247 = vld [vmem:[#allocation5 + $0xc8] sm:$0xff]
    %v248 = vld [vmem:[#allocation5 + $0xd0] sm:$0xff]
    %v249 = vld [vmem:[#allocation5 + $0xd8] sm:$0xff]
    %v250 = vld [vmem:[#allocation5 + $0xe0] sm:$0xff]
    %v251 = vld [vmem:[#allocation5 + $0xe8] sm:$0xff]
    %v252 = vld [vmem:[#allocation5 + $0xf0] sm:$0xff]
    %v253 = vld [vmem:[#allocation5 + $0xf8] sm:$0xff]
    %v254 = vld [vmem:[#allocation5 + $0x100] sm:$0xff]
    %v255 = vld [vmem:[#allocation5 + $0x108] sm:$0xff]
    %v256 = vld [vmem:[#allocation5 + $0x110] sm:$0xff]
    %v257 = vld [vmem:[#allocation5 + $0x118] sm:$0xff]
    %v258 = vld [vmem:[#allocation5 + $0x120] sm:$0xff]
    %v259 = vld [vmem:[#allocation5 + $0x128] sm:$0xff]
    %v260 = vld [vmem:[#allocation5 + $0x130] sm:$0xff]
    %v261 = vld [vmem:[#allocation5 + $0x138] sm:$0xff]
    %v262 = vld [vmem:[#allocation5 + $0x140] sm:$0xff]
    %v263 = vld [vmem:[#allocation5 + $0x148] sm:$0xff]
    %v264 = vld [vmem:[#allocation5 + $0x150] sm:$0xff]
    %v265 = vld [vmem:[#allocation5 + $0x158] sm:$0xff]
    %v266 = vld [vmem:[#allocation5 + $0x160] sm:$0xff]
    %v267 = vld [vmem:[#allocation5 + $0x168] sm:$0xff]
    %v268 = vld [vmem:[#allocation5 + $0x170] sm:$0xff]
    %v269 = vld [vmem:[#allocation5 + $0x178] sm:$0xff]
    %v270 = vld [vmem:[#allocation5 + $0x180] sm:$0xff]
    %v271 = vld [vmem:[#allocation5 + $0x188] sm:$0xff]
    %v272 = vld [vmem:[#allocation5 + $0x190] sm:$0xff]
    %v273 = vld [vmem:[#allocation5 + $0x198] sm:$0xff]
    %v274 = vld [vmem:[#allocation5 + $0x1a0] sm:$0xff]
    %v275 = vld [vmem:[#allocation5 + $0x1a8] sm:$0xff]
    %v276 = vld [vmem:[#allocation5 + $0x1b0] sm:$0xff]
    %v277 = vld [vmem:[#allocation5 + $0x1b8] sm:$0xff]
    %v278 = vld [vmem:[#allocation5 + $0x1c0] sm:$0xff]
    %v279 = vld [vmem:[#allocation5 + $0x1c8] sm:$0xff]
    %v280 = vld [vmem:[#allocation5 + $0x1d0] sm:$0xff]
    %v281 = vld [vmem:[#allocation5 + $0x1d8] sm:$0xff]
    %v282 = vld [vmem:[#allocation5 + $0x1e0] sm:$0xff]
    %v283 = vld [vmem:[#allocation5 + $0x1e8] sm:$0xff]
    %v284 = vld [vmem:[#allocation5 + $0x1f0] sm:$0xff]
    %v285 = vld [vmem:[#allocation5 + $0x1f8] sm:$0xff]
    %v286 = vld [vmem:[#allocation5 + $0x200] sm:$0xff]
    %v287 = vld [vmem:[#allocation5 + $0x208] sm:$0xff]
    %v288 = vld [vmem:[#allocation5 + $0x210] sm:$0xff]
    %v289 = vld [vmem:[#allocation5 + $0x218] sm:$0xff]
    %v290 = vld [vmem:[#allocation5 + $0x220] sm:$0xff]
    %v291 = vld [vmem:[#allocation5 + $0x228] sm:$0xff]
    %v292 = vld [vmem:[#allocation5 + $0x230] sm:$0xff]
    %v293 = vld [vmem:[#allocation5 + $0x238] sm:$0xff]
    %v294 = vld [vmem:[#allocation5 + $0x240] sm:$0xff]
    %v295 = vld [vmem:[#allocation5 + $0x248] sm:$0xff]
    %v296 = vld [vmem:[#allocation5 + $0x250] sm:$0xff]
    %v297 = vld [vmem:[#allocation5 + $0x258] sm:$0xff]
    %v298 = vld [vmem:[#allocation5 + $0x260] sm:$0xff]
    %v299 = vld [vmem:[#allocation5 + $0x268] sm:$0xff]
    %v300 = vld [vmem:[#allocation5 + $0x270] sm:$0xff]
    %v301 = vld [vmem:[#allocation5 + $0x278] sm:$0xff]
    %v302 = vld [vmem:[#allocation5 + $0x280] sm:$0xff]
    %v303 = vld [vmem:[#allocation5 + $0x288] sm:$0xff]
    %v304 = vld [vmem:[#allocation5 + $0x290] sm:$0xff]
    %v305 = vld [vmem:[#allocation5 + $0x298] sm:$0xff]
    %v306 = vld [vmem:[#allocation5 + $0x2a0] sm:$0xff]
    %v307 = vld [vmem:[#allocation5 + $0x2a8] sm:$0xff]
    %v308 = vld [vmem:[#allocation5 + $0x2b0] sm:$0xff]
    %v309 = vld [vmem:[#allocation5 + $0x2b8] sm:$0xff]
    %v310 = vld [vmem:[#allocation5 + $0x2c0] sm:$0xff]
    %v311 = vld [vmem:[#allocation5 + $0x2c8] sm:$0xff]
    %v312 = vld [vmem:[#allocation5 + $0x2d0] sm:$0xff]
    %v313 = vld [vmem:[#allocation5 + $0x2d8] sm:$0xff]
    %v314 = vld [vmem:[#allocation5 + $0x2e0] sm:$0xff]
    %v315 = vld [vmem:[#allocation5 + $0x2e8] sm:$0xff]
    %v316 = vld [vmem:[#allocation5 + $0x2f0] sm:$0xff]
    %v317 = vld [vmem:[#allocation5 + $0x2f8] sm:$0xff]
    %v318 = vld [vmem:[#allocation5 + $0x300] sm:$0xff]
    %v319 = vld [vmem:[#allocation5 + $0x308] sm:$0xff]
    %v320 = vld [vmem:[#allocation5 + $0x310] sm:$0xff]
    %v321 = vld [vmem:[#allocation5 + $0x318] sm:$0xff]
    %v322 = vld [vmem:[#allocation5 + $0x320] sm:$0xff]
    %v323 = vld [vmem:[#allocation5 + $0x328] sm:$0xff]
    %v324 = vld [vmem:[#allocation5 + $0x330] sm:$0xff]
    %v325 = vld [vmem:[#allocation5 + $0x338] sm:$0xff]
    %v326 = vld [vmem:[#allocation5 + $0x340] sm:$0xff]
    %v327 = vld [vmem:[#allocation5 + $0x348] sm:$0xff]
    %v328 = vld [vmem:[#allocation5 + $0x350] sm:$0xff]
    %v329 = vld [vmem:[#allocation5 + $0x358] sm:$0xff]
    %v330 = vld [vmem:[#allocation5 + $0x360] sm:$0xff]
    %v331 = vld [vmem:[#allocation5 + $0x368] sm:$0xff]
    %v332 = vld [vmem:[#allocation5 + $0x370] sm:$0xff]
    %v333 = vld [vmem:[#allocation5 + $0x378] sm:$0xff]
    %v334 = vld [vmem:[#allocation5 + $0x380] sm:$0xff]
    %v335 = vld [vmem:[#allocation5 + $0x388] sm:$0xff]
    %v336 = vld [vmem:[#allocation5 + $0x390] sm:$0xff]
    %v337 = vld [vmem:[#allocation5 + $0x398] sm:$0xff]
    %v338 = vld [vmem:[#allocation5 + $0x3a0] sm:$0xff]
    %v339 = vld [vmem:[#allocation5 + $0x3a8] sm:$0xff]
    %v340 = vld [vmem:[#allocation5 + $0x3b0] sm:$0xff]
    %v341 = vld [vmem:[#allocation5 + $0x3b8] sm:$0xff]
    %v342 = vld [vmem:[#allocation5 + $0x3c0] sm:$0xff]
    %v343 = vld [vmem:[#allocation5 + $0x3c8] sm:$0xff]
    %v344 = vld [vmem:[#allocation5 + $0x3d0] sm:$0xff]
    %v345 = vld [vmem:[#allocation5 + $0x3d8] sm:$0xff]
    %v346 = vld [vmem:[#allocation5 + $0x3e0] sm:$0xff]
    %v347 = vld [vmem:[#allocation5 + $0x3e8] sm:$0xff]
    %v348 = vld [vmem:[#allocation5 + $0x3f0] sm:$0xff]
    %v349 = vld [vmem:[#allocation5 + $0x3f8] sm:$0xff]
    %v350 = vld [vmem:[#allocation5 + $0x400] sm:$0xff]
    %v351 = vld [vmem:[#allocation5 + $0x408] sm:$0xff]
    %v352 = vld [vmem:[#allocation5 + $0x410] sm:$0xff]
    %v353 = vld [vmem:[#allocation5 + $0x418] sm:$0xff]
    %v354 = vld [vmem:[#allocation5 + $0x420] sm:$0xff]
    %v355 = vld [vmem:[#allocation5 + $0x428] sm:$0xff]
    %v356 = vld [vmem:[#allocation5 + $0x430] sm:$0xff]
    %v357 = vld [vmem:[#allocation5 + $0x438] sm:$0xff]
    %v358 = vld [vmem:[#allocation5 + $0x440] sm:$0xff]
    %v359 = vld [vmem:[#allocation5 + $0x448] sm:$0xff]
    %v360 = vld [vmem:[#allocation5 + $0x450] sm:$0xff]
    %v361 = vld [vmem:[#allocation5 + $0x458] sm:$0xff]
    %v362 = vld [vmem:[#allocation5 + $0x460] sm:$0xff]
    %v363 = vld [vmem:[#allocation5 + $0x468] sm:$0xff]
    %v364 = vld [vmem:[#allocation5 + $0x470] sm:$0xff]
    %v365 = vld [vmem:[#allocation5 + $0x478] sm:$0xff]
    %v366 = vld [vmem:[#allocation5 + $0x480] sm:$0xff]
    %v367 = vld [vmem:[#allocation5 + $0x488] sm:$0xff]
    %v368 = vld [vmem:[#allocation5 + $0x490] sm:$0xff]
    %v369 = vld [vmem:[#allocation5 + $0x498] sm:$0xff]
    %v370 = vld [vmem:[#allocation5 + $0x4a0] sm:$0xff]
    %v371 = vld [vmem:[#allocation5 + $0x4a8] sm:$0xff]
    %v372 = vld [vmem:[#allocation5 + $0x4b0] sm:$0xff]
    %v373 = vld [vmem:[#allocation5 + $0x4b8] sm:$0xff]
    %v374 = vld [vmem:[#allocation5 + $0x4c0] sm:$0xff]
    %v375 = vld [vmem:[#allocation5 + $0x4c8] sm:$0xff]
    %v376 = vld [vmem:[#allocation5 + $0x4d0] sm:$0xff]
    %v377 = vld [vmem:[#allocation5 + $0x4d8] sm:$0xff]
    %v378 = vld [vmem:[#allocation5 + $0x4e0] sm:$0xff]
    %v379 = vld [vmem:[#allocation5 + $0x4e8] sm:$0xff]
    %v380 = vld [vmem:[#allocation5 + $0x4f0] sm:$0xff]
    %v381 = vld [vmem:[#allocation5 + $0x4f8] sm:$0xff]
    %v382 = vld [vmem:[#allocation5 + $0x500] sm:$0xff]
    %v383 = vld [vmem:[#allocation5 + $0x508] sm:$0xff]
    %v384 = vld [vmem:[#allocation5 + $0x510] sm:$0xff]
    %v385 = vld [vmem:[#allocation5 + $0x518] sm:$0xff]
    %v386 = vld [vmem:[#allocation5 + $0x520] sm:$0xff]
    %v387 = vld [vmem:[#allocation5 + $0x528] sm:$0xff]
    %v388 = vld [vmem:[#allocation5 + $0x530] sm:$0xff]
    %v389 = vld [vmem:[#allocation5 + $0x538] sm:$0xff]
    %v390 = vld [vmem:[#allocation5 + $0x540] sm:$0xff]
    %v391 = vld [vmem:[#allocation5 + $0x548] sm:$0xff]
    %v392 = vld [vmem:[#allocation5 + $0x550] sm:$0xff]
    %v393 = vld [vmem:[#allocation5 + $0x558] sm:$0xff]
    %v394 = vld [vmem:[#allocation5 + $0x560] sm:$0xff]
    %v395 = vld [vmem:[#allocation5 + $0x568] sm:$0xff]
    %v396 = vld [vmem:[#allocation5 + $0x570] sm:$0xff]
    %v397 = vld [vmem:[#allocation5 + $0x578] sm:$0xff]
    %v398 = vld [vmem:[#allocation5 + $0x580] sm:$0xff]
    %v399 = vld [vmem:[#allocation5 + $0x588] sm:$0xff]
    %v400 = vld [vmem:[#allocation5 + $0x590] sm:$0xff]
    %v401 = vld [vmem:[#allocation5 + $0x598] sm:$0xff]
    %v402 = vld [vmem:[#allocation5 + $0x5a0] sm:$0xff]
    %v403 = vld [vmem:[#allocation5 + $0x5a8] sm:$0xff]
    %v404 = vld [vmem:[#allocation5 + $0x5b0] sm:$0xff]
    %v405 = vld [vmem:[#allocation5 + $0x5b8] sm:$0xff]
    %v406 = vld [vmem:[#allocation5 + $0x5c0] sm:$0xff]
    %v407 = vld [vmem:[#allocation5 + $0x5c8] sm:$0xff]
    %v408 = vld [vmem:[#allocation5 + $0x5d0] sm:$0xff]
    %v409 = vld [vmem:[#allocation5 + $0x5d8] sm:$0xff]
    %v410 = vld [vmem:[#allocation5 + $0x5e0] sm:$0xff]
    %v411 = vld [vmem:[#allocation5 + $0x5e8] sm:$0xff]
    %v412 = vld [vmem:[#allocation5 + $0x5f0] sm:$0xff]
    %v413 = vld [vmem:[#allocation5 + $0x5f8] sm:$0xff]
    %v414 = vld [vmem:[#allocation5 + $0x600] sm:$0xff]
    %v415 = vld [vmem:[#allocation5 + $0x608] sm:$0xff]
    %v416 = vld [vmem:[#allocation5 + $0x610] sm:$0xff]
    %v417 = vld [vmem:[#allocation5 + $0x618] sm:$0xff]
    %v418 = vld [vmem:[#allocation5 + $0x620] sm:$0xff]
    %v419 = vld [vmem:[#allocation5 + $0x628] sm:$0xff]
    %v420 = vld [vmem:[#allocation5 + $0x630] sm:$0xff]
    %v421 = vld [vmem:[#allocation5 + $0x638] sm:$0xff]
    %v422 = vld [vmem:[#allocation5 + $0x640] sm:$0xff]
    %v423 = vld [vmem:[#allocation5 + $0x648] sm:$0xff]
    %v424 = vld [vmem:[#allocation5 + $0x650] sm:$0xff]
    %v425 = vld [vmem:[#allocation5 + $0x658] sm:$0xff]
    %v426 = vld [vmem:[#allocation5 + $0x660] sm:$0xff]
    %v427 = vld [vmem:[#allocation5 + $0x668] sm:$0xff]
    %v428 = vld [vmem:[#allocation5 + $0x670] sm:$0xff]
    %v429 = vld [vmem:[#allocation5 + $0x678] sm:$0xff]
    %v430 = vld [vmem:[#allocation5 + $0x680] sm:$0xff]
    %v431 = vld [vmem:[#allocation5 + $0x688] sm:$0xff]
    %v432 = vld [vmem:[#allocation5 + $0x690] sm:$0xff]
    %v433 = vld [vmem:[#allocation5 + $0x698] sm:$0xff]
    %v434 = vld [vmem:[#allocation5 + $0x6a0] sm:$0xff]
    %v435 = vld [vmem:[#allocation5 + $0x6a8] sm:$0xff]
    %v436 = vld [vmem:[#allocation5 + $0x6b0] sm:$0xff]
    %v437 = vld [vmem:[#allocation5 + $0x6b8] sm:$0xff]
    %v438 = vld [vmem:[#allocation5 + $0x6c0] sm:$0xff]
    %v439 = vld [vmem:[#allocation5 + $0x6c8] sm:$0xff]
    %v440 = vld [vmem:[#allocation5 + $0x6d0] sm:$0xff]
    %v441 = vld [vmem:[#allocation5 + $0x6d8] sm:$0xff]
    %v442 = vld [vmem:[#allocation5 + $0x6e0] sm:$0xff]
    %v443 = vld [vmem:[#allocation5 + $0x6e8] sm:$0xff]
    %v444 = vld [vmem:[#allocation5 + $0x6f0] sm:$0xff]
    %v445 = vld [vmem:[#allocation5 + $0x6f8] sm:$0xff]
    %v446 = vld [vmem:[#allocation5 + $0x700] sm:$0xff]
    %v447 = vld [vmem:[#allocation5 + $0x708] sm:$0xff]
    %v448 = vld [vmem:[#allocation5 + $0x710] sm:$0xff]
    %v449 = vld [vmem:[#allocation5 + $0x718] sm:$0xff]
    %v450 = vld [vmem:[#allocation5 + $0x720] sm:$0xff]
    %v451 = vld [vmem:[#allocation5 + $0x728] sm:$0xff]
    %v452 = vld [vmem:[#allocation5 + $0x730] sm:$0xff]
    %v453 = vld [vmem:[#allocation5 + $0x738] sm:$0xff]
    %v454 = vld [vmem:[#allocation5 + $0x740] sm:$0xff]
    %v455 = vld [vmem:[#allocation5 + $0x748] sm:$0xff]
    %v456 = vld [vmem:[#allocation5 + $0x750] sm:$0xff]
    %v457 = vld [vmem:[#allocation5 + $0x758] sm:$0xff]
    %v458 = vld [vmem:[#allocation5 + $0x760] sm:$0xff]
    %v459 = vld [vmem:[#allocation5 + $0x768] sm:$0xff]
    %v460 = vld [vmem:[#allocation5 + $0x770] sm:$0xff]
    %v461 = vld [vmem:[#allocation5 + $0x778] sm:$0xff]
    %v462 = vld [vmem:[#allocation5 + $0x780] sm:$0xff]
    %v463 = vld [vmem:[#allocation5 + $0x788] sm:$0xff]
    %v464 = vld [vmem:[#allocation5 + $0x790] sm:$0xff]
    %v465 = vld [vmem:[#allocation5 + $0x798] sm:$0xff]
    %v466 = vld [vmem:[#allocation5 + $0x7a0] sm:$0xff]
    %v467 = vld [vmem:[#allocation5 + $0x7a8] sm:$0xff]
    %v468 = vld [vmem:[#allocation5 + $0x7b0] sm:$0xff]
    %v469 = vld [vmem:[#allocation5 + $0x7b8] sm:$0xff]
    %v470 = vld [vmem:[#allocation5 + $0x7c0] sm:$0xff]
    %v471 = vld [vmem:[#allocation5 + $0x7c8] sm:$0xff]
    %v472 = vld [vmem:[#allocation5 + $0x7d0] sm:$0xff]
    %v473 = vld [vmem:[#allocation5 + $0x7d8] sm:$0xff]
    %v474 = vld [vmem:[#allocation5 + $0x7e0] sm:$0xff]
    %v475 = vld [vmem:[#allocation5 + $0x7e8] sm:$0xff]
    %v476 = vld [vmem:[#allocation5 + $0x7f0] sm:$0xff]
    %v477 = vld [vmem:[#allocation5 + $0x7f8] sm:$0xff]
    %v478 = vld [vmem:[#allocation7] sm:$0xf]
    %v480 = vperm.slane %v478, 0
    %v481 = vperm.slane %v478, 1
    %v482 = vperm.slane %v478, 2
    %v483 = vperm.slane %v478, 3
    %v744 = vunpack.c.l.b16 %v222
    %v745 = vunpack.c.h.b16 %v222
    %v746 = vunpack.c.l.b16 %v223
    %v747 = vunpack.c.h.b16 %v223
    %v748 = vunpack.c.l.b16 %v224
    %v749 = vunpack.c.h.b16 %v224
    %v750 = vunpack.c.l.b16 %v225
    %v751 = vunpack.c.h.b16 %v225
    %v752 = vunpack.c.l.b16 %v226
    %v753 = vunpack.c.h.b16 %v226
    %v754 = vunpack.c.l.b16 %v227
    %v755 = vunpack.c.h.b16 %v227
    %v756 = vunpack.c.l.b16 %v228
    %v757 = vunpack.c.h.b16 %v228
    %v758 = vunpack.c.l.b16 %v229
    %v759 = vunpack.c.h.b16 %v229
    %v760 = vunpack.c.l.b16 %v230
    %v761 = vunpack.c.h.b16 %v230
    %v762 = vunpack.c.l.b16 %v231
    %v763 = vunpack.c.h.b16 %v231
    %v764 = vunpack.c.l.b16 %v232
    %v765 = vunpack.c.h.b16 %v232
    %v766 = vunpack.c.l.b16 %v233
    %v767 = vunpack.c.h.b16 %v233
    %v768 = vunpack.c.l.b16 %v234
    %v769 = vunpack.c.h.b16 %v234
    %v770 = vunpack.c.l.b16 %v235
    %v771 = vunpack.c.h.b16 %v235
    %v772 = vunpack.c.l.b16 %v236
    %v773 = vunpack.c.h.b16 %v236
    %v774 = vunpack.c.l.b16 %v237
    %v775 = vunpack.c.h.b16 %v237
    %v776 = vunpack.c.l.b16 %v238
    %v777 = vunpack.c.h.b16 %v238
    %v778 = vunpack.c.l.b16 %v239
    %v779 = vunpack.c.h.b16 %v239
    %v780 = vunpack.c.l.b16 %v240
    %v781 = vunpack.c.h.b16 %v240
    %v782 = vunpack.c.l.b16 %v241
    %v783 = vunpack.c.h.b16 %v241
    %v784 = vunpack.c.l.b16 %v242
    %v785 = vunpack.c.h.b16 %v242
    %v786 = vunpack.c.l.b16 %v243
    %v787 = vunpack.c.h.b16 %v243
    %v788 = vunpack.c.l.b16 %v244
    %v789 = vunpack.c.h.b16 %v244
    %v790 = vunpack.c.l.b16 %v245
    %v791 = vunpack.c.h.b16 %v245
    %v792 = vunpack.c.l.b16 %v246
    %v793 = vunpack.c.h.b16 %v246
    %v794 = vunpack.c.l.b16 %v247
    %v795 = vunpack.c.h.b16 %v247
    %v796 = vunpack.c.l.b16 %v248
    %v797 = vunpack.c.h.b16 %v248
    %v798 = vunpack.c.l.b16 %v249
    %v799 = vunpack.c.h.b16 %v249
    %v800 = vunpack.c.l.b16 %v250
    %v801 = vunpack.c.h.b16 %v250
    %v802 = vunpack.c.l.b16 %v251
    %v803 = vunpack.c.h.b16 %v251
    %v804 = vunpack.c.l.b16 %v252
    %v805 = vunpack.c.h.b16 %v252
    %v806 = vunpack.c.l.b16 %v253
    %v807 = vunpack.c.h.b16 %v253
    %v808 = vunpack.c.l.b16 %v254
    %v809 = vunpack.c.h.b16 %v254
    %v810 = vunpack.c.l.b16 %v255
    %v811 = vunpack.c.h.b16 %v255
    %v812 = vunpack.c.l.b16 %v256
    %v813 = vunpack.c.h.b16 %v256
    %v814 = vunpack.c.l.b16 %v257
    %v815 = vunpack.c.h.b16 %v257
    %v816 = vunpack.c.l.b16 %v258
    %v817 = vunpack.c.h.b16 %v258
    %v818 = vunpack.c.l.b16 %v259
    %v819 = vunpack.c.h.b16 %v259
    %v820 = vunpack.c.l.b16 %v260
    %v821 = vunpack.c.h.b16 %v260
    %v822 = vunpack.c.l.b16 %v261
    %v823 = vunpack.c.h.b16 %v261
    %v824 = vunpack.c.l.b16 %v262
    %v825 = vunpack.c.h.b16 %v262
    %v826 = vunpack.c.l.b16 %v263
    %v827 = vunpack.c.h.b16 %v263
    %v828 = vunpack.c.l.b16 %v264
    %v829 = vunpack.c.h.b16 %v264
    %v830 = vunpack.c.l.b16 %v265
    %v831 = vunpack.c.h.b16 %v265
    %v832 = vunpack.c.l.b16 %v266
    %v833 = vunpack.c.h.b16 %v266
    %v834 = vunpack.c.l.b16 %v267
    %v835 = vunpack.c.h.b16 %v267
    %v836 = vunpack.c.l.b16 %v268
    %v837 = vunpack.c.h.b16 %v268
    %v838 = vunpack.c.l.b16 %v269
    %v839 = vunpack.c.h.b16 %v269
    %v840 = vunpack.c.l.b16 %v270
    %v841 = vunpack.c.h.b16 %v270
    %v842 = vunpack.c.l.b16 %v271
    %v843 = vunpack.c.h.b16 %v271
    %v844 = vunpack.c.l.b16 %v272
    %v845 = vunpack.c.h.b16 %v272
    %v846 = vunpack.c.l.b16 %v273
    %v847 = vunpack.c.h.b16 %v273
    %v848 = vunpack.c.l.b16 %v274
    %v849 = vunpack.c.h.b16 %v274
    %v850 = vunpack.c.l.b16 %v275
    %v851 = vunpack.c.h.b16 %v275
    %v852 = vunpack.c.l.b16 %v276
    %v853 = vunpack.c.h.b16 %v276
    %v854 = vunpack.c.l.b16 %v277
    %v855 = vunpack.c.h.b16 %v277
    %v856 = vunpack.c.l.b16 %v278
    %v857 = vunpack.c.h.b16 %v278
    %v858 = vunpack.c.l.b16 %v279
    %v859 = vunpack.c.h.b16 %v279
    %v860 = vunpack.c.l.b16 %v280
    %v861 = vunpack.c.h.b16 %v280
    %v862 = vunpack.c.l.b16 %v281
    %v863 = vunpack.c.h.b16 %v281
    %v864 = vunpack.c.l.b16 %v282
    %v865 = vunpack.c.h.b16 %v282
    %v866 = vunpack.c.l.b16 %v283
    %v867 = vunpack.c.h.b16 %v283
    %v868 = vunpack.c.l.b16 %v284
    %v869 = vunpack.c.h.b16 %v284
    %v870 = vunpack.c.l.b16 %v285
    %v871 = vunpack.c.h.b16 %v285
    %v872 = vunpack.c.l.b16 %v286
    %v873 = vunpack.c.h.b16 %v286
    %v874 = vunpack.c.l.b16 %v287
    %v875 = vunpack.c.h.b16 %v287
    %v876 = vunpack.c.l.b16 %v288
    %v877 = vunpack.c.h.b16 %v288
    %v878 = vunpack.c.l.b16 %v289
    %v879 = vunpack.c.h.b16 %v289
    %v880 = vunpack.c.l.b16 %v290
    %v881 = vunpack.c.h.b16 %v290
    %v882 = vunpack.c.l.b16 %v291
    %v883 = vunpack.c.h.b16 %v291
    %v884 = vunpack.c.l.b16 %v292
    %v885 = vunpack.c.h.b16 %v292
    %v886 = vunpack.c.l.b16 %v293
    %v887 = vunpack.c.h.b16 %v293
    %v888 = vunpack.c.l.b16 %v294
    %v889 = vunpack.c.h.b16 %v294
    %v890 = vunpack.c.l.b16 %v295
    %v891 = vunpack.c.h.b16 %v295
    %v892 = vunpack.c.l.b16 %v296
    %v893 = vunpack.c.h.b16 %v296
    %v894 = vunpack.c.l.b16 %v297
    %v895 = vunpack.c.h.b16 %v297
    %v896 = vunpack.c.l.b16 %v298
    %v897 = vunpack.c.h.b16 %v298
    %v898 = vunpack.c.l.b16 %v299
    %v899 = vunpack.c.h.b16 %v299
    %v900 = vunpack.c.l.b16 %v300
    %v901 = vunpack.c.h.b16 %v300
    %v902 = vunpack.c.l.b16 %v301
    %v903 = vunpack.c.h.b16 %v301
    %v904 = vunpack.c.l.b16 %v302
    %v905 = vunpack.c.h.b16 %v302
    %v906 = vunpack.c.l.b16 %v303
    %v907 = vunpack.c.h.b16 %v303
    %v908 = vunpack.c.l.b16 %v304
    %v909 = vunpack.c.h.b16 %v304
    %v910 = vunpack.c.l.b16 %v305
    %v911 = vunpack.c.h.b16 %v305
    %v912 = vunpack.c.l.b16 %v306
    %v913 = vunpack.c.h.b16 %v306
    %v914 = vunpack.c.l.b16 %v307
    %v915 = vunpack.c.h.b16 %v307
    %v916 = vunpack.c.l.b16 %v308
    %v917 = vunpack.c.h.b16 %v308
    %v918 = vunpack.c.l.b16 %v309
    %v919 = vunpack.c.h.b16 %v309
    %v920 = vunpack.c.l.b16 %v310
    %v921 = vunpack.c.h.b16 %v310
    %v922 = vunpack.c.l.b16 %v311
    %v923 = vunpack.c.h.b16 %v311
    %v924 = vunpack.c.l.b16 %v312
    %v925 = vunpack.c.h.b16 %v312
    %v926 = vunpack.c.l.b16 %v313
    %v927 = vunpack.c.h.b16 %v313
    %v928 = vunpack.c.l.b16 %v314
    %v929 = vunpack.c.h.b16 %v314
    %v930 = vunpack.c.l.b16 %v315
    %v931 = vunpack.c.h.b16 %v315
    %v932 = vunpack.c.l.b16 %v316
    %v933 = vunpack.c.h.b16 %v316
    %v934 = vunpack.c.l.b16 %v317
    %v935 = vunpack.c.h.b16 %v317
    %v936 = vunpack.c.l.b16 %v318
    %v937 = vunpack.c.h.b16 %v318
    %v938 = vunpack.c.l.b16 %v319
    %v939 = vunpack.c.h.b16 %v319
    %v940 = vunpack.c.l.b16 %v320
    %v941 = vunpack.c.h.b16 %v320
    %v942 = vunpack.c.l.b16 %v321
    %v943 = vunpack.c.h.b16 %v321
    %v944 = vunpack.c.l.b16 %v322
    %v945 = vunpack.c.h.b16 %v322
    %v946 = vunpack.c.l.b16 %v323
    %v947 = vunpack.c.h.b16 %v323
    %v948 = vunpack.c.l.b16 %v324
    %v949 = vunpack.c.h.b16 %v324
    %v950 = vunpack.c.l.b16 %v325
    %v951 = vunpack.c.h.b16 %v325
    %v952 = vunpack.c.l.b16 %v326
    %v953 = vunpack.c.h.b16 %v326
    %v954 = vunpack.c.l.b16 %v327
    %v955 = vunpack.c.h.b16 %v327
    %v956 = vunpack.c.l.b16 %v328
    %v957 = vunpack.c.h.b16 %v328
    %v958 = vunpack.c.l.b16 %v329
    %v959 = vunpack.c.h.b16 %v329
    %v960 = vunpack.c.l.b16 %v330
    %v961 = vunpack.c.h.b16 %v330
    %v962 = vunpack.c.l.b16 %v331
    %v963 = vunpack.c.h.b16 %v331
    %v964 = vunpack.c.l.b16 %v332
    %v965 = vunpack.c.h.b16 %v332
    %v966 = vunpack.c.l.b16 %v333
    %v967 = vunpack.c.h.b16 %v333
    %v968 = vunpack.c.l.b16 %v334
    %v969 = vunpack.c.h.b16 %v334
    %v970 = vunpack.c.l.b16 %v335
    %v971 = vunpack.c.h.b16 %v335
    %v972 = vunpack.c.l.b16 %v336
    %v973 = vunpack.c.h.b16 %v336
    %v974 = vunpack.c.l.b16 %v337
    %v975 = vunpack.c.h.b16 %v337
    %v976 = vunpack.c.l.b16 %v338
    %v977 = vunpack.c.h.b16 %v338
    %v978 = vunpack.c.l.b16 %v339
    %v979 = vunpack.c.h.b16 %v339
    %v980 = vunpack.c.l.b16 %v340
    %v981 = vunpack.c.h.b16 %v340
    %v982 = vunpack.c.l.b16 %v341
    %v983 = vunpack.c.h.b16 %v341
    %v984 = vunpack.c.l.b16 %v342
    %v985 = vunpack.c.h.b16 %v342
    %v986 = vunpack.c.l.b16 %v343
    %v987 = vunpack.c.h.b16 %v343
    %v988 = vunpack.c.l.b16 %v344
    %v989 = vunpack.c.h.b16 %v344
    %v990 = vunpack.c.l.b16 %v345
    %v991 = vunpack.c.h.b16 %v345
    %v992 = vunpack.c.l.b16 %v346
    %v993 = vunpack.c.h.b16 %v346
    %v994 = vunpack.c.l.b16 %v347
    %v995 = vunpack.c.h.b16 %v347
    %v996 = vunpack.c.l.b16 %v348
    %v997 = vunpack.c.h.b16 %v348
    %v998 = vunpack.c.l.b16 %v349
    %v999 = vunpack.c.h.b16 %v349
    %v1000 = vunpack.c.l.b16 %v350
    %v1001 = vunpack.c.h.b16 %v350
    %v1002 = vunpack.c.l.b16 %v351
    %v1003 = vunpack.c.h.b16 %v351
    %v1004 = vunpack.c.l.b16 %v352
    %v1005 = vunpack.c.h.b16 %v352
    %v1006 = vunpack.c.l.b16 %v353
    %v1007 = vunpack.c.h.b16 %v353
    %v1008 = vunpack.c.l.b16 %v354
    %v1009 = vunpack.c.h.b16 %v354
    %v1010 = vunpack.c.l.b16 %v355
    %v1011 = vunpack.c.h.b16 %v355
    %v1012 = vunpack.c.l.b16 %v356
    %v1013 = vunpack.c.h.b16 %v356
    %v1014 = vunpack.c.l.b16 %v357
    %v1015 = vunpack.c.h.b16 %v357
    %v1016 = vunpack.c.l.b16 %v358
    %v1017 = vunpack.c.h.b16 %v358
    %v1018 = vunpack.c.l.b16 %v359
    %v1019 = vunpack.c.h.b16 %v359
    %v1020 = vunpack.c.l.b16 %v360
    %v1021 = vunpack.c.h.b16 %v360
    %v1022 = vunpack.c.l.b16 %v361
    %v1023 = vunpack.c.h.b16 %v361
    %v1024 = vunpack.c.l.b16 %v362
    %v1025 = vunpack.c.h.b16 %v362
    %v1026 = vunpack.c.l.b16 %v363
    %v1027 = vunpack.c.h.b16 %v363
    %v1028 = vunpack.c.l.b16 %v364
    %v1029 = vunpack.c.h.b16 %v364
    %v1030 = vunpack.c.l.b16 %v365
    %v1031 = vunpack.c.h.b16 %v365
    %v1032 = vunpack.c.l.b16 %v366
    %v1033 = vunpack.c.h.b16 %v366
    %v1034 = vunpack.c.l.b16 %v367
    %v1035 = vunpack.c.h.b16 %v367
    %v1036 = vunpack.c.l.b16 %v368
    %v1037 = vunpack.c.h.b16 %v368
    %v1038 = vunpack.c.l.b16 %v369
    %v1039 = vunpack.c.h.b16 %v369
    %v1040 = vunpack.c.l.b16 %v370
    %v1041 = vunpack.c.h.b16 %v370
    %v1042 = vunpack.c.l.b16 %v371
    %v1043 = vunpack.c.h.b16 %v371
    %v1044 = vunpack.c.l.b16 %v372
    %v1045 = vunpack.c.h.b16 %v372
    %v1046 = vunpack.c.l.b16 %v373
    %v1047 = vunpack.c.h.b16 %v373
    %v1048 = vunpack.c.l.b16 %v374
    %v1049 = vunpack.c.h.b16 %v374
    %v1050 = vunpack.c.l.b16 %v375
    %v1051 = vunpack.c.h.b16 %v375
    %v1052 = vunpack.c.l.b16 %v376
    %v1053 = vunpack.c.h.b16 %v376
    %v1054 = vunpack.c.l.b16 %v377
    %v1055 = vunpack.c.h.b16 %v377
    %v1056 = vunpack.c.l.b16 %v378
    %v1057 = vunpack.c.h.b16 %v378
    %v1058 = vunpack.c.l.b16 %v379
    %v1059 = vunpack.c.h.b16 %v379
    %v1060 = vunpack.c.l.b16 %v380
    %v1061 = vunpack.c.h.b16 %v380
    %v1062 = vunpack.c.l.b16 %v381
    %v1063 = vunpack.c.h.b16 %v381
    %v1064 = vunpack.c.l.b16 %v382
    %v1065 = vunpack.c.h.b16 %v382
    %v1066 = vunpack.c.l.b16 %v383
    %v1067 = vunpack.c.h.b16 %v383
    %v1068 = vunpack.c.l.b16 %v384
    %v1069 = vunpack.c.h.b16 %v384
    %v1070 = vunpack.c.l.b16 %v385
    %v1071 = vunpack.c.h.b16 %v385
    %v1072 = vunpack.c.l.b16 %v386
    %v1073 = vunpack.c.h.b16 %v386
    %v1074 = vunpack.c.l.b16 %v387
    %v1075 = vunpack.c.h.b16 %v387
    %v1076 = vunpack.c.l.b16 %v388
    %v1077 = vunpack.c.h.b16 %v388
    %v1078 = vunpack.c.l.b16 %v389
    %v1079 = vunpack.c.h.b16 %v389
    %v1080 = vunpack.c.l.b16 %v390
    %v1081 = vunpack.c.h.b16 %v390
    %v1082 = vunpack.c.l.b16 %v391
    %v1083 = vunpack.c.h.b16 %v391
    %v1084 = vunpack.c.l.b16 %v392
    %v1085 = vunpack.c.h.b16 %v392
    %v1086 = vunpack.c.l.b16 %v393
    %v1087 = vunpack.c.h.b16 %v393
    %v1088 = vunpack.c.l.b16 %v394
    %v1089 = vunpack.c.h.b16 %v394
    %v1090 = vunpack.c.l.b16 %v395
    %v1091 = vunpack.c.h.b16 %v395
    %v1092 = vunpack.c.l.b16 %v396
    %v1093 = vunpack.c.h.b16 %v396
    %v1094 = vunpack.c.l.b16 %v397
    %v1095 = vunpack.c.h.b16 %v397
    %v1096 = vunpack.c.l.b16 %v398
    %v1097 = vunpack.c.h.b16 %v398
    %v1098 = vunpack.c.l.b16 %v399
    %v1099 = vunpack.c.h.b16 %v399
    %v1100 = vunpack.c.l.b16 %v400
    %v1101 = vunpack.c.h.b16 %v400
    %v1102 = vunpack.c.l.b16 %v401
    %v1103 = vunpack.c.h.b16 %v401
    %v1104 = vunpack.c.l.b16 %v402
    %v1105 = vunpack.c.h.b16 %v402
    %v1106 = vunpack.c.l.b16 %v403
    %v1107 = vunpack.c.h.b16 %v403
    %v1108 = vunpack.c.l.b16 %v404
    %v1109 = vunpack.c.h.b16 %v404
    %v1110 = vunpack.c.l.b16 %v405
    %v1111 = vunpack.c.h.b16 %v405
    %v1112 = vunpack.c.l.b16 %v406
    %v1113 = vunpack.c.h.b16 %v406
    %v1114 = vunpack.c.l.b16 %v407
    %v1115 = vunpack.c.h.b16 %v407
    %v1116 = vunpack.c.l.b16 %v408
    %v1117 = vunpack.c.h.b16 %v408
    %v1118 = vunpack.c.l.b16 %v409
    %v1119 = vunpack.c.h.b16 %v409
    %v1120 = vunpack.c.l.b16 %v410
    %v1121 = vunpack.c.h.b16 %v410
    %v1122 = vunpack.c.l.b16 %v411
    %v1123 = vunpack.c.h.b16 %v411
    %v1124 = vunpack.c.l.b16 %v412
    %v1125 = vunpack.c.h.b16 %v412
    %v1126 = vunpack.c.l.b16 %v413
    %v1127 = vunpack.c.h.b16 %v413
    %v1128 = vunpack.c.l.b16 %v414
    %v1129 = vunpack.c.h.b16 %v414
    %v1130 = vunpack.c.l.b16 %v415
    %v1131 = vunpack.c.h.b16 %v415
    %v1132 = vunpack.c.l.b16 %v416
    %v1133 = vunpack.c.h.b16 %v416
    %v1134 = vunpack.c.l.b16 %v417
    %v1135 = vunpack.c.h.b16 %v417
    %v1136 = vunpack.c.l.b16 %v418
    %v1137 = vunpack.c.h.b16 %v418
    %v1138 = vunpack.c.l.b16 %v419
    %v1139 = vunpack.c.h.b16 %v419
    %v1140 = vunpack.c.l.b16 %v420
    %v1141 = vunpack.c.h.b16 %v420
    %v1142 = vunpack.c.l.b16 %v421
    %v1143 = vunpack.c.h.b16 %v421
    %v1144 = vunpack.c.l.b16 %v422
    %v1145 = vunpack.c.h.b16 %v422
    %v1146 = vunpack.c.l.b16 %v423
    %v1147 = vunpack.c.h.b16 %v423
    %v1148 = vunpack.c.l.b16 %v424
    %v1149 = vunpack.c.h.b16 %v424
    %v1150 = vunpack.c.l.b16 %v425
    %v1151 = vunpack.c.h.b16 %v425
    %v1152 = vunpack.c.l.b16 %v426
    %v1153 = vunpack.c.h.b16 %v426
    %v1154 = vunpack.c.l.b16 %v427
    %v1155 = vunpack.c.h.b16 %v427
    %v1156 = vunpack.c.l.b16 %v428
    %v1157 = vunpack.c.h.b16 %v428
    %v1158 = vunpack.c.l.b16 %v429
    %v1159 = vunpack.c.h.b16 %v429
    %v1160 = vunpack.c.l.b16 %v430
    %v1161 = vunpack.c.h.b16 %v430
    %v1162 = vunpack.c.l.b16 %v431
    %v1163 = vunpack.c.h.b16 %v431
    %v1164 = vunpack.c.l.b16 %v432
    %v1165 = vunpack.c.h.b16 %v432
    %v1166 = vunpack.c.l.b16 %v433
    %v1167 = vunpack.c.h.b16 %v433
    %v1168 = vunpack.c.l.b16 %v434
    %v1169 = vunpack.c.h.b16 %v434
    %v1170 = vunpack.c.l.b16 %v435
    %v1171 = vunpack.c.h.b16 %v435
    %v1172 = vunpack.c.l.b16 %v436
    %v1173 = vunpack.c.h.b16 %v436
    %v1174 = vunpack.c.l.b16 %v437
    %v1175 = vunpack.c.h.b16 %v437
    %v1176 = vunpack.c.l.b16 %v438
    %v1177 = vunpack.c.h.b16 %v438
    %v1178 = vunpack.c.l.b16 %v439
    %v1179 = vunpack.c.h.b16 %v439
    %v1180 = vunpack.c.l.b16 %v440
    %v1181 = vunpack.c.h.b16 %v440
    %v1182 = vunpack.c.l.b16 %v441
    %v1183 = vunpack.c.h.b16 %v441
    %v1184 = vunpack.c.l.b16 %v442
    %v1185 = vunpack.c.h.b16 %v442
    %v1186 = vunpack.c.l.b16 %v443
    %v1187 = vunpack.c.h.b16 %v443
    %v1188 = vunpack.c.l.b16 %v444
    %v1189 = vunpack.c.h.b16 %v444
    %v1190 = vunpack.c.l.b16 %v445
    %v1191 = vunpack.c.h.b16 %v445
    %v1192 = vunpack.c.l.b16 %v446
    %v1193 = vunpack.c.h.b16 %v446
    %v1194 = vunpack.c.l.b16 %v447
    %v1195 = vunpack.c.h.b16 %v447
    %v1196 = vunpack.c.l.b16 %v448
    %v1197 = vunpack.c.h.b16 %v448
    %v1198 = vunpack.c.l.b16 %v449
    %v1199 = vunpack.c.h.b16 %v449
    %v1200 = vunpack.c.l.b16 %v450
    %v1201 = vunpack.c.h.b16 %v450
    %v1202 = vunpack.c.l.b16 %v451
    %v1203 = vunpack.c.h.b16 %v451
    %v1204 = vunpack.c.l.b16 %v452
    %v1205 = vunpack.c.h.b16 %v452
    %v1206 = vunpack.c.l.b16 %v453
    %v1207 = vunpack.c.h.b16 %v453
    %v1208 = vunpack.c.l.b16 %v454
    %v1209 = vunpack.c.h.b16 %v454
    %v1210 = vunpack.c.l.b16 %v455
    %v1211 = vunpack.c.h.b16 %v455
    %v1212 = vunpack.c.l.b16 %v456
    %v1213 = vunpack.c.h.b16 %v456
    %v1214 = vunpack.c.l.b16 %v457
    %v1215 = vunpack.c.h.b16 %v457
    %v1216 = vunpack.c.l.b16 %v458
    %v1217 = vunpack.c.h.b16 %v458
    %v1218 = vunpack.c.l.b16 %v459
    %v1219 = vunpack.c.h.b16 %v459
    %v1220 = vunpack.c.l.b16 %v460
    %v1221 = vunpack.c.h.b16 %v460
    %v1222 = vunpack.c.l.b16 %v461
    %v1223 = vunpack.c.h.b16 %v461
    %v1224 = vunpack.c.l.b16 %v462
    %v1225 = vunpack.c.h.b16 %v462
    %v1226 = vunpack.c.l.b16 %v463
    %v1227 = vunpack.c.h.b16 %v463
    %v1228 = vunpack.c.l.b16 %v464
    %v1229 = vunpack.c.h.b16 %v464
    %v1230 = vunpack.c.l.b16 %v465
    %v1231 = vunpack.c.h.b16 %v465
    %v1232 = vunpack.c.l.b16 %v466
    %v1233 = vunpack.c.h.b16 %v466
    %v1234 = vunpack.c.l.b16 %v467
    %v1235 = vunpack.c.h.b16 %v467
    %v1236 = vunpack.c.l.b16 %v468
    %v1237 = vunpack.c.h.b16 %v468
    %v1238 = vunpack.c.l.b16 %v469
    %v1239 = vunpack.c.h.b16 %v469
    %v1240 = vunpack.c.l.b16 %v470
    %v1241 = vunpack.c.h.b16 %v470
    %v1242 = vunpack.c.l.b16 %v471
    %v1243 = vunpack.c.h.b16 %v471
    %v1244 = vunpack.c.l.b16 %v472
    %v1245 = vunpack.c.h.b16 %v472
    %v1246 = vunpack.c.l.b16 %v473
    %v1247 = vunpack.c.h.b16 %v473
    %v1248 = vunpack.c.l.b16 %v474
    %v1249 = vunpack.c.h.b16 %v474
    %v1250 = vunpack.c.l.b16 %v475
    %v1251 = vunpack.c.h.b16 %v475
    %v1252 = vunpack.c.l.b16 %v476
    %v1253 = vunpack.c.h.b16 %v476
    %v1254 = vunpack.c.l.b16 %v477
    %v1255 = vunpack.c.h.b16 %v477
    %v1256 = vpack.c.b16 %v748, %v744
    %v1257 = vpack.c.b16 %v749, %v745
    %v1258 = vpack.c.b16 %v750, %v746
    %v1259 = vpack.c.b16 %v751, %v747
    %v1260 = vpack.c.b16 %v756, %v752
    %v1261 = vpack.c.b16 %v757, %v753
    %v1262 = vpack.c.b16 %v758, %v754
    %v1263 = vpack.c.b16 %v759, %v755
    %v1264 = vpack.c.b16 %v764, %v760
    %v1265 = vpack.c.b16 %v765, %v761
    %v1266 = vpack.c.b16 %v766, %v762
    %v1267 = vpack.c.b16 %v767, %v763
    %v1268 = vpack.c.b16 %v772, %v768
    %v1269 = vpack.c.b16 %v773, %v769
    %v1270 = vpack.c.b16 %v774, %v770
    %v1271 = vpack.c.b16 %v775, %v771
    %v1272 = vpack.c.b16 %v780, %v776
    %v1273 = vpack.c.b16 %v781, %v777
    %v1274 = vpack.c.b16 %v782, %v778
    %v1275 = vpack.c.b16 %v783, %v779
    %v1276 = vpack.c.b16 %v788, %v784
    %v1277 = vpack.c.b16 %v789, %v785
    %v1278 = vpack.c.b16 %v790, %v786
    %v1279 = vpack.c.b16 %v791, %v787
    %v1280 = vpack.c.b16 %v796, %v792
    %v1281 = vpack.c.b16 %v797, %v793
    %v1282 = vpack.c.b16 %v798, %v794
    %v1283 = vpack.c.b16 %v799, %v795
    %v1284 = vpack.c.b16 %v804, %v800
    %v1285 = vpack.c.b16 %v805, %v801
    %v1286 = vpack.c.b16 %v806, %v802
    %v1287 = vpack.c.b16 %v807, %v803
    %v1288 = vpack.c.b16 %v812, %v808
    %v1289 = vpack.c.b16 %v813, %v809
    %v1290 = vpack.c.b16 %v814, %v810
    %v1291 = vpack.c.b16 %v815, %v811
    %v1292 = vpack.c.b16 %v820, %v816
    %v1293 = vpack.c.b16 %v821, %v817
    %v1294 = vpack.c.b16 %v822, %v818
    %v1295 = vpack.c.b16 %v823, %v819
    %v1296 = vpack.c.b16 %v828, %v824
    %v1297 = vpack.c.b16 %v829, %v825
    %v1298 = vpack.c.b16 %v830, %v826
    %v1299 = vpack.c.b16 %v831, %v827
    %v1300 = vpack.c.b16 %v836, %v832
    %v1301 = vpack.c.b16 %v837, %v833
    %v1302 = vpack.c.b16 %v838, %v834
    %v1303 = vpack.c.b16 %v839, %v835
    %v1304 = vpack.c.b16 %v844, %v840
    %v1305 = vpack.c.b16 %v845, %v841
    %v1306 = vpack.c.b16 %v846, %v842
    %v1307 = vpack.c.b16 %v847, %v843
    %v1308 = vpack.c.b16 %v852, %v848
    %v1309 = vpack.c.b16 %v853, %v849
    %v1310 = vpack.c.b16 %v854, %v850
    %v1311 = vpack.c.b16 %v855, %v851
    %v1312 = vpack.c.b16 %v860, %v856
    %v1313 = vpack.c.b16 %v861, %v857
    %v1314 = vpack.c.b16 %v862, %v858
    %v1315 = vpack.c.b16 %v863, %v859
    %v1316 = vpack.c.b16 %v868, %v864
    %v1317 = vpack.c.b16 %v869, %v865
    %v1318 = vpack.c.b16 %v870, %v866
    %v1319 = vpack.c.b16 %v871, %v867
    %v1320 = vpack.c.b16 %v876, %v872
    %v1321 = vpack.c.b16 %v877, %v873
    %v1322 = vpack.c.b16 %v878, %v874
    %v1323 = vpack.c.b16 %v879, %v875
    %v1324 = vpack.c.b16 %v884, %v880
    %v1325 = vpack.c.b16 %v885, %v881
    %v1326 = vpack.c.b16 %v886, %v882
    %v1327 = vpack.c.b16 %v887, %v883
    %v1328 = vpack.c.b16 %v892, %v888
    %v1329 = vpack.c.b16 %v893, %v889
    %v1330 = vpack.c.b16 %v894, %v890
    %v1331 = vpack.c.b16 %v895, %v891
    %v1332 = vpack.c.b16 %v900, %v896
    %v1333 = vpack.c.b16 %v901, %v897
    %v1334 = vpack.c.b16 %v902, %v898
    %v1335 = vpack.c.b16 %v903, %v899
    %v1336 = vpack.c.b16 %v908, %v904
    %v1337 = vpack.c.b16 %v909, %v905
    %v1338 = vpack.c.b16 %v910, %v906
    %v1339 = vpack.c.b16 %v911, %v907
    %v1340 = vpack.c.b16 %v916, %v912
    %v1341 = vpack.c.b16 %v917, %v913
    %v1342 = vpack.c.b16 %v918, %v914
    %v1343 = vpack.c.b16 %v919, %v915
    %v1344 = vpack.c.b16 %v924, %v920
    %v1345 = vpack.c.b16 %v925, %v921
    %v1346 = vpack.c.b16 %v926, %v922
    %v1347 = vpack.c.b16 %v927, %v923
    %v1348 = vpack.c.b16 %v932, %v928
    %v1349 = vpack.c.b16 %v933, %v929
    %v1350 = vpack.c.b16 %v934, %v930
    %v1351 = vpack.c.b16 %v935, %v931
    %v1352 = vpack.c.b16 %v940, %v936
    %v1353 = vpack.c.b16 %v941, %v937
    %v1354 = vpack.c.b16 %v942, %v938
    %v1355 = vpack.c.b16 %v943, %v939
    %v1356 = vpack.c.b16 %v948, %v944
    %v1357 = vpack.c.b16 %v949, %v945
    %v1358 = vpack.c.b16 %v950, %v946
    %v1359 = vpack.c.b16 %v951, %v947
    %v1360 = vpack.c.b16 %v956, %v952
    %v1361 = vpack.c.b16 %v957, %v953
    %v1362 = vpack.c.b16 %v958, %v954
    %v1363 = vpack.c.b16 %v959, %v955
    %v1364 = vpack.c.b16 %v964, %v960
    %v1365 = vpack.c.b16 %v965, %v961
    %v1366 = vpack.c.b16 %v966, %v962
    %v1367 = vpack.c.b16 %v967, %v963
    %v1368 = vpack.c.b16 %v972, %v968
    %v1369 = vpack.c.b16 %v973, %v969
    %v1370 = vpack.c.b16 %v974, %v970
    %v1371 = vpack.c.b16 %v975, %v971
    %v1372 = vpack.c.b16 %v980, %v976
    %v1373 = vpack.c.b16 %v981, %v977
    %v1374 = vpack.c.b16 %v982, %v978
    %v1375 = vpack.c.b16 %v983, %v979
    %v1376 = vpack.c.b16 %v988, %v984
    %v1377 = vpack.c.b16 %v989, %v985
    %v1378 = vpack.c.b16 %v990, %v986
    %v1379 = vpack.c.b16 %v991, %v987
    %v1380 = vpack.c.b16 %v996, %v992
    %v1381 = vpack.c.b16 %v997, %v993
    %v1382 = vpack.c.b16 %v998, %v994
    %v1383 = vpack.c.b16 %v999, %v995
    %v1384 = vpack.c.b16 %v1004, %v1000
    %v1385 = vpack.c.b16 %v1005, %v1001
    %v1386 = vpack.c.b16 %v1006, %v1002
    %v1387 = vpack.c.b16 %v1007, %v1003
    %v1388 = vpack.c.b16 %v1012, %v1008
    %v1389 = vpack.c.b16 %v1013, %v1009
    %v1390 = vpack.c.b16 %v1014, %v1010
    %v1391 = vpack.c.b16 %v1015, %v1011
    %v1392 = vpack.c.b16 %v1020, %v1016
    %v1393 = vpack.c.b16 %v1021, %v1017
    %v1394 = vpack.c.b16 %v1022, %v1018
    %v1395 = vpack.c.b16 %v1023, %v1019
    %v1396 = vpack.c.b16 %v1028, %v1024
    %v1397 = vpack.c.b16 %v1029, %v1025
    %v1398 = vpack.c.b16 %v1030, %v1026
    %v1399 = vpack.c.b16 %v1031, %v1027
    %v1400 = vpack.c.b16 %v1036, %v1032
    %v1401 = vpack.c.b16 %v1037, %v1033
    %v1402 = vpack.c.b16 %v1038, %v1034
    %v1403 = vpack.c.b16 %v1039, %v1035
    %v1404 = vpack.c.b16 %v1044, %v1040
    %v1405 = vpack.c.b16 %v1045, %v1041
    %v1406 = vpack.c.b16 %v1046, %v1042
    %v1407 = vpack.c.b16 %v1047, %v1043
    %v1408 = vpack.c.b16 %v1052, %v1048
    %v1409 = vpack.c.b16 %v1053, %v1049
    %v1410 = vpack.c.b16 %v1054, %v1050
    %v1411 = vpack.c.b16 %v1055, %v1051
    %v1412 = vpack.c.b16 %v1060, %v1056
    %v1413 = vpack.c.b16 %v1061, %v1057
    %v1414 = vpack.c.b16 %v1062, %v1058
    %v1415 = vpack.c.b16 %v1063, %v1059
    %v1416 = vpack.c.b16 %v1068, %v1064
    %v1417 = vpack.c.b16 %v1069, %v1065
    %v1418 = vpack.c.b16 %v1070, %v1066
    %v1419 = vpack.c.b16 %v1071, %v1067
    %v1420 = vpack.c.b16 %v1076, %v1072
    %v1421 = vpack.c.b16 %v1077, %v1073
    %v1422 = vpack.c.b16 %v1078, %v1074
    %v1423 = vpack.c.b16 %v1079, %v1075
    %v1424 = vpack.c.b16 %v1084, %v1080
    %v1425 = vpack.c.b16 %v1085, %v1081
    %v1426 = vpack.c.b16 %v1086, %v1082
    %v1427 = vpack.c.b16 %v1087, %v1083
    %v1428 = vpack.c.b16 %v1092, %v1088
    %v1429 = vpack.c.b16 %v1093, %v1089
    %v1430 = vpack.c.b16 %v1094, %v1090
    %v1431 = vpack.c.b16 %v1095, %v1091
    %v1432 = vpack.c.b16 %v1100, %v1096
    %v1433 = vpack.c.b16 %v1101, %v1097
    %v1434 = vpack.c.b16 %v1102, %v1098
    %v1435 = vpack.c.b16 %v1103, %v1099
    %v1436 = vpack.c.b16 %v1108, %v1104
    %v1437 = vpack.c.b16 %v1109, %v1105
    %v1438 = vpack.c.b16 %v1110, %v1106
    %v1439 = vpack.c.b16 %v1111, %v1107
    %v1440 = vpack.c.b16 %v1116, %v1112
    %v1441 = vpack.c.b16 %v1117, %v1113
    %v1442 = vpack.c.b16 %v1118, %v1114
    %v1443 = vpack.c.b16 %v1119, %v1115
    %v1444 = vpack.c.b16 %v1124, %v1120
    %v1445 = vpack.c.b16 %v1125, %v1121
    %v1446 = vpack.c.b16 %v1126, %v1122
    %v1447 = vpack.c.b16 %v1127, %v1123
    %v1448 = vpack.c.b16 %v1132, %v1128
    %v1449 = vpack.c.b16 %v1133, %v1129
    %v1450 = vpack.c.b16 %v1134, %v1130
    %v1451 = vpack.c.b16 %v1135, %v1131
    %v1452 = vpack.c.b16 %v1140, %v1136
    %v1453 = vpack.c.b16 %v1141, %v1137
    %v1454 = vpack.c.b16 %v1142, %v1138
    %v1455 = vpack.c.b16 %v1143, %v1139
    %v1456 = vpack.c.b16 %v1148, %v1144
    %v1457 = vpack.c.b16 %v1149, %v1145
    %v1458 = vpack.c.b16 %v1150, %v1146
    %v1459 = vpack.c.b16 %v1151, %v1147
    %v1460 = vpack.c.b16 %v1156, %v1152
    %v1461 = vpack.c.b16 %v1157, %v1153
    %v1462 = vpack.c.b16 %v1158, %v1154
    %v1463 = vpack.c.b16 %v1159, %v1155
    %v1464 = vpack.c.b16 %v1164, %v1160
    %v1465 = vpack.c.b16 %v1165, %v1161
    %v1466 = vpack.c.b16 %v1166, %v1162
    %v1467 = vpack.c.b16 %v1167, %v1163
    %v1468 = vpack.c.b16 %v1172, %v1168
    %v1469 = vpack.c.b16 %v1173, %v1169
    %v1470 = vpack.c.b16 %v1174, %v1170
    %v1471 = vpack.c.b16 %v1175, %v1171
    %v1472 = vpack.c.b16 %v1180, %v1176
    %v1473 = vpack.c.b16 %v1181, %v1177
    %v1474 = vpack.c.b16 %v1182, %v1178
    %v1475 = vpack.c.b16 %v1183, %v1179
    %v1476 = vpack.c.b16 %v1188, %v1184
    %v1477 = vpack.c.b16 %v1189, %v1185
    %v1478 = vpack.c.b16 %v1190, %v1186
    %v1479 = vpack.c.b16 %v1191, %v1187
    %v1480 = vpack.c.b16 %v1196, %v1192
    %v1481 = vpack.c.b16 %v1197, %v1193
    %v1482 = vpack.c.b16 %v1198, %v1194
    %v1483 = vpack.c.b16 %v1199, %v1195
    %v1484 = vpack.c.b16 %v1204, %v1200
    %v1485 = vpack.c.b16 %v1205, %v1201
    %v1486 = vpack.c.b16 %v1206, %v1202
    %v1487 = vpack.c.b16 %v1207, %v1203
    %v1488 = vpack.c.b16 %v1212, %v1208
    %v1489 = vpack.c.b16 %v1213, %v1209
    %v1490 = vpack.c.b16 %v1214, %v1210
    %v1491 = vpack.c.b16 %v1215, %v1211
    %v1492 = vpack.c.b16 %v1220, %v1216
    %v1493 = vpack.c.b16 %v1221, %v1217
    %v1494 = vpack.c.b16 %v1222, %v1218
    %v1495 = vpack.c.b16 %v1223, %v1219
    %v1496 = vpack.c.b16 %v1228, %v1224
    %v1497 = vpack.c.b16 %v1229, %v1225
    %v1498 = vpack.c.b16 %v1230, %v1226
    %v1499 = vpack.c.b16 %v1231, %v1227
    %v1500 = vpack.c.b16 %v1236, %v1232
    %v1501 = vpack.c.b16 %v1237, %v1233
    %v1502 = vpack.c.b16 %v1238, %v1234
    %v1503 = vpack.c.b16 %v1239, %v1235
    %v1504 = vpack.c.b16 %v1244, %v1240
    %v1505 = vpack.c.b16 %v1245, %v1241
    %v1506 = vpack.c.b16 %v1246, %v1242
    %v1507 = vpack.c.b16 %v1247, %v1243
    %v1508 = vpack.c.b16 %v1252, %v1248
    %v1509 = vpack.c.b16 %v1253, %v1249
    %v1510 = vpack.c.b16 %v1254, %v1250
    %v1511 = vpack.c.b16 %v1255, %v1251
    %1768 = vmatpush.bf16.msra.mxu0 %v1284
    %1769 = vmatpush.bf16.msra.mxu0 %v1280
    %1770 = vmatpush.bf16.msra.mxu0 %v1276
    %1771 = vmatpush.bf16.msra.mxu0 %v1272
    %1772 = vmatpush.bf16.msra.mxu0 %v1268
    %1773 = vmatpush.bf16.msra.mxu0 %v1264
    %1774 = vmatpush.bf16.msra.mxu0 %v1260
    %1775 = vmatpush.bf16.msra.mxu0 %v1256
    %1776 = vmatmul.bf16.gmra.mxu0 %v214
    %v1777 = vpop.f32.mrf.mxu0
    %v1778 = vadd.f32 %v480, %v1777
    %v1779 = vpop.f32.mrf.mxu0
    %1780 = vdwg.mxu0
    %1781 = vmatpush.bf16.msra.mxu0 %v1316
    %1782 = vmatpush.bf16.msra.mxu0 %v1312
    %1783 = vmatpush.bf16.msra.mxu0 %v1308
    %1784 = vmatpush.bf16.msra.mxu0 %v1304
    %1785 = vmatpush.bf16.msra.mxu0 %v1300
    %1786 = vmatpush.bf16.msra.mxu0 %v1296
    %1787 = vmatpush.bf16.msra.mxu0 %v1292
    %1788 = vmatpush.bf16.msra.mxu0 %v1288
    %1789 = vmatmul.bf16.gmra.mxu0 %v215
    %v1790 = vpop.f32.mrf.mxu0
    %v1791 = vadd.f32 %v1778, %v1790
    %v1792 = vpop.f32.mrf.mxu0
    %1793 = vdwg.mxu0
    %1794 = vmatpush.bf16.msra.mxu0 %v1348
    %1795 = vmatpush.bf16.msra.mxu0 %v1344
    %1796 = vmatpush.bf16.msra.mxu0 %v1340
    %1797 = vmatpush.bf16.msra.mxu0 %v1336
    %1798 = vmatpush.bf16.msra.mxu0 %v1332
    %1799 = vmatpush.bf16.msra.mxu0 %v1328
    %1800 = vmatpush.bf16.msra.mxu0 %v1324
    %1801 = vmatpush.bf16.msra.mxu0 %v1320
    %1802 = vmatmul.bf16.gmra.mxu0 %v216
    %v1803 = vpop.f32.mrf.mxu0
    %v1804 = vadd.f32 %v1791, %v1803
    %v1805 = vpop.f32.mrf.mxu0
    %1806 = vdwg.mxu0
    %1807 = vmatpush.bf16.msra.mxu0 %v1380
    %1808 = vmatpush.bf16.msra.mxu0 %v1376
    %1809 = vmatpush.bf16.msra.mxu0 %v1372
    %1810 = vmatpush.bf16.msra.mxu0 %v1368
    %1811 = vmatpush.bf16.msra.mxu0 %v1364
    %1812 = vmatpush.bf16.msra.mxu0 %v1360
    %1813 = vmatpush.bf16.msra.mxu0 %v1356
    %1814 = vmatpush.bf16.msra.mxu0 %v1352
    %1815 = vmatmul.bf16.gmra.mxu0 %v217
    %v1816 = vpop.f32.mrf.mxu0
    %v1817 = vadd.f32 %v1804, %v1816
    %v1818 = vpop.f32.mrf.mxu0
    %1819 = vdwg.mxu0
    %1820 = vmatpush.bf16.msra.mxu0 %v1412
    %1821 = vmatpush.bf16.msra.mxu0 %v1408
    %1822 = vmatpush.bf16.msra.mxu0 %v1404
    %1823 = vmatpush.bf16.msra.mxu0 %v1400
    %1824 = vmatpush.bf16.msra.mxu0 %v1396
    %1825 = vmatpush.bf16.msra.mxu0 %v1392
    %1826 = vmatpush.bf16.msra.mxu0 %v1388
    %1827 = vmatpush.bf16.msra.mxu0 %v1384
    %1828 = vmatmul.bf16.gmra.mxu0 %v218
    %v1829 = vpop.f32.mrf.mxu0
    %v1830 = vadd.f32 %v1817, %v1829
    %v1831 = vpop.f32.mrf.mxu0
    %1832 = vdwg.mxu0
    %1833 = vmatpush.bf16.msra.mxu0 %v1444
    %1834 = vmatpush.bf16.msra.mxu0 %v1440
    %1835 = vmatpush.bf16.msra.mxu0 %v1436
    %1836 = vmatpush.bf16.msra.mxu0 %v1432
    %1837 = vmatpush.bf16.msra.mxu0 %v1428
    %1838 = vmatpush.bf16.msra.mxu0 %v1424
    %1839 = vmatpush.bf16.msra.mxu0 %v1420
    %1840 = vmatpush.bf16.msra.mxu0 %v1416
    %1841 = vmatmul.bf16.gmra.mxu0 %v219
    %v1842 = vpop.f32.mrf.mxu0
    %v1843 = vadd.f32 %v1830, %v1842
    %v1844 = vpop.f32.mrf.mxu0
    %1845 = vdwg.mxu0
    %1846 = vmatpush.bf16.msra.mxu0 %v1476
    %1847 = vmatpush.bf16.msra.mxu0 %v1472
    %1848 = vmatpush.bf16.msra.mxu0 %v1468
    %1849 = vmatpush.bf16.msra.mxu0 %v1464
    %1850 = vmatpush.bf16.msra.mxu0 %v1460
    %1851 = vmatpush.bf16.msra.mxu0 %v1456
    %1852 = vmatpush.bf16.msra.mxu0 %v1452
    %1853 = vmatpush.bf16.msra.mxu0 %v1448
    %1854 = vmatmul.bf16.gmra.mxu0 %v220
    %v1855 = vpop.f32.mrf.mxu0
    %v1856 = vadd.f32 %v1843, %v1855
    %v1857 = vpop.f32.mrf.mxu0
    %1858 = vdwg.mxu0
    %1859 = vmatpush.bf16.msra.mxu0 %v1508
    %1860 = vmatpush.bf16.msra.mxu0 %v1504
    %1861 = vmatpush.bf16.msra.mxu0 %v1500
    %1862 = vmatpush.bf16.msra.mxu0 %v1496
    %1863 = vmatpush.bf16.msra.mxu0 %v1492
    %1864 = vmatpush.bf16.msra.mxu0 %v1488
    %1865 = vmatpush.bf16.msra.mxu0 %v1484
    %1866 = vmatpush.bf16.msra.mxu0 %v1480
    %1867 = vmatmul.bf16.gmra.mxu0 %v221
    %v1868 = vpop.f32.mrf.mxu0
    %v1869 = vadd.f32 %v1856, %v1868
    %v1870 = vpop.f32.mrf.mxu0
    %1871 = vdwg.mxu0
    %1872 = vmatpush.bf16.msra.mxu0 %v1285
    %1873 = vmatpush.bf16.msra.mxu0 %v1281
    %1874 = vmatpush.bf16.msra.mxu0 %v1277
    %1875 = vmatpush.bf16.msra.mxu0 %v1273
    %1876 = vmatpush.bf16.msra.mxu0 %v1269
    %1877 = vmatpush.bf16.msra.mxu0 %v1265
    %1878 = vmatpush.bf16.msra.mxu0 %v1261
    %1879 = vmatpush.bf16.msra.mxu0 %v1257
    %1880 = vmatmul.bf16.gmra.mxu0 %v214
    %v1881 = vpop.f32.mrf.mxu0
    %v1882 = vadd.f32 %v481, %v1881
    %v1883 = vpop.f32.mrf.mxu0
    %1884 = vdwg.mxu0
    %1885 = vmatpush.bf16.msra.mxu0 %v1317
    %1886 = vmatpush.bf16.msra.mxu0 %v1313
    %1887 = vmatpush.bf16.msra.mxu0 %v1309
    %1888 = vmatpush.bf16.msra.mxu0 %v1305
    %1889 = vmatpush.bf16.msra.mxu0 %v1301
    %1890 = vmatpush.bf16.msra.mxu0 %v1297
    %1891 = vmatpush.bf16.msra.mxu0 %v1293
    %1892 = vmatpush.bf16.msra.mxu0 %v1289
    %1893 = vmatmul.bf16.gmra.mxu0 %v215
    %v1894 = vpop.f32.mrf.mxu0
    %v1895 = vadd.f32 %v1882, %v1894
    %v1896 = vpop.f32.mrf.mxu0
    %1897 = vdwg.mxu0
    %1898 = vmatpush.bf16.msra.mxu0 %v1349
    %1899 = vmatpush.bf16.msra.mxu0 %v1345
    %1900 = vmatpush.bf16.msra.mxu0 %v1341
    %1901 = vmatpush.bf16.msra.mxu0 %v1337
    %1902 = vmatpush.bf16.msra.mxu0 %v1333
    %1903 = vmatpush.bf16.msra.mxu0 %v1329
    %1904 = vmatpush.bf16.msra.mxu0 %v1325
    %1905 = vmatpush.bf16.msra.mxu0 %v1321
    %1906 = vmatmul.bf16.gmra.mxu0 %v216
    %v1907 = vpop.f32.mrf.mxu0
    %v1908 = vadd.f32 %v1895, %v1907
    %v1909 = vpop.f32.mrf.mxu0
    %1910 = vdwg.mxu0
    %1911 = vmatpush.bf16.msra.mxu0 %v1381
    %1912 = vmatpush.bf16.msra.mxu0 %v1377
    %1913 = vmatpush.bf16.msra.mxu0 %v1373
    %1914 = vmatpush.bf16.msra.mxu0 %v1369
    %1915 = vmatpush.bf16.msra.mxu0 %v1365
    %1916 = vmatpush.bf16.msra.mxu0 %v1361
    %1917 = vmatpush.bf16.msra.mxu0 %v1357
    %1918 = vmatpush.bf16.msra.mxu0 %v1353
    %1919 = vmatmul.bf16.gmra.mxu0 %v217
    %v1920 = vpop.f32.mrf.mxu0
    %v1921 = vadd.f32 %v1908, %v1920
    %v1922 = vpop.f32.mrf.mxu0
    %1923 = vdwg.mxu0
    %1924 = vmatpush.bf16.msra.mxu0 %v1413
    %1925 = vmatpush.bf16.msra.mxu0 %v1409
    %1926 = vmatpush.bf16.msra.mxu0 %v1405
    %1927 = vmatpush.bf16.msra.mxu0 %v1401
    %1928 = vmatpush.bf16.msra.mxu0 %v1397
    %1929 = vmatpush.bf16.msra.mxu0 %v1393
    %1930 = vmatpush.bf16.msra.mxu0 %v1389
    %1931 = vmatpush.bf16.msra.mxu0 %v1385
    %1932 = vmatmul.bf16.gmra.mxu0 %v218
    %v1933 = vpop.f32.mrf.mxu0
    %v1934 = vadd.f32 %v1921, %v1933
    %v1935 = vpop.f32.mrf.mxu0
    %1936 = vdwg.mxu0
    %1937 = vmatpush.bf16.msra.mxu0 %v1445
    %1938 = vmatpush.bf16.msra.mxu0 %v1441
    %1939 = vmatpush.bf16.msra.mxu0 %v1437
    %1940 = vmatpush.bf16.msra.mxu0 %v1433
    %1941 = vmatpush.bf16.msra.mxu0 %v1429
    %1942 = vmatpush.bf16.msra.mxu0 %v1425
    %1943 = vmatpush.bf16.msra.mxu0 %v1421
    %1944 = vmatpush.bf16.msra.mxu0 %v1417
    %1945 = vmatmul.bf16.gmra.mxu0 %v219
    %v1946 = vpop.f32.mrf.mxu0
    %v1947 = vadd.f32 %v1934, %v1946
    %v1948 = vpop.f32.mrf.mxu0
    %1949 = vdwg.mxu0
    %1950 = vmatpush.bf16.msra.mxu0 %v1477
    %1951 = vmatpush.bf16.msra.mxu0 %v1473
    %1952 = vmatpush.bf16.msra.mxu0 %v1469
    %1953 = vmatpush.bf16.msra.mxu0 %v1465
    %1954 = vmatpush.bf16.msra.mxu0 %v1461
    %1955 = vmatpush.bf16.msra.mxu0 %v1457
    %1956 = vmatpush.bf16.msra.mxu0 %v1453
    %1957 = vmatpush.bf16.msra.mxu0 %v1449
    %1958 = vmatmul.bf16.gmra.mxu0 %v220
    %v1959 = vpop.f32.mrf.mxu0
    %v1960 = vadd.f32 %v1947, %v1959
    %v1961 = vpop.f32.mrf.mxu0
    %1962 = vdwg.mxu0
    %1963 = vmatpush.bf16.msra.mxu0 %v1509
    %1964 = vmatpush.bf16.msra.mxu0 %v1505
    %1965 = vmatpush.bf16.msra.mxu0 %v1501
    %1966 = vmatpush.bf16.msra.mxu0 %v1497
    %1967 = vmatpush.bf16.msra.mxu0 %v1493
    %1968 = vmatpush.bf16.msra.mxu0 %v1489
    %1969 = vmatpush.bf16.msra.mxu0 %v1485
    %1970 = vmatpush.bf16.msra.mxu0 %v1481
    %1971 = vmatmul.bf16.gmra.mxu0 %v221
    %v1972 = vpop.f32.mrf.mxu0
    %v1973 = vadd.f32 %v1960, %v1972
    %v1974 = vpop.f32.mrf.mxu0
    %1975 = vdwg.mxu0
    %1976 = vmatpush.bf16.msra.mxu0 %v1286
    %1977 = vmatpush.bf16.msra.mxu0 %v1282
    %1978 = vmatpush.bf16.msra.mxu0 %v1278
    %1979 = vmatpush.bf16.msra.mxu0 %v1274
    %1980 = vmatpush.bf16.msra.mxu0 %v1270
    %1981 = vmatpush.bf16.msra.mxu0 %v1266
    %1982 = vmatpush.bf16.msra.mxu0 %v1262
    %1983 = vmatpush.bf16.msra.mxu0 %v1258
    %1984 = vmatmul.bf16.gmra.mxu0 %v214
    %v1985 = vpop.f32.mrf.mxu0
    %v1986 = vadd.f32 %v482, %v1985
    %v1987 = vpop.f32.mrf.mxu0
    %1988 = vdwg.mxu0
    %1989 = vmatpush.bf16.msra.mxu0 %v1318
    %1990 = vmatpush.bf16.msra.mxu0 %v1314
    %1991 = vmatpush.bf16.msra.mxu0 %v1310
    %1992 = vmatpush.bf16.msra.mxu0 %v1306
    %1993 = vmatpush.bf16.msra.mxu0 %v1302
    %1994 = vmatpush.bf16.msra.mxu0 %v1298
    %1995 = vmatpush.bf16.msra.mxu0 %v1294
    %1996 = vmatpush.bf16.msra.mxu0 %v1290
    %1997 = vmatmul.bf16.gmra.mxu0 %v215
    %v1998 = vpop.f32.mrf.mxu0
    %v1999 = vadd.f32 %v1986, %v1998
    %v2000 = vpop.f32.mrf.mxu0
    %2001 = vdwg.mxu0
    %2002 = vmatpush.bf16.msra.mxu0 %v1350
    %2003 = vmatpush.bf16.msra.mxu0 %v1346
    %2004 = vmatpush.bf16.msra.mxu0 %v1342
    %2005 = vmatpush.bf16.msra.mxu0 %v1338
    %2006 = vmatpush.bf16.msra.mxu0 %v1334
    %2007 = vmatpush.bf16.msra.mxu0 %v1330
    %2008 = vmatpush.bf16.msra.mxu0 %v1326
    %2009 = vmatpush.bf16.msra.mxu0 %v1322
    %2010 = vmatmul.bf16.gmra.mxu0 %v216
    %v2011 = vpop.f32.mrf.mxu0
    %v2012 = vadd.f32 %v1999, %v2011
    %v2013 = vpop.f32.mrf.mxu0
    %2014 = vdwg.mxu0
    %2015 = vmatpush.bf16.msra.mxu0 %v1382
    %2016 = vmatpush.bf16.msra.mxu0 %v1378
    %2017 = vmatpush.bf16.msra.mxu0 %v1374
    %2018 = vmatpush.bf16.msra.mxu0 %v1370
    %2019 = vmatpush.bf16.msra.mxu0 %v1366
    %2020 = vmatpush.bf16.msra.mxu0 %v1362
    %2021 = vmatpush.bf16.msra.mxu0 %v1358
    %2022 = vmatpush.bf16.msra.mxu0 %v1354
    %2023 = vmatmul.bf16.gmra.mxu0 %v217
    %v2024 = vpop.f32.mrf.mxu0
    %v2025 = vadd.f32 %v2012, %v2024
    %v2026 = vpop.f32.mrf.mxu0
    %2027 = vdwg.mxu0
    %2028 = vmatpush.bf16.msra.mxu0 %v1414
    %2029 = vmatpush.bf16.msra.mxu0 %v1410
    %2030 = vmatpush.bf16.msra.mxu0 %v1406
    %2031 = vmatpush.bf16.msra.mxu0 %v1402
    %2032 = vmatpush.bf16.msra.mxu0 %v1398
    %2033 = vmatpush.bf16.msra.mxu0 %v1394
    %2034 = vmatpush.bf16.msra.mxu0 %v1390
    %2035 = vmatpush.bf16.msra.mxu0 %v1386
    %2036 = vmatmul.bf16.gmra.mxu0 %v218
    %v2037 = vpop.f32.mrf.mxu0
    %v2038 = vadd.f32 %v2025, %v2037
    %v2039 = vpop.f32.mrf.mxu0
    %2040 = vdwg.mxu0
    %2041 = vmatpush.bf16.msra.mxu0 %v1446
    %2042 = vmatpush.bf16.msra.mxu0 %v1442
    %2043 = vmatpush.bf16.msra.mxu0 %v1438
    %2044 = vmatpush.bf16.msra.mxu0 %v1434
    %2045 = vmatpush.bf16.msra.mxu0 %v1430
    %2046 = vmatpush.bf16.msra.mxu0 %v1426
    %2047 = vmatpush.bf16.msra.mxu0 %v1422
    %2048 = vmatpush.bf16.msra.mxu0 %v1418
    %2049 = vmatmul.bf16.gmra.mxu0 %v219
    %v2050 = vpop.f32.mrf.mxu0
    %v2051 = vadd.f32 %v2038, %v2050
    %v2052 = vpop.f32.mrf.mxu0
    %2053 = vdwg.mxu0
    %2054 = vmatpush.bf16.msra.mxu0 %v1478
    %2055 = vmatpush.bf16.msra.mxu0 %v1474
    %2056 = vmatpush.bf16.msra.mxu0 %v1470
    %2057 = vmatpush.bf16.msra.mxu0 %v1466
    %2058 = vmatpush.bf16.msra.mxu0 %v1462
    %2059 = vmatpush.bf16.msra.mxu0 %v1458
    %2060 = vmatpush.bf16.msra.mxu0 %v1454
    %2061 = vmatpush.bf16.msra.mxu0 %v1450
    %2062 = vmatmul.bf16.gmra.mxu0 %v220
    %v2063 = vpop.f32.mrf.mxu0
    %v2064 = vadd.f32 %v2051, %v2063
    %v2065 = vpop.f32.mrf.mxu0
    %2066 = vdwg.mxu0
    %2067 = vmatpush.bf16.msra.mxu0 %v1510
    %2068 = vmatpush.bf16.msra.mxu0 %v1506
    %2069 = vmatpush.bf16.msra.mxu0 %v1502
    %2070 = vmatpush.bf16.msra.mxu0 %v1498
    %2071 = vmatpush.bf16.msra.mxu0 %v1494
    %2072 = vmatpush.bf16.msra.mxu0 %v1490
    %2073 = vmatpush.bf16.msra.mxu0 %v1486
    %2074 = vmatpush.bf16.msra.mxu0 %v1482
    %2075 = vmatmul.bf16.gmra.mxu0 %v221
    %v2076 = vpop.f32.mrf.mxu0
    %v2077 = vadd.f32 %v2064, %v2076
    %v2078 = vpop.f32.mrf.mxu0
    %2079 = vdwg.mxu0
    %2080 = vmatpush.bf16.msra.mxu0 %v1287
    %2081 = vmatpush.bf16.msra.mxu0 %v1283
    %2082 = vmatpush.bf16.msra.mxu0 %v1279
    %2083 = vmatpush.bf16.msra.mxu0 %v1275
    %2084 = vmatpush.bf16.msra.mxu0 %v1271
    %2085 = vmatpush.bf16.msra.mxu0 %v1267
    %2086 = vmatpush.bf16.msra.mxu0 %v1263
    %2087 = vmatpush.bf16.msra.mxu0 %v1259
    %2088 = vmatmul.bf16.gmra.mxu0 %v214
    %v2089 = vpop.f32.mrf.mxu0
    %v2090 = vadd.f32 %v483, %v2089
    %v2091 = vpop.f32.mrf.mxu0
    %2092 = vdwg.mxu0
    %2093 = vmatpush.bf16.msra.mxu0 %v1319
    %2094 = vmatpush.bf16.msra.mxu0 %v1315
    %2095 = vmatpush.bf16.msra.mxu0 %v1311
    %2096 = vmatpush.bf16.msra.mxu0 %v1307
    %2097 = vmatpush.bf16.msra.mxu0 %v1303
    %2098 = vmatpush.bf16.msra.mxu0 %v1299
    %2099 = vmatpush.bf16.msra.mxu0 %v1295
    %2100 = vmatpush.bf16.msra.mxu0 %v1291
    %2101 = vmatmul.bf16.gmra.mxu0 %v215
    %v2102 = vpop.f32.mrf.mxu0
    %v2103 = vadd.f32 %v2090, %v2102
    %v2104 = vpop.f32.mrf.mxu0
    %2105 = vdwg.mxu0
    %2106 = vmatpush.bf16.msra.mxu0 %v1351
    %2107 = vmatpush.bf16.msra.mxu0 %v1347
    %2108 = vmatpush.bf16.msra.mxu0 %v1343
    %2109 = vmatpush.bf16.msra.mxu0 %v1339
    %2110 = vmatpush.bf16.msra.mxu0 %v1335
    %2111 = vmatpush.bf16.msra.mxu0 %v1331
    %2112 = vmatpush.bf16.msra.mxu0 %v1327
    %2113 = vmatpush.bf16.msra.mxu0 %v1323
    %2114 = vmatmul.bf16.gmra.mxu0 %v216
    %v2115 = vpop.f32.mrf.mxu0
    %v2116 = vadd.f32 %v2103, %v2115
    %v2117 = vpop.f32.mrf.mxu0
    %2118 = vdwg.mxu0
    %2119 = vmatpush.bf16.msra.mxu0 %v1383
    %2120 = vmatpush.bf16.msra.mxu0 %v1379
    %2121 = vmatpush.bf16.msra.mxu0 %v1375
    %2122 = vmatpush.bf16.msra.mxu0 %v1371
    %2123 = vmatpush.bf16.msra.mxu0 %v1367
    %2124 = vmatpush.bf16.msra.mxu0 %v1363
    %2125 = vmatpush.bf16.msra.mxu0 %v1359
    %2126 = vmatpush.bf16.msra.mxu0 %v1355
    %2127 = vmatmul.bf16.gmra.mxu0 %v217
    %v2128 = vpop.f32.mrf.mxu0
    %v2129 = vadd.f32 %v2116, %v2128
    %v2130 = vpop.f32.mrf.mxu0
    %2131 = vdwg.mxu0
    %2132 = vmatpush.bf16.msra.mxu0 %v1415
    %2133 = vmatpush.bf16.msra.mxu0 %v1411
    %2134 = vmatpush.bf16.msra.mxu0 %v1407
    %2135 = vmatpush.bf16.msra.mxu0 %v1403
    %2136 = vmatpush.bf16.msra.mxu0 %v1399
    %2137 = vmatpush.bf16.msra.mxu0 %v1395
    %2138 = vmatpush.bf16.msra.mxu0 %v1391
    %2139 = vmatpush.bf16.msra.mxu0 %v1387
    %2140 = vmatmul.bf16.gmra.mxu0 %v218
    %v2141 = vpop.f32.mrf.mxu0
    %v2142 = vadd.f32 %v2129, %v2141
    %v2143 = vpop.f32.mrf.mxu0
    %2144 = vdwg.mxu0
    %2145 = vmatpush.bf16.msra.mxu0 %v1447
    %2146 = vmatpush.bf16.msra.mxu0 %v1443
    %2147 = vmatpush.bf16.msra.mxu0 %v1439
    %2148 = vmatpush.bf16.msra.mxu0 %v1435
    %2149 = vmatpush.bf16.msra.mxu0 %v1431
    %2150 = vmatpush.bf16.msra.mxu0 %v1427
    %2151 = vmatpush.bf16.msra.mxu0 %v1423
    %2152 = vmatpush.bf16.msra.mxu0 %v1419
    %2153 = vmatmul.bf16.gmra.mxu0 %v219
    %v2154 = vpop.f32.mrf.mxu0
    %v2155 = vadd.f32 %v2142, %v2154
    %v2156 = vpop.f32.mrf.mxu0
    %2157 = vdwg.mxu0
    %2158 = vmatpush.bf16.msra.mxu0 %v1479
    %2159 = vmatpush.bf16.msra.mxu0 %v1475
    %2160 = vmatpush.bf16.msra.mxu0 %v1471
    %2161 = vmatpush.bf16.msra.mxu0 %v1467
    %2162 = vmatpush.bf16.msra.mxu0 %v1463
    %2163 = vmatpush.bf16.msra.mxu0 %v1459
    %2164 = vmatpush.bf16.msra.mxu0 %v1455
    %2165 = vmatpush.bf16.msra.mxu0 %v1451
    %2166 = vmatmul.bf16.gmra.mxu0 %v220
    %v2167 = vpop.f32.mrf.mxu0
    %v2168 = vadd.f32 %v2155, %v2167
    %v2169 = vpop.f32.mrf.mxu0
    %2170 = vdwg.mxu0
    %2171 = vmatpush.bf16.msra.mxu0 %v1511
    %2172 = vmatpush.bf16.msra.mxu0 %v1507
    %2173 = vmatpush.bf16.msra.mxu0 %v1503
    %2174 = vmatpush.bf16.msra.mxu0 %v1499
    %2175 = vmatpush.bf16.msra.mxu0 %v1495
    %2176 = vmatpush.bf16.msra.mxu0 %v1491
    %2177 = vmatpush.bf16.msra.mxu0 %v1487
    %2178 = vmatpush.bf16.msra.mxu0 %v1483
    %2179 = vmatmul.bf16.gmra.mxu0 %v221
    %v2180 = vpop.f32.mrf.mxu0
    %v2181 = vadd.f32 %v2168, %v2180
    %v2182 = vpop.f32.mrf.mxu0
    %2183 = vdwg.mxu0
    %vm2184 = vcmp.gt.f32.partialorder %v1869, 0.0
    %vm2185 = vcmp.gt.f32.partialorder %v1973, 0.0
    %vm2186 = vcmp.gt.f32.partialorder %v2077, 0.0
    %vm2187 = vcmp.gt.f32.partialorder %v2181, 0.0
    %v2188 = vmul.f32 %v1869, 0.2
    %v2189 = vmul.f32 %v1973, 0.2
    %v2190 = vmul.f32 %v2077, 0.2
    %v2191 = vmul.f32 %v2181, 0.2
    %v2192 = vsel %vm2184, %v1869, %v2188
    %v2193 = vsel %vm2185, %v1973, %v2189
    %v2194 = vsel %vm2186, %v2077, %v2190
    %v2195 = vsel %vm2187, %v2181, %v2191
    %v2196 = vpack.c.bf16 %v2192, %v2192
    %v2197 = vpack.c.bf16 %v2193, %v2193
    %v2198 = vpack.c.bf16 %v2194, %v2194
    %v2199 = vpack.c.bf16 %v2195, %v2195
    %v2200 = vld [vmem:[#allocation8] sm:$0xff]
    %v2201 = vld [vmem:[#allocation8 + $0x8] sm:$0xff]
    %v2202 = vld [vmem:[#allocation8 + $0x10] sm:$0xff]
    %v2203 = vld [vmem:[#allocation8 + $0x18] sm:$0xff]
    %v2204 = vld [vmem:[#allocation8 + $0x20] sm:$0xff]
    %v2205 = vld [vmem:[#allocation8 + $0x28] sm:$0xff]
    %v2206 = vld [vmem:[#allocation8 + $0x30] sm:$0xff]
    %v2207 = vld [vmem:[#allocation8 + $0x38] sm:$0xff]
    %v2208 = vld [vmem:[#allocation8 + $0x40] sm:$0xff]
    %v2209 = vld [vmem:[#allocation8 + $0x48] sm:$0xff]
    %v2210 = vld [vmem:[#allocation8 + $0x50] sm:$0xff]
    %v2211 = vld [vmem:[#allocation8 + $0x58] sm:$0xff]
    %v2212 = vld [vmem:[#allocation8 + $0x60] sm:$0xff]
    %v2213 = vld [vmem:[#allocation8 + $0x68] sm:$0xff]
    %v2214 = vld [vmem:[#allocation8 + $0x70] sm:$0xff]
    %v2215 = vld [vmem:[#allocation8 + $0x78] sm:$0xff]
    %v2216 = vld [vmem:[#allocation8 + $0x80] sm:$0xff]
    %v2217 = vld [vmem:[#allocation8 + $0x88] sm:$0xff]
    %v2218 = vld [vmem:[#allocation8 + $0x90] sm:$0xff]
    %v2219 = vld [vmem:[#allocation8 + $0x98] sm:$0xff]
    %v2220 = vld [vmem:[#allocation8 + $0xa0] sm:$0xff]
    %v2221 = vld [vmem:[#allocation8 + $0xa8] sm:$0xff]
    %v2222 = vld [vmem:[#allocation8 + $0xb0] sm:$0xff]
    %v2223 = vld [vmem:[#allocation8 + $0xb8] sm:$0xff]
    %v2224 = vld [vmem:[#allocation8 + $0xc0] sm:$0xff]
    %v2225 = vld [vmem:[#allocation8 + $0xc8] sm:$0xff]
    %v2226 = vld [vmem:[#allocation8 + $0xd0] sm:$0xff]
    %v2227 = vld [vmem:[#allocation8 + $0xd8] sm:$0xff]
    %v2228 = vld [vmem:[#allocation8 + $0xe0] sm:$0xff]
    %v2229 = vld [vmem:[#allocation8 + $0xe8] sm:$0xff]
    %v2230 = vld [vmem:[#allocation8 + $0xf0] sm:$0xff]
    %v2231 = vld [vmem:[#allocation8 + $0xf8] sm:$0xff]
    %v2232 = vld [vmem:[#allocation8 + $0x100] sm:$0xff]
    %v2233 = vld [vmem:[#allocation8 + $0x108] sm:$0xff]
    %v2234 = vld [vmem:[#allocation8 + $0x110] sm:$0xff]
    %v2235 = vld [vmem:[#allocation8 + $0x118] sm:$0xff]
    %v2236 = vld [vmem:[#allocation8 + $0x120] sm:$0xff]
    %v2237 = vld [vmem:[#allocation8 + $0x128] sm:$0xff]
    %v2238 = vld [vmem:[#allocation8 + $0x130] sm:$0xff]
    %v2239 = vld [vmem:[#allocation8 + $0x138] sm:$0xff]
    %v2240 = vld [vmem:[#allocation8 + $0x140] sm:$0xff]
    %v2241 = vld [vmem:[#allocation8 + $0x148] sm:$0xff]
    %v2242 = vld [vmem:[#allocation8 + $0x150] sm:$0xff]
    %v2243 = vld [vmem:[#allocation8 + $0x158] sm:$0xff]
    %v2244 = vld [vmem:[#allocation8 + $0x160] sm:$0xff]
    %v2245 = vld [vmem:[#allocation8 + $0x168] sm:$0xff]
    %v2246 = vld [vmem:[#allocation8 + $0x170] sm:$0xff]
    %v2247 = vld [vmem:[#allocation8 + $0x178] sm:$0xff]
    %v2248 = vld [vmem:[#allocation8 + $0x180] sm:$0xff]
    %v2249 = vld [vmem:[#allocation8 + $0x188] sm:$0xff]
    %v2250 = vld [vmem:[#allocation8 + $0x190] sm:$0xff]
    %v2251 = vld [vmem:[#allocation8 + $0x198] sm:$0xff]
    %v2252 = vld [vmem:[#allocation8 + $0x1a0] sm:$0xff]
    %v2253 = vld [vmem:[#allocation8 + $0x1a8] sm:$0xff]
    %v2254 = vld [vmem:[#allocation8 + $0x1b0] sm:$0xff]
    %v2255 = vld [vmem:[#allocation8 + $0x1b8] sm:$0xff]
    %v2256 = vld [vmem:[#allocation8 + $0x1c0] sm:$0xff]
    %v2257 = vld [vmem:[#allocation8 + $0x1c8] sm:$0xff]
    %v2258 = vld [vmem:[#allocation8 + $0x1d0] sm:$0xff]
    %v2259 = vld [vmem:[#allocation8 + $0x1d8] sm:$0xff]
    %v2260 = vld [vmem:[#allocation8 + $0x1e0] sm:$0xff]
    %v2261 = vld [vmem:[#allocation8 + $0x1e8] sm:$0xff]
    %v2262 = vld [vmem:[#allocation8 + $0x1f0] sm:$0xff]
    %v2263 = vld [vmem:[#allocation8 + $0x1f8] sm:$0xff]
    %v2264 = vld [vmem:[#allocation8 + $0x200] sm:$0xff]
    %v2265 = vld [vmem:[#allocation8 + $0x208] sm:$0xff]
    %v2266 = vld [vmem:[#allocation8 + $0x210] sm:$0xff]
    %v2267 = vld [vmem:[#allocation8 + $0x218] sm:$0xff]
    %v2268 = vld [vmem:[#allocation8 + $0x220] sm:$0xff]
    %v2269 = vld [vmem:[#allocation8 + $0x228] sm:$0xff]
    %v2270 = vld [vmem:[#allocation8 + $0x230] sm:$0xff]
    %v2271 = vld [vmem:[#allocation8 + $0x238] sm:$0xff]
    %v2272 = vld [vmem:[#allocation8 + $0x240] sm:$0xff]
    %v2273 = vld [vmem:[#allocation8 + $0x248] sm:$0xff]
    %v2274 = vld [vmem:[#allocation8 + $0x250] sm:$0xff]
    %v2275 = vld [vmem:[#allocation8 + $0x258] sm:$0xff]
    %v2276 = vld [vmem:[#allocation8 + $0x260] sm:$0xff]
    %v2277 = vld [vmem:[#allocation8 + $0x268] sm:$0xff]
    %v2278 = vld [vmem:[#allocation8 + $0x270] sm:$0xff]
    %v2279 = vld [vmem:[#allocation8 + $0x278] sm:$0xff]
    %v2280 = vld [vmem:[#allocation8 + $0x280] sm:$0xff]
    %v2281 = vld [vmem:[#allocation8 + $0x288] sm:$0xff]
    %v2282 = vld [vmem:[#allocation8 + $0x290] sm:$0xff]
    %v2283 = vld [vmem:[#allocation8 + $0x298] sm:$0xff]
    %v2284 = vld [vmem:[#allocation8 + $0x2a0] sm:$0xff]
    %v2285 = vld [vmem:[#allocation8 + $0x2a8] sm:$0xff]
    %v2286 = vld [vmem:[#allocation8 + $0x2b0] sm:$0xff]
    %v2287 = vld [vmem:[#allocation8 + $0x2b8] sm:$0xff]
    %v2288 = vld [vmem:[#allocation8 + $0x2c0] sm:$0xff]
    %v2289 = vld [vmem:[#allocation8 + $0x2c8] sm:$0xff]
    %v2290 = vld [vmem:[#allocation8 + $0x2d0] sm:$0xff]
    %v2291 = vld [vmem:[#allocation8 + $0x2d8] sm:$0xff]
    %v2292 = vld [vmem:[#allocation8 + $0x2e0] sm:$0xff]
    %v2293 = vld [vmem:[#allocation8 + $0x2e8] sm:$0xff]
    %v2294 = vld [vmem:[#allocation8 + $0x2f0] sm:$0xff]
    %v2295 = vld [vmem:[#allocation8 + $0x2f8] sm:$0xff]
    %v2296 = vld [vmem:[#allocation8 + $0x300] sm:$0xff]
    %v2297 = vld [vmem:[#allocation8 + $0x308] sm:$0xff]
    %v2298 = vld [vmem:[#allocation8 + $0x310] sm:$0xff]
    %v2299 = vld [vmem:[#allocation8 + $0x318] sm:$0xff]
    %v2300 = vld [vmem:[#allocation8 + $0x320] sm:$0xff]
    %v2301 = vld [vmem:[#allocation8 + $0x328] sm:$0xff]
    %v2302 = vld [vmem:[#allocation8 + $0x330] sm:$0xff]
    %v2303 = vld [vmem:[#allocation8 + $0x338] sm:$0xff]
    %v2304 = vld [vmem:[#allocation8 + $0x340] sm:$0xff]
    %v2305 = vld [vmem:[#allocation8 + $0x348] sm:$0xff]
    %v2306 = vld [vmem:[#allocation8 + $0x350] sm:$0xff]
    %v2307 = vld [vmem:[#allocation8 + $0x358] sm:$0xff]
    %v2308 = vld [vmem:[#allocation8 + $0x360] sm:$0xff]
    %v2309 = vld [vmem:[#allocation8 + $0x368] sm:$0xff]
    %v2310 = vld [vmem:[#allocation8 + $0x370] sm:$0xff]
    %v2311 = vld [vmem:[#allocation8 + $0x378] sm:$0xff]
    %v2312 = vld [vmem:[#allocation8 + $0x380] sm:$0xff]
    %v2313 = vld [vmem:[#allocation8 + $0x388] sm:$0xff]
    %v2314 = vld [vmem:[#allocation8 + $0x390] sm:$0xff]
    %v2315 = vld [vmem:[#allocation8 + $0x398] sm:$0xff]
    %v2316 = vld [vmem:[#allocation8 + $0x3a0] sm:$0xff]
    %v2317 = vld [vmem:[#allocation8 + $0x3a8] sm:$0xff]
    %v2318 = vld [vmem:[#allocation8 + $0x3b0] sm:$0xff]
    %v2319 = vld [vmem:[#allocation8 + $0x3b8] sm:$0xff]
    %v2320 = vld [vmem:[#allocation8 + $0x3c0] sm:$0xff]
    %v2321 = vld [vmem:[#allocation8 + $0x3c8] sm:$0xff]
    %v2322 = vld [vmem:[#allocation8 + $0x3d0] sm:$0xff]
    %v2323 = vld [vmem:[#allocation8 + $0x3d8] sm:$0xff]
    %v2324 = vld [vmem:[#allocation8 + $0x3e0] sm:$0xff]
    %v2325 = vld [vmem:[#allocation8 + $0x3e8] sm:$0xff]
    %v2326 = vld [vmem:[#allocation8 + $0x3f0] sm:$0xff]
    %v2327 = vld [vmem:[#allocation8 + $0x3f8] sm:$0xff]
    %v2328 = vld [vmem:[#allocation10] sm:$0xf]
    %v2330 = vperm.slane %v2328, 0
    %v2331 = vperm.slane %v2328, 1
    %v2332 = vperm.slane %v2328, 2
    %v2333 = vperm.slane %v2328, 3
    %v2466 = vunpack.c.l.b16 %v2200
    %v2467 = vunpack.c.h.b16 %v2200
    %v2468 = vunpack.c.l.b16 %v2201
    %v2469 = vunpack.c.h.b16 %v2201
    %v2470 = vunpack.c.l.b16 %v2202
    %v2471 = vunpack.c.h.b16 %v2202
    %v2472 = vunpack.c.l.b16 %v2203
    %v2473 = vunpack.c.h.b16 %v2203
    %v2474 = vunpack.c.l.b16 %v2204
    %v2475 = vunpack.c.h.b16 %v2204
    %v2476 = vunpack.c.l.b16 %v2205
    %v2477 = vunpack.c.h.b16 %v2205
    %v2478 = vunpack.c.l.b16 %v2206
    %v2479 = vunpack.c.h.b16 %v2206
    %v2480 = vunpack.c.l.b16 %v2207
    %v2481 = vunpack.c.h.b16 %v2207
    %v2482 = vunpack.c.l.b16 %v2208
    %v2483 = vunpack.c.h.b16 %v2208
    %v2484 = vunpack.c.l.b16 %v2209
    %v2485 = vunpack.c.h.b16 %v2209
    %v2486 = vunpack.c.l.b16 %v2210
    %v2487 = vunpack.c.h.b16 %v2210
    %v2488 = vunpack.c.l.b16 %v2211
    %v2489 = vunpack.c.h.b16 %v2211
    %v2490 = vunpack.c.l.b16 %v2212
    %v2491 = vunpack.c.h.b16 %v2212
    %v2492 = vunpack.c.l.b16 %v2213
    %v2493 = vunpack.c.h.b16 %v2213
    %v2494 = vunpack.c.l.b16 %v2214
    %v2495 = vunpack.c.h.b16 %v2214
    %v2496 = vunpack.c.l.b16 %v2215
    %v2497 = vunpack.c.h.b16 %v2215
    %v2498 = vunpack.c.l.b16 %v2216
    %v2499 = vunpack.c.h.b16 %v2216
    %v2500 = vunpack.c.l.b16 %v2217
    %v2501 = vunpack.c.h.b16 %v2217
    %v2502 = vunpack.c.l.b16 %v2218
    %v2503 = vunpack.c.h.b16 %v2218
    %v2504 = vunpack.c.l.b16 %v2219
    %v2505 = vunpack.c.h.b16 %v2219
    %v2506 = vunpack.c.l.b16 %v2220
    %v2507 = vunpack.c.h.b16 %v2220
    %v2508 = vunpack.c.l.b16 %v2221
    %v2509 = vunpack.c.h.b16 %v2221
    %v2510 = vunpack.c.l.b16 %v2222
    %v2511 = vunpack.c.h.b16 %v2222
    %v2512 = vunpack.c.l.b16 %v2223
    %v2513 = vunpack.c.h.b16 %v2223
    %v2514 = vunpack.c.l.b16 %v2224
    %v2515 = vunpack.c.h.b16 %v2224
    %v2516 = vunpack.c.l.b16 %v2225
    %v2517 = vunpack.c.h.b16 %v2225
    %v2518 = vunpack.c.l.b16 %v2226
    %v2519 = vunpack.c.h.b16 %v2226
    %v2520 = vunpack.c.l.b16 %v2227
    %v2521 = vunpack.c.h.b16 %v2227
    %v2522 = vunpack.c.l.b16 %v2228
    %v2523 = vunpack.c.h.b16 %v2228
    %v2524 = vunpack.c.l.b16 %v2229
    %v2525 = vunpack.c.h.b16 %v2229
    %v2526 = vunpack.c.l.b16 %v2230
    %v2527 = vunpack.c.h.b16 %v2230
    %v2528 = vunpack.c.l.b16 %v2231
    %v2529 = vunpack.c.h.b16 %v2231
    %v2530 = vunpack.c.l.b16 %v2232
    %v2531 = vunpack.c.h.b16 %v2232
    %v2532 = vunpack.c.l.b16 %v2233
    %v2533 = vunpack.c.h.b16 %v2233
    %v2534 = vunpack.c.l.b16 %v2234
    %v2535 = vunpack.c.h.b16 %v2234
    %v2536 = vunpack.c.l.b16 %v2235
    %v2537 = vunpack.c.h.b16 %v2235
    %v2538 = vunpack.c.l.b16 %v2236
    %v2539 = vunpack.c.h.b16 %v2236
    %v2540 = vunpack.c.l.b16 %v2237
    %v2541 = vunpack.c.h.b16 %v2237
    %v2542 = vunpack.c.l.b16 %v2238
    %v2543 = vunpack.c.h.b16 %v2238
    %v2544 = vunpack.c.l.b16 %v2239
    %v2545 = vunpack.c.h.b16 %v2239
    %v2546 = vunpack.c.l.b16 %v2240
    %v2547 = vunpack.c.h.b16 %v2240
    %v2548 = vunpack.c.l.b16 %v2241
    %v2549 = vunpack.c.h.b16 %v2241
    %v2550 = vunpack.c.l.b16 %v2242
    %v2551 = vunpack.c.h.b16 %v2242
    %v2552 = vunpack.c.l.b16 %v2243
    %v2553 = vunpack.c.h.b16 %v2243
    %v2554 = vunpack.c.l.b16 %v2244
    %v2555 = vunpack.c.h.b16 %v2244
    %v2556 = vunpack.c.l.b16 %v2245
    %v2557 = vunpack.c.h.b16 %v2245
    %v2558 = vunpack.c.l.b16 %v2246
    %v2559 = vunpack.c.h.b16 %v2246
    %v2560 = vunpack.c.l.b16 %v2247
    %v2561 = vunpack.c.h.b16 %v2247
    %v2562 = vunpack.c.l.b16 %v2248
    %v2563 = vunpack.c.h.b16 %v2248
    %v2564 = vunpack.c.l.b16 %v2249
    %v2565 = vunpack.c.h.b16 %v2249
    %v2566 = vunpack.c.l.b16 %v2250
    %v2567 = vunpack.c.h.b16 %v2250
    %v2568 = vunpack.c.l.b16 %v2251
    %v2569 = vunpack.c.h.b16 %v2251
    %v2570 = vunpack.c.l.b16 %v2252
    %v2571 = vunpack.c.h.b16 %v2252
    %v2572 = vunpack.c.l.b16 %v2253
    %v2573 = vunpack.c.h.b16 %v2253
    %v2574 = vunpack.c.l.b16 %v2254
    %v2575 = vunpack.c.h.b16 %v2254
    %v2576 = vunpack.c.l.b16 %v2255
    %v2577 = vunpack.c.h.b16 %v2255
    %v2578 = vunpack.c.l.b16 %v2256
    %v2579 = vunpack.c.h.b16 %v2256
    %v2580 = vunpack.c.l.b16 %v2257
    %v2581 = vunpack.c.h.b16 %v2257
    %v2582 = vunpack.c.l.b16 %v2258
    %v2583 = vunpack.c.h.b16 %v2258
    %v2584 = vunpack.c.l.b16 %v2259
    %v2585 = vunpack.c.h.b16 %v2259
    %v2586 = vunpack.c.l.b16 %v2260
    %v2587 = vunpack.c.h.b16 %v2260
    %v2588 = vunpack.c.l.b16 %v2261
    %v2589 = vunpack.c.h.b16 %v2261
    %v2590 = vunpack.c.l.b16 %v2262
    %v2591 = vunpack.c.h.b16 %v2262
    %v2592 = vunpack.c.l.b16 %v2263
    %v2593 = vunpack.c.h.b16 %v2263
    %v2594 = vunpack.c.l.b16 %v2264
    %v2595 = vunpack.c.h.b16 %v2264
    %v2596 = vunpack.c.l.b16 %v2265
    %v2597 = vunpack.c.h.b16 %v2265
    %v2598 = vunpack.c.l.b16 %v2266
    %v2599 = vunpack.c.h.b16 %v2266
    %v2600 = vunpack.c.l.b16 %v2267
    %v2601 = vunpack.c.h.b16 %v2267
    %v2602 = vunpack.c.l.b16 %v2268
    %v2603 = vunpack.c.h.b16 %v2268
    %v2604 = vunpack.c.l.b16 %v2269
    %v2605 = vunpack.c.h.b16 %v2269
    %v2606 = vunpack.c.l.b16 %v2270
    %v2607 = vunpack.c.h.b16 %v2270
    %v2608 = vunpack.c.l.b16 %v2271
    %v2609 = vunpack.c.h.b16 %v2271
    %v2610 = vunpack.c.l.b16 %v2272
    %v2611 = vunpack.c.h.b16 %v2272
    %v2612 = vunpack.c.l.b16 %v2273
    %v2613 = vunpack.c.h.b16 %v2273
    %v2614 = vunpack.c.l.b16 %v2274
    %v2615 = vunpack.c.h.b16 %v2274
    %v2616 = vunpack.c.l.b16 %v2275
    %v2617 = vunpack.c.h.b16 %v2275
    %v2618 = vunpack.c.l.b16 %v2276
    %v2619 = vunpack.c.h.b16 %v2276
    %v2620 = vunpack.c.l.b16 %v2277
    %v2621 = vunpack.c.h.b16 %v2277
    %v2622 = vunpack.c.l.b16 %v2278
    %v2623 = vunpack.c.h.b16 %v2278
    %v2624 = vunpack.c.l.b16 %v2279
    %v2625 = vunpack.c.h.b16 %v2279
    %v2626 = vunpack.c.l.b16 %v2280
    %v2627 = vunpack.c.h.b16 %v2280
    %v2628 = vunpack.c.l.b16 %v2281
    %v2629 = vunpack.c.h.b16 %v2281
    %v2630 = vunpack.c.l.b16 %v2282
    %v2631 = vunpack.c.h.b16 %v2282
    %v2632 = vunpack.c.l.b16 %v2283
    %v2633 = vunpack.c.h.b16 %v2283
    %v2634 = vunpack.c.l.b16 %v2284
    %v2635 = vunpack.c.h.b16 %v2284
    %v2636 = vunpack.c.l.b16 %v2285
    %v2637 = vunpack.c.h.b16 %v2285
    %v2638 = vunpack.c.l.b16 %v2286
    %v2639 = vunpack.c.h.b16 %v2286
    %v2640 = vunpack.c.l.b16 %v2287
    %v2641 = vunpack.c.h.b16 %v2287
    %v2642 = vunpack.c.l.b16 %v2288
    %v2643 = vunpack.c.h.b16 %v2288
    %v2644 = vunpack.c.l.b16 %v2289
    %v2645 = vunpack.c.h.b16 %v2289
    %v2646 = vunpack.c.l.b16 %v2290
    %v2647 = vunpack.c.h.b16 %v2290
    %v2648 = vunpack.c.l.b16 %v2291
    %v2649 = vunpack.c.h.b16 %v2291
    %v2650 = vunpack.c.l.b16 %v2292
    %v2651 = vunpack.c.h.b16 %v2292
    %v2652 = vunpack.c.l.b16 %v2293
    %v2653 = vunpack.c.h.b16 %v2293
    %v2654 = vunpack.c.l.b16 %v2294
    %v2655 = vunpack.c.h.b16 %v2294
    %v2656 = vunpack.c.l.b16 %v2295
    %v2657 = vunpack.c.h.b16 %v2295
    %v2658 = vunpack.c.l.b16 %v2296
    %v2659 = vunpack.c.h.b16 %v2296
    %v2660 = vunpack.c.l.b16 %v2297
    %v2661 = vunpack.c.h.b16 %v2297
    %v2662 = vunpack.c.l.b16 %v2298
    %v2663 = vunpack.c.h.b16 %v2298
    %v2664 = vunpack.c.l.b16 %v2299
    %v2665 = vunpack.c.h.b16 %v2299
    %v2666 = vunpack.c.l.b16 %v2300
    %v2667 = vunpack.c.h.b16 %v2300
    %v2668 = vunpack.c.l.b16 %v2301
    %v2669 = vunpack.c.h.b16 %v2301
    %v2670 = vunpack.c.l.b16 %v2302
    %v2671 = vunpack.c.h.b16 %v2302
    %v2672 = vunpack.c.l.b16 %v2303
    %v2673 = vunpack.c.h.b16 %v2303
    %v2674 = vunpack.c.l.b16 %v2304
    %v2675 = vunpack.c.h.b16 %v2304
    %v2676 = vunpack.c.l.b16 %v2305
    %v2677 = vunpack.c.h.b16 %v2305
    %v2678 = vunpack.c.l.b16 %v2306
    %v2679 = vunpack.c.h.b16 %v2306
    %v2680 = vunpack.c.l.b16 %v2307
    %v2681 = vunpack.c.h.b16 %v2307
    %v2682 = vunpack.c.l.b16 %v2308
    %v2683 = vunpack.c.h.b16 %v2308
    %v2684 = vunpack.c.l.b16 %v2309
    %v2685 = vunpack.c.h.b16 %v2309
    %v2686 = vunpack.c.l.b16 %v2310
    %v2687 = vunpack.c.h.b16 %v2310
    %v2688 = vunpack.c.l.b16 %v2311
    %v2689 = vunpack.c.h.b16 %v2311
    %v2690 = vunpack.c.l.b16 %v2312
    %v2691 = vunpack.c.h.b16 %v2312
    %v2692 = vunpack.c.l.b16 %v2313
    %v2693 = vunpack.c.h.b16 %v2313
    %v2694 = vunpack.c.l.b16 %v2314
    %v2695 = vunpack.c.h.b16 %v2314
    %v2696 = vunpack.c.l.b16 %v2315
    %v2697 = vunpack.c.h.b16 %v2315
    %v2698 = vunpack.c.l.b16 %v2316
    %v2699 = vunpack.c.h.b16 %v2316
    %v2700 = vunpack.c.l.b16 %v2317
    %v2701 = vunpack.c.h.b16 %v2317
    %v2702 = vunpack.c.l.b16 %v2318
    %v2703 = vunpack.c.h.b16 %v2318
    %v2704 = vunpack.c.l.b16 %v2319
    %v2705 = vunpack.c.h.b16 %v2319
    %v2706 = vunpack.c.l.b16 %v2320
    %v2707 = vunpack.c.h.b16 %v2320
    %v2708 = vunpack.c.l.b16 %v2321
    %v2709 = vunpack.c.h.b16 %v2321
    %v2710 = vunpack.c.l.b16 %v2322
    %v2711 = vunpack.c.h.b16 %v2322
    %v2712 = vunpack.c.l.b16 %v2323
    %v2713 = vunpack.c.h.b16 %v2323
    %v2714 = vunpack.c.l.b16 %v2324
    %v2715 = vunpack.c.h.b16 %v2324
    %v2716 = vunpack.c.l.b16 %v2325
    %v2717 = vunpack.c.h.b16 %v2325
    %v2718 = vunpack.c.l.b16 %v2326
    %v2719 = vunpack.c.h.b16 %v2326
    %v2720 = vunpack.c.l.b16 %v2327
    %v2721 = vunpack.c.h.b16 %v2327
    %v2722 = vpack.c.b16 %v2470, %v2466
    %v2723 = vpack.c.b16 %v2471, %v2467
    %v2724 = vpack.c.b16 %v2472, %v2468
    %v2725 = vpack.c.b16 %v2473, %v2469
    %v2726 = vpack.c.b16 %v2478, %v2474
    %v2727 = vpack.c.b16 %v2479, %v2475
    %v2728 = vpack.c.b16 %v2480, %v2476
    %v2729 = vpack.c.b16 %v2481, %v2477
    %v2730 = vpack.c.b16 %v2486, %v2482
    %v2731 = vpack.c.b16 %v2487, %v2483
    %v2732 = vpack.c.b16 %v2488, %v2484
    %v2733 = vpack.c.b16 %v2489, %v2485
    %v2734 = vpack.c.b16 %v2494, %v2490
    %v2735 = vpack.c.b16 %v2495, %v2491
    %v2736 = vpack.c.b16 %v2496, %v2492
    %v2737 = vpack.c.b16 %v2497, %v2493
    %v2738 = vpack.c.b16 %v2502, %v2498
    %v2739 = vpack.c.b16 %v2503, %v2499
    %v2740 = vpack.c.b16 %v2504, %v2500
    %v2741 = vpack.c.b16 %v2505, %v2501
    %v2742 = vpack.c.b16 %v2510, %v2506
    %v2743 = vpack.c.b16 %v2511, %v2507
    %v2744 = vpack.c.b16 %v2512, %v2508
    %v2745 = vpack.c.b16 %v2513, %v2509
    %v2746 = vpack.c.b16 %v2518, %v2514
    %v2747 = vpack.c.b16 %v2519, %v2515
    %v2748 = vpack.c.b16 %v2520, %v2516
    %v2749 = vpack.c.b16 %v2521, %v2517
    %v2750 = vpack.c.b16 %v2526, %v2522
    %v2751 = vpack.c.b16 %v2527, %v2523
    %v2752 = vpack.c.b16 %v2528, %v2524
    %v2753 = vpack.c.b16 %v2529, %v2525
    %v2754 = vpack.c.b16 %v2534, %v2530
    %v2755 = vpack.c.b16 %v2535, %v2531
    %v2756 = vpack.c.b16 %v2536, %v2532
    %v2757 = vpack.c.b16 %v2537, %v2533
    %v2758 = vpack.c.b16 %v2542, %v2538
    %v2759 = vpack.c.b16 %v2543, %v2539
    %v2760 = vpack.c.b16 %v2544, %v2540
    %v2761 = vpack.c.b16 %v2545, %v2541
    %v2762 = vpack.c.b16 %v2550, %v2546
    %v2763 = vpack.c.b16 %v2551, %v2547
    %v2764 = vpack.c.b16 %v2552, %v2548
    %v2765 = vpack.c.b16 %v2553, %v2549
    %v2766 = vpack.c.b16 %v2558, %v2554
    %v2767 = vpack.c.b16 %v2559, %v2555
    %v2768 = vpack.c.b16 %v2560, %v2556
    %v2769 = vpack.c.b16 %v2561, %v2557
    %v2770 = vpack.c.b16 %v2566, %v2562
    %v2771 = vpack.c.b16 %v2567, %v2563
    %v2772 = vpack.c.b16 %v2568, %v2564
    %v2773 = vpack.c.b16 %v2569, %v2565
    %v2774 = vpack.c.b16 %v2574, %v2570
    %v2775 = vpack.c.b16 %v2575, %v2571
    %v2776 = vpack.c.b16 %v2576, %v2572
    %v2777 = vpack.c.b16 %v2577, %v2573
    %v2778 = vpack.c.b16 %v2582, %v2578
    %v2779 = vpack.c.b16 %v2583, %v2579
    %v2780 = vpack.c.b16 %v2584, %v2580
    %v2781 = vpack.c.b16 %v2585, %v2581
    %v2782 = vpack.c.b16 %v2590, %v2586
    %v2783 = vpack.c.b16 %v2591, %v2587
    %v2784 = vpack.c.b16 %v2592, %v2588
    %v2785 = vpack.c.b16 %v2593, %v2589
    %v2786 = vpack.c.b16 %v2598, %v2594
    %v2787 = vpack.c.b16 %v2599, %v2595
    %v2788 = vpack.c.b16 %v2600, %v2596
    %v2789 = vpack.c.b16 %v2601, %v2597
    %v2790 = vpack.c.b16 %v2606, %v2602
    %v2791 = vpack.c.b16 %v2607, %v2603
    %v2792 = vpack.c.b16 %v2608, %v2604
    %v2793 = vpack.c.b16 %v2609, %v2605
    %v2794 = vpack.c.b16 %v2614, %v2610
    %v2795 = vpack.c.b16 %v2615, %v2611
    %v2796 = vpack.c.b16 %v2616, %v2612
    %v2797 = vpack.c.b16 %v2617, %v2613
    %v2798 = vpack.c.b16 %v2622, %v2618
    %v2799 = vpack.c.b16 %v2623, %v2619
    %v2800 = vpack.c.b16 %v2624, %v2620
    %v2801 = vpack.c.b16 %v2625, %v2621
    %v2802 = vpack.c.b16 %v2630, %v2626
    %v2803 = vpack.c.b16 %v2631, %v2627
    %v2804 = vpack.c.b16 %v2632, %v2628
    %v2805 = vpack.c.b16 %v2633, %v2629
    %v2806 = vpack.c.b16 %v2638, %v2634
    %v2807 = vpack.c.b16 %v2639, %v2635
    %v2808 = vpack.c.b16 %v2640, %v2636
    %v2809 = vpack.c.b16 %v2641, %v2637
    %v2810 = vpack.c.b16 %v2646, %v2642
    %v2811 = vpack.c.b16 %v2647, %v2643
    %v2812 = vpack.c.b16 %v2648, %v2644
    %v2813 = vpack.c.b16 %v2649, %v2645
    %v2814 = vpack.c.b16 %v2654, %v2650
    %v2815 = vpack.c.b16 %v2655, %v2651
    %v2816 = vpack.c.b16 %v2656, %v2652
    %v2817 = vpack.c.b16 %v2657, %v2653
    %v2818 = vpack.c.b16 %v2662, %v2658
    %v2819 = vpack.c.b16 %v2663, %v2659
    %v2820 = vpack.c.b16 %v2664, %v2660
    %v2821 = vpack.c.b16 %v2665, %v2661
    %v2822 = vpack.c.b16 %v2670, %v2666
    %v2823 = vpack.c.b16 %v2671, %v2667
    %v2824 = vpack.c.b16 %v2672, %v2668
    %v2825 = vpack.c.b16 %v2673, %v2669
    %v2826 = vpack.c.b16 %v2678, %v2674
    %v2827 = vpack.c.b16 %v2679, %v2675
    %v2828 = vpack.c.b16 %v2680, %v2676
    %v2829 = vpack.c.b16 %v2681, %v2677
    %v2830 = vpack.c.b16 %v2686, %v2682
    %v2831 = vpack.c.b16 %v2687, %v2683
    %v2832 = vpack.c.b16 %v2688, %v2684
    %v2833 = vpack.c.b16 %v2689, %v2685
    %v2834 = vpack.c.b16 %v2694, %v2690
    %v2835 = vpack.c.b16 %v2695, %v2691
    %v2836 = vpack.c.b16 %v2696, %v2692
    %v2837 = vpack.c.b16 %v2697, %v2693
    %v2838 = vpack.c.b16 %v2702, %v2698
    %v2839 = vpack.c.b16 %v2703, %v2699
    %v2840 = vpack.c.b16 %v2704, %v2700
    %v2841 = vpack.c.b16 %v2705, %v2701
    %v2842 = vpack.c.b16 %v2710, %v2706
    %v2843 = vpack.c.b16 %v2711, %v2707
    %v2844 = vpack.c.b16 %v2712, %v2708
    %v2845 = vpack.c.b16 %v2713, %v2709
    %v2846 = vpack.c.b16 %v2718, %v2714
    %v2847 = vpack.c.b16 %v2719, %v2715
    %v2848 = vpack.c.b16 %v2720, %v2716
    %v2849 = vpack.c.b16 %v2721, %v2717
    %2978 = vmatpush.bf16.msra.mxu0 %v2750
    %2979 = vmatpush.bf16.msra.mxu0 %v2746
    %2980 = vmatpush.bf16.msra.mxu0 %v2742
    %2981 = vmatpush.bf16.msra.mxu0 %v2738
    %2982 = vmatpush.bf16.msra.mxu0 %v2734
    %2983 = vmatpush.bf16.msra.mxu0 %v2730
    %2984 = vmatpush.bf16.msra.mxu0 %v2726
    %2985 = vmatpush.bf16.msra.mxu0 %v2722
    %2986 = vmatmul.bf16.gmra.mxu0 %v2196
    %v2987 = vpop.f32.mrf.mxu0
    %v2988 = vadd.f32 %v2330, %v2987
    %v2989 = vpop.f32.mrf.mxu0
    %2990 = vdwg.mxu0
    %2991 = vmatpush.bf16.msra.mxu0 %v2782
    %2992 = vmatpush.bf16.msra.mxu0 %v2778
    %2993 = vmatpush.bf16.msra.mxu0 %v2774
    %2994 = vmatpush.bf16.msra.mxu0 %v2770
    %2995 = vmatpush.bf16.msra.mxu0 %v2766
    %2996 = vmatpush.bf16.msra.mxu0 %v2762
    %2997 = vmatpush.bf16.msra.mxu0 %v2758
    %2998 = vmatpush.bf16.msra.mxu0 %v2754
    %2999 = vmatmul.bf16.gmra.mxu0 %v2197
    %v3000 = vpop.f32.mrf.mxu0
    %v3001 = vadd.f32 %v2988, %v3000
    %v3002 = vpop.f32.mrf.mxu0
    %3003 = vdwg.mxu0
    %3004 = vmatpush.bf16.msra.mxu0 %v2814
    %3005 = vmatpush.bf16.msra.mxu0 %v2810
    %3006 = vmatpush.bf16.msra.mxu0 %v2806
    %3007 = vmatpush.bf16.msra.mxu0 %v2802
    %3008 = vmatpush.bf16.msra.mxu0 %v2798
    %3009 = vmatpush.bf16.msra.mxu0 %v2794
    %3010 = vmatpush.bf16.msra.mxu0 %v2790
    %3011 = vmatpush.bf16.msra.mxu0 %v2786
    %3012 = vmatmul.bf16.gmra.mxu0 %v2198
    %v3013 = vpop.f32.mrf.mxu0
    %v3014 = vadd.f32 %v3001, %v3013
    %v3015 = vpop.f32.mrf.mxu0
    %3016 = vdwg.mxu0
    %3017 = vmatpush.bf16.msra.mxu0 %v2846
    %3018 = vmatpush.bf16.msra.mxu0 %v2842
    %3019 = vmatpush.bf16.msra.mxu0 %v2838
    %3020 = vmatpush.bf16.msra.mxu0 %v2834
    %3021 = vmatpush.bf16.msra.mxu0 %v2830
    %3022 = vmatpush.bf16.msra.mxu0 %v2826
    %3023 = vmatpush.bf16.msra.mxu0 %v2822
    %3024 = vmatpush.bf16.msra.mxu0 %v2818
    %3025 = vmatmul.bf16.gmra.mxu0 %v2199
    %v3026 = vpop.f32.mrf.mxu0
    %v3027 = vadd.f32 %v3014, %v3026
    %v3028 = vpop.f32.mrf.mxu0
    %3029 = vdwg.mxu0
    %3030 = vmatpush.bf16.msra.mxu0 %v2751
    %3031 = vmatpush.bf16.msra.mxu0 %v2747
    %3032 = vmatpush.bf16.msra.mxu0 %v2743
    %3033 = vmatpush.bf16.msra.mxu0 %v2739
    %3034 = vmatpush.bf16.msra.mxu0 %v2735
    %3035 = vmatpush.bf16.msra.mxu0 %v2731
    %3036 = vmatpush.bf16.msra.mxu0 %v2727
    %3037 = vmatpush.bf16.msra.mxu0 %v2723
    %3038 = vmatmul.bf16.gmra.mxu0 %v2196
    %v3039 = vpop.f32.mrf.mxu0
    %v3040 = vadd.f32 %v2331, %v3039
    %v3041 = vpop.f32.mrf.mxu0
    %3042 = vdwg.mxu0
    %3043 = vmatpush.bf16.msra.mxu0 %v2783
    %3044 = vmatpush.bf16.msra.mxu0 %v2779
    %3045 = vmatpush.bf16.msra.mxu0 %v2775
    %3046 = vmatpush.bf16.msra.mxu0 %v2771
    %3047 = vmatpush.bf16.msra.mxu0 %v2767
    %3048 = vmatpush.bf16.msra.mxu0 %v2763
    %3049 = vmatpush.bf16.msra.mxu0 %v2759
    %3050 = vmatpush.bf16.msra.mxu0 %v2755
    %3051 = vmatmul.bf16.gmra.mxu0 %v2197
    %v3052 = vpop.f32.mrf.mxu0
    %v3053 = vadd.f32 %v3040, %v3052
    %v3054 = vpop.f32.mrf.mxu0
    %3055 = vdwg.mxu0
    %3056 = vmatpush.bf16.msra.mxu0 %v2815
    %3057 = vmatpush.bf16.msra.mxu0 %v2811
    %3058 = vmatpush.bf16.msra.mxu0 %v2807
    %3059 = vmatpush.bf16.msra.mxu0 %v2803
    %3060 = vmatpush.bf16.msra.mxu0 %v2799
    %3061 = vmatpush.bf16.msra.mxu0 %v2795
    %3062 = vmatpush.bf16.msra.mxu0 %v2791
    %3063 = vmatpush.bf16.msra.mxu0 %v2787
    %3064 = vmatmul.bf16.gmra.mxu0 %v2198
    %v3065 = vpop.f32.mrf.mxu0
    %v3066 = vadd.f32 %v3053, %v3065
    %v3067 = vpop.f32.mrf.mxu0
    %3068 = vdwg.mxu0
    %3069 = vmatpush.bf16.msra.mxu0 %v2847
    %3070 = vmatpush.bf16.msra.mxu0 %v2843
    %3071 = vmatpush.bf16.msra.mxu0 %v2839
    %3072 = vmatpush.bf16.msra.mxu0 %v2835
    %3073 = vmatpush.bf16.msra.mxu0 %v2831
    %3074 = vmatpush.bf16.msra.mxu0 %v2827
    %3075 = vmatpush.bf16.msra.mxu0 %v2823
    %3076 = vmatpush.bf16.msra.mxu0 %v2819
    %3077 = vmatmul.bf16.gmra.mxu0 %v2199
    %v3078 = vpop.f32.mrf.mxu0
    %v3079 = vadd.f32 %v3066, %v3078
    %v3080 = vpop.f32.mrf.mxu0
    %3081 = vdwg.mxu0
    %3082 = vmatpush.bf16.msra.mxu0 %v2752
    %3083 = vmatpush.bf16.msra.mxu0 %v2748
    %3084 = vmatpush.bf16.msra.mxu0 %v2744
    %3085 = vmatpush.bf16.msra.mxu0 %v2740
    %3086 = vmatpush.bf16.msra.mxu0 %v2736
    %3087 = vmatpush.bf16.msra.mxu0 %v2732
    %3088 = vmatpush.bf16.msra.mxu0 %v2728
    %3089 = vmatpush.bf16.msra.mxu0 %v2724
    %3090 = vmatmul.bf16.gmra.mxu0 %v2196
    %v3091 = vpop.f32.mrf.mxu0
    %v3092 = vadd.f32 %v2332, %v3091
    %v3093 = vpop.f32.mrf.mxu0
    %3094 = vdwg.mxu0
    %3095 = vmatpush.bf16.msra.mxu0 %v2784
    %3096 = vmatpush.bf16.msra.mxu0 %v2780
    %3097 = vmatpush.bf16.msra.mxu0 %v2776
    %3098 = vmatpush.bf16.msra.mxu0 %v2772
    %3099 = vmatpush.bf16.msra.mxu0 %v2768
    %3100 = vmatpush.bf16.msra.mxu0 %v2764
    %3101 = vmatpush.bf16.msra.mxu0 %v2760
    %3102 = vmatpush.bf16.msra.mxu0 %v2756
    %3103 = vmatmul.bf16.gmra.mxu0 %v2197
    %v3104 = vpop.f32.mrf.mxu0
    %v3105 = vadd.f32 %v3092, %v3104
    %v3106 = vpop.f32.mrf.mxu0
    %3107 = vdwg.mxu0
    %3108 = vmatpush.bf16.msra.mxu0 %v2816
    %3109 = vmatpush.bf16.msra.mxu0 %v2812
    %3110 = vmatpush.bf16.msra.mxu0 %v2808
    %3111 = vmatpush.bf16.msra.mxu0 %v2804
    %3112 = vmatpush.bf16.msra.mxu0 %v2800
    %3113 = vmatpush.bf16.msra.mxu0 %v2796
    %3114 = vmatpush.bf16.msra.mxu0 %v2792
    %3115 = vmatpush.bf16.msra.mxu0 %v2788
    %3116 = vmatmul.bf16.gmra.mxu0 %v2198
    %v3117 = vpop.f32.mrf.mxu0
    %v3118 = vadd.f32 %v3105, %v3117
    %v3119 = vpop.f32.mrf.mxu0
    %3120 = vdwg.mxu0
    %3121 = vmatpush.bf16.msra.mxu0 %v2848
    %3122 = vmatpush.bf16.msra.mxu0 %v2844
    %3123 = vmatpush.bf16.msra.mxu0 %v2840
    %3124 = vmatpush.bf16.msra.mxu0 %v2836
    %3125 = vmatpush.bf16.msra.mxu0 %v2832
    %3126 = vmatpush.bf16.msra.mxu0 %v2828
    %3127 = vmatpush.bf16.msra.mxu0 %v2824
    %3128 = vmatpush.bf16.msra.mxu0 %v2820
    %3129 = vmatmul.bf16.gmra.mxu0 %v2199
    %v3130 = vpop.f32.mrf.mxu0
    %v3131 = vadd.f32 %v3118, %v3130
    %v3132 = vpop.f32.mrf.mxu0
    %3133 = vdwg.mxu0
    %3134 = vmatpush.bf16.msra.mxu0 %v2753
    %3135 = vmatpush.bf16.msra.mxu0 %v2749
    %3136 = vmatpush.bf16.msra.mxu0 %v2745
    %3137 = vmatpush.bf16.msra.mxu0 %v2741
    %3138 = vmatpush.bf16.msra.mxu0 %v2737
    %3139 = vmatpush.bf16.msra.mxu0 %v2733
    %3140 = vmatpush.bf16.msra.mxu0 %v2729
    %3141 = vmatpush.bf16.msra.mxu0 %v2725
    %3142 = vmatmul.bf16.gmra.mxu0 %v2196
    %v3143 = vpop.f32.mrf.mxu0
    %v3144 = vadd.f32 %v2333, %v3143
    %v3145 = vpop.f32.mrf.mxu0
    %3146 = vdwg.mxu0
    %3147 = vmatpush.bf16.msra.mxu0 %v2785
    %3148 = vmatpush.bf16.msra.mxu0 %v2781
    %3149 = vmatpush.bf16.msra.mxu0 %v2777
    %3150 = vmatpush.bf16.msra.mxu0 %v2773
    %3151 = vmatpush.bf16.msra.mxu0 %v2769
    %3152 = vmatpush.bf16.msra.mxu0 %v2765
    %3153 = vmatpush.bf16.msra.mxu0 %v2761
    %3154 = vmatpush.bf16.msra.mxu0 %v2757
    %3155 = vmatmul.bf16.gmra.mxu0 %v2197
    %v3156 = vpop.f32.mrf.mxu0
    %v3157 = vadd.f32 %v3144, %v3156
    %v3158 = vpop.f32.mrf.mxu0
    %3159 = vdwg.mxu0
    %3160 = vmatpush.bf16.msra.mxu0 %v2817
    %3161 = vmatpush.bf16.msra.mxu0 %v2813
    %3162 = vmatpush.bf16.msra.mxu0 %v2809
    %3163 = vmatpush.bf16.msra.mxu0 %v2805
    %3164 = vmatpush.bf16.msra.mxu0 %v2801
    %3165 = vmatpush.bf16.msra.mxu0 %v2797
    %3166 = vmatpush.bf16.msra.mxu0 %v2793
    %3167 = vmatpush.bf16.msra.mxu0 %v2789
    %3168 = vmatmul.bf16.gmra.mxu0 %v2198
    %v3169 = vpop.f32.mrf.mxu0
    %v3170 = vadd.f32 %v3157, %v3169
    %v3171 = vpop.f32.mrf.mxu0
    %3172 = vdwg.mxu0
    %3173 = vmatpush.bf16.msra.mxu0 %v2849
    %3174 = vmatpush.bf16.msra.mxu0 %v2845
    %3175 = vmatpush.bf16.msra.mxu0 %v2841
    %3176 = vmatpush.bf16.msra.mxu0 %v2837
    %3177 = vmatpush.bf16.msra.mxu0 %v2833
    %3178 = vmatpush.bf16.msra.mxu0 %v2829
    %3179 = vmatpush.bf16.msra.mxu0 %v2825
    %3180 = vmatpush.bf16.msra.mxu0 %v2821
    %3181 = vmatmul.bf16.gmra.mxu0 %v2199
    %v3182 = vpop.f32.mrf.mxu0
    %v3183 = vadd.f32 %v3170, %v3182
    %v3184 = vpop.f32.mrf.mxu0
    %3185 = vdwg.mxu0
    %vm3186 = vcmp.gt.f32.partialorder %v3027, 0.0
    %vm3187 = vcmp.gt.f32.partialorder %v3079, 0.0
    %vm3188 = vcmp.gt.f32.partialorder %v3131, 0.0
    %vm3189 = vcmp.gt.f32.partialorder %v3183, 0.0
    %v3190 = vmul.f32 %v3027, 0.2
    %v3191 = vmul.f32 %v3079, 0.2
    %v3192 = vmul.f32 %v3131, 0.2
    %v3193 = vmul.f32 %v3183, 0.2
    %v3194 = vsel %vm3186, %v3027, %v3190
    %v3195 = vsel %vm3187, %v3079, %v3191
    %v3196 = vsel %vm3188, %v3131, %v3192
    %v3197 = vsel %vm3189, %v3183, %v3193
    %v3198 = vpack.c.bf16 %v3194, %v3194
    %v3199 = vpack.c.bf16 %v3195, %v3195
    %v3200 = vpack.c.bf16 %v3196, %v3196
    %v3201 = vpack.c.bf16 %v3197, %v3197
    %v3202 = vld [vmem:[#allocation11] sm:$0xf]
    %v3203 = vld [vmem:[#allocation11 + $0x4] sm:$0xf]
    %v3204 = vld [vmem:[#allocation11 + $0x8] sm:$0xf]
    %v3205 = vld [vmem:[#allocation11 + $0xc] sm:$0xf]
    %v3206 = vld [vmem:[#allocation11 + $0x10] sm:$0xf]
    %v3207 = vld [vmem:[#allocation11 + $0x14] sm:$0xf]
    %v3208 = vld [vmem:[#allocation11 + $0x18] sm:$0xf]
    %v3209 = vld [vmem:[#allocation11 + $0x1c] sm:$0xf]
    %v3210 = vld [vmem:[#allocation11 + $0x20] sm:$0xf]
    %v3211 = vld [vmem:[#allocation11 + $0x24] sm:$0xf]
    %v3212 = vld [vmem:[#allocation11 + $0x28] sm:$0xf]
    %v3213 = vld [vmem:[#allocation11 + $0x2c] sm:$0xf]
    %v3214 = vld [vmem:[#allocation11 + $0x30] sm:$0xf]
    %v3215 = vld [vmem:[#allocation11 + $0x34] sm:$0xf]
    %v3216 = vld [vmem:[#allocation11 + $0x38] sm:$0xf]
    %v3217 = vld [vmem:[#allocation11 + $0x3c] sm:$0xf]
    %v3218 = vld [vmem:[#allocation11 + $0x40] sm:$0xf]
    %v3219 = vld [vmem:[#allocation11 + $0x44] sm:$0xf]
    %v3220 = vld [vmem:[#allocation11 + $0x48] sm:$0xf]
    %v3221 = vld [vmem:[#allocation11 + $0x4c] sm:$0xf]
    %v3222 = vld [vmem:[#allocation11 + $0x50] sm:$0xf]
    %v3223 = vld [vmem:[#allocation11 + $0x54] sm:$0xf]
    %v3224 = vld [vmem:[#allocation11 + $0x58] sm:$0xf]
    %v3225 = vld [vmem:[#allocation11 + $0x5c] sm:$0xf]
    %v3226 = vld [vmem:[#allocation11 + $0x60] sm:$0xf]
    %v3227 = vld [vmem:[#allocation11 + $0x64] sm:$0xf]
    %v3228 = vld [vmem:[#allocation11 + $0x68] sm:$0xf]
    %v3229 = vld [vmem:[#allocation11 + $0x6c] sm:$0xf]
    %v3230 = vld [vmem:[#allocation11 + $0x70] sm:$0xf]
    %v3231 = vld [vmem:[#allocation11 + $0x74] sm:$0xf]
    %v3232 = vld [vmem:[#allocation11 + $0x78] sm:$0xf]
    %v3233 = vld [vmem:[#allocation11 + $0x7c] sm:$0xf]
    %v3234 = vld [vmem:[#allocation11 + $0x80] sm:$0xf]
    %v3235 = vld [vmem:[#allocation11 + $0x84] sm:$0xf]
    %v3236 = vld [vmem:[#allocation11 + $0x88] sm:$0xf]
    %v3237 = vld [vmem:[#allocation11 + $0x8c] sm:$0xf]
    %v3238 = vld [vmem:[#allocation11 + $0x90] sm:$0xf]
    %v3239 = vld [vmem:[#allocation11 + $0x94] sm:$0xf]
    %v3240 = vld [vmem:[#allocation11 + $0x98] sm:$0xf]
    %v3241 = vld [vmem:[#allocation11 + $0x9c] sm:$0xf]
    %v3242 = vld [vmem:[#allocation11 + $0xa0] sm:$0xf]
    %v3243 = vld [vmem:[#allocation11 + $0xa4] sm:$0xf]
    %v3244 = vld [vmem:[#allocation11 + $0xa8] sm:$0xf]
    %v3245 = vld [vmem:[#allocation11 + $0xac] sm:$0xf]
    %v3246 = vld [vmem:[#allocation11 + $0xb0] sm:$0xf]
    %v3247 = vld [vmem:[#allocation11 + $0xb4] sm:$0xf]
    %v3248 = vld [vmem:[#allocation11 + $0xb8] sm:$0xf]
    %v3249 = vld [vmem:[#allocation11 + $0xbc] sm:$0xf]
    %v3250 = vld [vmem:[#allocation11 + $0xc0] sm:$0xf]
    %v3251 = vld [vmem:[#allocation11 + $0xc4] sm:$0xf]
    %v3252 = vld [vmem:[#allocation11 + $0xc8] sm:$0xf]
    %v3253 = vld [vmem:[#allocation11 + $0xcc] sm:$0xf]
    %v3254 = vld [vmem:[#allocation11 + $0xd0] sm:$0xf]
    %v3255 = vld [vmem:[#allocation11 + $0xd4] sm:$0xf]
    %v3256 = vld [vmem:[#allocation11 + $0xd8] sm:$0xf]
    %v3257 = vld [vmem:[#allocation11 + $0xdc] sm:$0xf]
    %v3258 = vld [vmem:[#allocation11 + $0xe0] sm:$0xf]
    %v3259 = vld [vmem:[#allocation11 + $0xe4] sm:$0xf]
    %v3260 = vld [vmem:[#allocation11 + $0xe8] sm:$0xf]
    %v3261 = vld [vmem:[#allocation11 + $0xec] sm:$0xf]
    %v3262 = vld [vmem:[#allocation11 + $0xf0] sm:$0xf]
    %v3263 = vld [vmem:[#allocation11 + $0xf4] sm:$0xf]
    %v3264 = vld [vmem:[#allocation11 + $0xf8] sm:$0xf]
    %v3265 = vld [vmem:[#allocation11 + $0xfc] sm:$0xf]
    %v3266 = vld [vmem:[%s6] sm:$0x1]
    %v3268 = vperm.slane %v3266, 0
    %v3334 = vunpack.c.l.b16 %v3202
    %v3335 = vunpack.c.l.b16 %v3203
    %v3336 = vunpack.c.l.b16 %v3204
    %v3337 = vunpack.c.l.b16 %v3205
    %v3338 = vunpack.c.l.b16 %v3206
    %v3339 = vunpack.c.l.b16 %v3207
    %v3340 = vunpack.c.l.b16 %v3208
    %v3341 = vunpack.c.l.b16 %v3209
    %v3342 = vunpack.c.l.b16 %v3210
    %v3343 = vunpack.c.l.b16 %v3211
    %v3344 = vunpack.c.l.b16 %v3212
    %v3345 = vunpack.c.l.b16 %v3213
    %v3346 = vunpack.c.l.b16 %v3214
    %v3347 = vunpack.c.l.b16 %v3215
    %v3348 = vunpack.c.l.b16 %v3216
    %v3349 = vunpack.c.l.b16 %v3217
    %v3350 = vunpack.c.l.b16 %v3218
    %v3351 = vunpack.c.l.b16 %v3219
    %v3352 = vunpack.c.l.b16 %v3220
    %v3353 = vunpack.c.l.b16 %v3221
    %v3354 = vunpack.c.l.b16 %v3222
    %v3355 = vunpack.c.l.b16 %v3223
    %v3356 = vunpack.c.l.b16 %v3224
    %v3357 = vunpack.c.l.b16 %v3225
    %v3358 = vunpack.c.l.b16 %v3226
    %v3359 = vunpack.c.l.b16 %v3227
    %v3360 = vunpack.c.l.b16 %v3228
    %v3361 = vunpack.c.l.b16 %v3229
    %v3362 = vunpack.c.l.b16 %v3230
    %v3363 = vunpack.c.l.b16 %v3231
    %v3364 = vunpack.c.l.b16 %v3232
    %v3365 = vunpack.c.l.b16 %v3233
    %v3366 = vunpack.c.l.b16 %v3234
    %v3367 = vunpack.c.l.b16 %v3235
    %v3368 = vunpack.c.l.b16 %v3236
    %v3369 = vunpack.c.l.b16 %v3237
    %v3370 = vunpack.c.l.b16 %v3238
    %v3371 = vunpack.c.l.b16 %v3239
    %v3372 = vunpack.c.l.b16 %v3240
    %v3373 = vunpack.c.l.b16 %v3241
    %v3374 = vunpack.c.l.b16 %v3242
    %v3375 = vunpack.c.l.b16 %v3243
    %v3376 = vunpack.c.l.b16 %v3244
    %v3377 = vunpack.c.l.b16 %v3245
    %v3378 = vunpack.c.l.b16 %v3246
    %v3379 = vunpack.c.l.b16 %v3247
    %v3380 = vunpack.c.l.b16 %v3248
    %v3381 = vunpack.c.l.b16 %v3249
    %v3382 = vunpack.c.l.b16 %v3250
    %v3383 = vunpack.c.l.b16 %v3251
    %v3384 = vunpack.c.l.b16 %v3252
    %v3385 = vunpack.c.l.b16 %v3253
    %v3386 = vunpack.c.l.b16 %v3254
    %v3387 = vunpack.c.l.b16 %v3255
    %v3388 = vunpack.c.l.b16 %v3256
    %v3389 = vunpack.c.l.b16 %v3257
    %v3390 = vunpack.c.l.b16 %v3258
    %v3391 = vunpack.c.l.b16 %v3259
    %v3392 = vunpack.c.l.b16 %v3260
    %v3393 = vunpack.c.l.b16 %v3261
    %v3394 = vunpack.c.l.b16 %v3262
    %v3395 = vunpack.c.l.b16 %v3263
    %v3396 = vunpack.c.l.b16 %v3264
    %v3397 = vunpack.c.l.b16 %v3265
    %v3398 = vpack.c.b16 %v3335, %v3334
    %v3399 = vpack.c.b16 %v3337, %v3336
    %v3400 = vpack.c.b16 %v3339, %v3338
    %v3401 = vpack.c.b16 %v3341, %v3340
    %v3402 = vpack.c.b16 %v3343, %v3342
    %v3403 = vpack.c.b16 %v3345, %v3344
    %v3404 = vpack.c.b16 %v3347, %v3346
    %v3405 = vpack.c.b16 %v3349, %v3348
    %v3406 = vpack.c.b16 %v3351, %v3350
    %v3407 = vpack.c.b16 %v3353, %v3352
    %v3408 = vpack.c.b16 %v3355, %v3354
    %v3409 = vpack.c.b16 %v3357, %v3356
    %v3410 = vpack.c.b16 %v3359, %v3358
    %v3411 = vpack.c.b16 %v3361, %v3360
    %v3412 = vpack.c.b16 %v3363, %v3362
    %v3413 = vpack.c.b16 %v3365, %v3364
    %v3414 = vpack.c.b16 %v3367, %v3366
    %v3415 = vpack.c.b16 %v3369, %v3368
    %v3416 = vpack.c.b16 %v3371, %v3370
    %v3417 = vpack.c.b16 %v3373, %v3372
    %v3418 = vpack.c.b16 %v3375, %v3374
    %v3419 = vpack.c.b16 %v3377, %v3376
    %v3420 = vpack.c.b16 %v3379, %v3378
    %v3421 = vpack.c.b16 %v3381, %v3380
    %v3422 = vpack.c.b16 %v3383, %v3382
    %v3423 = vpack.c.b16 %v3385, %v3384
    %v3424 = vpack.c.b16 %v3387, %v3386
    %v3425 = vpack.c.b16 %v3389, %v3388
    %v3426 = vpack.c.b16 %v3391, %v3390
    %v3427 = vpack.c.b16 %v3393, %v3392
    %v3428 = vpack.c.b16 %v3395, %v3394
    %v3429 = vpack.c.b16 %v3397, %v3396
    %3462 = vmatpush.bf16.msra.mxu0 %v3405
    %3463 = vmatpush.bf16.msra.mxu0 %v3404
    %3464 = vmatpush.bf16.msra.mxu0 %v3403
    %3465 = vmatpush.bf16.msra.mxu0 %v3402
    %3466 = vmatpush.bf16.msra.mxu0 %v3401
    %3467 = vmatpush.bf16.msra.mxu0 %v3400
    %3468 = vmatpush.bf16.msra.mxu0 %v3399
    %3469 = vmatpush.bf16.msra.mxu0 %v3398
    %3470 = vmatmul.bf16.gmra.mxu0 %v3198
    %v3471 = vpop.f32.mrf.mxu0
    %v3472 = vadd.f32 %v3268, %v3471
    %v3473 = vpop.f32.mrf.mxu0
    %3474 = vdwg.mxu0
    %3475 = vmatpush.bf16.msra.mxu0 %v3413
    %3476 = vmatpush.bf16.msra.mxu0 %v3412
    %3477 = vmatpush.bf16.msra.mxu0 %v3411
    %3478 = vmatpush.bf16.msra.mxu0 %v3410
    %3479 = vmatpush.bf16.msra.mxu0 %v3409
    %3480 = vmatpush.bf16.msra.mxu0 %v3408
    %3481 = vmatpush.bf16.msra.mxu0 %v3407
    %3482 = vmatpush.bf16.msra.mxu0 %v3406
    %3483 = vmatmul.bf16.gmra.mxu0 %v3199
    %v3484 = vpop.f32.mrf.mxu0
    %v3485 = vadd.f32 %v3472, %v3484
    %v3486 = vpop.f32.mrf.mxu0
    %3487 = vdwg.mxu0
    %3488 = vmatpush.bf16.msra.mxu0 %v3421
    %3489 = vmatpush.bf16.msra.mxu0 %v3420
    %3490 = vmatpush.bf16.msra.mxu0 %v3419
    %3491 = vmatpush.bf16.msra.mxu0 %v3418
    %3492 = vmatpush.bf16.msra.mxu0 %v3417
    %3493 = vmatpush.bf16.msra.mxu0 %v3416
    %3494 = vmatpush.bf16.msra.mxu0 %v3415
    %3495 = vmatpush.bf16.msra.mxu0 %v3414
    %3496 = vmatmul.bf16.gmra.mxu0 %v3200
    %v3497 = vpop.f32.mrf.mxu0
    %v3498 = vadd.f32 %v3485, %v3497
    %v3499 = vpop.f32.mrf.mxu0
    %3500 = vdwg.mxu0
    %3501 = vmatpush.bf16.msra.mxu0 %v3429
    %3502 = vmatpush.bf16.msra.mxu0 %v3428
    %3503 = vmatpush.bf16.msra.mxu0 %v3427
    %3504 = vmatpush.bf16.msra.mxu0 %v3426
    %3505 = vmatpush.bf16.msra.mxu0 %v3425
    %3506 = vmatpush.bf16.msra.mxu0 %v3424
    %3507 = vmatpush.bf16.msra.mxu0 %v3423
    %3508 = vmatpush.bf16.msra.mxu0 %v3422
    %3509 = vmatmul.bf16.gmra.mxu0 %v3201
    %v3510 = vpop.f32.mrf.mxu0
    %v3511 = vadd.f32 %v3498, %v3510
    %v3512 = vpop.f32.mrf.mxu0
    %3513 = vdwg.mxu0
    %v3514 = vpack.c.bf16 %v3511, %v3511
    %v3515 = vld [vmem:[#allocation13] sm:$0xff]
    %v3516 = vld [vmem:[#allocation13 + $0x8] sm:$0xff]
    %v3517 = vld [vmem:[#allocation13 + $0x10] sm:$0xff]
    %v3518 = vld [vmem:[#allocation13 + $0x18] sm:$0xff]
    %v3519 = vld [vmem:[#allocation13 + $0x20] sm:$0xff]
    %v3520 = vld [vmem:[#allocation13 + $0x28] sm:$0xff]
    %v3521 = vld [vmem:[#allocation13 + $0x30] sm:$0xff]
    %v3522 = vld [vmem:[#allocation13 + $0x38] sm:$0xff]
    %v3523 = vld [vmem:[#allocation13 + $0x40] sm:$0xff]
    %v3524 = vld [vmem:[#allocation13 + $0x48] sm:$0xff]
    %v3525 = vld [vmem:[#allocation13 + $0x50] sm:$0xff]
    %v3526 = vld [vmem:[#allocation13 + $0x58] sm:$0xff]
    %v3527 = vld [vmem:[#allocation13 + $0x60] sm:$0xff]
    %v3528 = vld [vmem:[#allocation13 + $0x68] sm:$0xff]
    %v3529 = vld [vmem:[#allocation13 + $0x70] sm:$0xff]
    %v3530 = vld [vmem:[#allocation13 + $0x78] sm:$0xff]
    %v3531 = vld [vmem:[#allocation13 + $0x80] sm:$0xff]
    %v3532 = vld [vmem:[#allocation13 + $0x88] sm:$0xff]
    %v3533 = vld [vmem:[#allocation13 + $0x90] sm:$0xff]
    %v3534 = vld [vmem:[#allocation13 + $0x98] sm:$0xff]
    %v3535 = vld [vmem:[#allocation13 + $0xa0] sm:$0xff]
    %v3536 = vld [vmem:[#allocation13 + $0xa8] sm:$0xff]
    %v3537 = vld [vmem:[#allocation13 + $0xb0] sm:$0xff]
    %v3538 = vld [vmem:[#allocation13 + $0xb8] sm:$0xff]
    %v3539 = vld [vmem:[#allocation13 + $0xc0] sm:$0xff]
    %v3540 = vld [vmem:[#allocation13 + $0xc8] sm:$0xff]
    %v3541 = vld [vmem:[#allocation13 + $0xd0] sm:$0xff]
    %v3542 = vld [vmem:[#allocation13 + $0xd8] sm:$0xff]
    %v3543 = vld [vmem:[#allocation13 + $0xe0] sm:$0xff]
    %v3544 = vld [vmem:[#allocation13 + $0xe8] sm:$0xff]
    %v3545 = vld [vmem:[#allocation13 + $0xf0] sm:$0xff]
    %v3546 = vld [vmem:[#allocation13 + $0xf8] sm:$0xff]
    %v3547 = vld [vmem:[#allocation14] sm:$0xf]
    %v3549 = vperm.slane %v3547, 0
    %v3550 = vperm.slane %v3547, 1
    %v3551 = vperm.slane %v3547, 2
    %v3552 = vperm.slane %v3547, 3
    %v3589 = vunpack.c.l.b16 %v3515
    %v3590 = vunpack.c.h.b16 %v3515
    %v3591 = vunpack.c.l.b16 %v3516
    %v3592 = vunpack.c.h.b16 %v3516
    %v3593 = vunpack.c.l.b16 %v3517
    %v3594 = vunpack.c.h.b16 %v3517
    %v3595 = vunpack.c.l.b16 %v3518
    %v3596 = vunpack.c.h.b16 %v3518
    %v3597 = vunpack.c.l.b16 %v3519
    %v3598 = vunpack.c.h.b16 %v3519
    %v3599 = vunpack.c.l.b16 %v3520
    %v3600 = vunpack.c.h.b16 %v3520
    %v3601 = vunpack.c.l.b16 %v3521
    %v3602 = vunpack.c.h.b16 %v3521
    %v3603 = vunpack.c.l.b16 %v3522
    %v3604 = vunpack.c.h.b16 %v3522
    %v3605 = vunpack.c.l.b16 %v3523
    %v3606 = vunpack.c.h.b16 %v3523
    %v3607 = vunpack.c.l.b16 %v3524
    %v3608 = vunpack.c.h.b16 %v3524
    %v3609 = vunpack.c.l.b16 %v3525
    %v3610 = vunpack.c.h.b16 %v3525
    %v3611 = vunpack.c.l.b16 %v3526
    %v3612 = vunpack.c.h.b16 %v3526
    %v3613 = vunpack.c.l.b16 %v3527
    %v3614 = vunpack.c.h.b16 %v3527
    %v3615 = vunpack.c.l.b16 %v3528
    %v3616 = vunpack.c.h.b16 %v3528
    %v3617 = vunpack.c.l.b16 %v3529
    %v3618 = vunpack.c.h.b16 %v3529
    %v3619 = vunpack.c.l.b16 %v3530
    %v3620 = vunpack.c.h.b16 %v3530
    %v3621 = vunpack.c.l.b16 %v3531
    %v3622 = vunpack.c.h.b16 %v3531
    %v3623 = vunpack.c.l.b16 %v3532
    %v3624 = vunpack.c.h.b16 %v3532
    %v3625 = vunpack.c.l.b16 %v3533
    %v3626 = vunpack.c.h.b16 %v3533
    %v3627 = vunpack.c.l.b16 %v3534
    %v3628 = vunpack.c.h.b16 %v3534
    %v3629 = vunpack.c.l.b16 %v3535
    %v3630 = vunpack.c.h.b16 %v3535
    %v3631 = vunpack.c.l.b16 %v3536
    %v3632 = vunpack.c.h.b16 %v3536
    %v3633 = vunpack.c.l.b16 %v3537
    %v3634 = vunpack.c.h.b16 %v3537
    %v3635 = vunpack.c.l.b16 %v3538
    %v3636 = vunpack.c.h.b16 %v3538
    %v3637 = vunpack.c.l.b16 %v3539
    %v3638 = vunpack.c.h.b16 %v3539
    %v3639 = vunpack.c.l.b16 %v3540
    %v3640 = vunpack.c.h.b16 %v3540
    %v3641 = vunpack.c.l.b16 %v3541
    %v3642 = vunpack.c.h.b16 %v3541
    %v3643 = vunpack.c.l.b16 %v3542
    %v3644 = vunpack.c.h.b16 %v3542
    %v3645 = vunpack.c.l.b16 %v3543
    %v3646 = vunpack.c.h.b16 %v3543
    %v3647 = vunpack.c.l.b16 %v3544
    %v3648 = vunpack.c.h.b16 %v3544
    %v3649 = vunpack.c.l.b16 %v3545
    %v3650 = vunpack.c.h.b16 %v3545
    %v3651 = vunpack.c.l.b16 %v3546
    %v3652 = vunpack.c.h.b16 %v3546
    %v3653 = vpack.c.b16 %v3593, %v3589
    %v3654 = vpack.c.b16 %v3594, %v3590
    %v3655 = vpack.c.b16 %v3595, %v3591
    %v3656 = vpack.c.b16 %v3596, %v3592
    %v3657 = vpack.c.b16 %v3601, %v3597
    %v3658 = vpack.c.b16 %v3602, %v3598
    %v3659 = vpack.c.b16 %v3603, %v3599
    %v3660 = vpack.c.b16 %v3604, %v3600
    %v3661 = vpack.c.b16 %v3609, %v3605
    %v3662 = vpack.c.b16 %v3610, %v3606
    %v3663 = vpack.c.b16 %v3611, %v3607
    %v3664 = vpack.c.b16 %v3612, %v3608
    %v3665 = vpack.c.b16 %v3617, %v3613
    %v3666 = vpack.c.b16 %v3618, %v3614
    %v3667 = vpack.c.b16 %v3619, %v3615
    %v3668 = vpack.c.b16 %v3620, %v3616
    %v3669 = vpack.c.b16 %v3625, %v3621
    %v3670 = vpack.c.b16 %v3626, %v3622
    %v3671 = vpack.c.b16 %v3627, %v3623
    %v3672 = vpack.c.b16 %v3628, %v3624
    %v3673 = vpack.c.b16 %v3633, %v3629
    %v3674 = vpack.c.b16 %v3634, %v3630
    %v3675 = vpack.c.b16 %v3635, %v3631
    %v3676 = vpack.c.b16 %v3636, %v3632
    %v3677 = vpack.c.b16 %v3641, %v3637
    %v3678 = vpack.c.b16 %v3642, %v3638
    %v3679 = vpack.c.b16 %v3643, %v3639
    %v3680 = vpack.c.b16 %v3644, %v3640
    %v3681 = vpack.c.b16 %v3649, %v3645
    %v3682 = vpack.c.b16 %v3650, %v3646
    %v3683 = vpack.c.b16 %v3651, %v3647
    %v3684 = vpack.c.b16 %v3652, %v3648
    %3717 = vmatpush.bf16.msra.mxu0 %v3681
    %3718 = vmatpush.bf16.msra.mxu0 %v3677
    %3719 = vmatpush.bf16.msra.mxu0 %v3673
    %3720 = vmatpush.bf16.msra.mxu0 %v3669
    %3721 = vmatpush.bf16.msra.mxu0 %v3665
    %3722 = vmatpush.bf16.msra.mxu0 %v3661
    %3723 = vmatpush.bf16.msra.mxu0 %v3657
    %3724 = vmatpush.bf16.msra.mxu0 %v3653
    %3725 = vmatmul.bf16.gmra.mxu0 %v3514
    %v3726 = vpop.f32.mrf.mxu0
    %v3727 = vadd.f32 %v3549, %v3726
    %v3728 = vpop.f32.mrf.mxu0
    %3729 = vdwg.mxu0
    %3730 = vmatpush.bf16.msra.mxu0 %v3682
    %3731 = vmatpush.bf16.msra.mxu0 %v3678
    %3732 = vmatpush.bf16.msra.mxu0 %v3674
    %3733 = vmatpush.bf16.msra.mxu0 %v3670
    %3734 = vmatpush.bf16.msra.mxu0 %v3666
    %3735 = vmatpush.bf16.msra.mxu0 %v3662
    %3736 = vmatpush.bf16.msra.mxu0 %v3658
    %3737 = vmatpush.bf16.msra.mxu0 %v3654
    %3738 = vmatmul.bf16.gmra.mxu0 %v3514
    %v3739 = vpop.f32.mrf.mxu0
    %v3740 = vadd.f32 %v3550, %v3739
    %v3741 = vpop.f32.mrf.mxu0
    %3742 = vdwg.mxu0
    %3743 = vmatpush.bf16.msra.mxu0 %v3683
    %3744 = vmatpush.bf16.msra.mxu0 %v3679
    %3745 = vmatpush.bf16.msra.mxu0 %v3675
    %3746 = vmatpush.bf16.msra.mxu0 %v3671
    %3747 = vmatpush.bf16.msra.mxu0 %v3667
    %3748 = vmatpush.bf16.msra.mxu0 %v3663
    %3749 = vmatpush.bf16.msra.mxu0 %v3659
    %3750 = vmatpush.bf16.msra.mxu0 %v3655
    %3751 = vmatmul.bf16.gmra.mxu0 %v3514
    %v3752 = vpop.f32.mrf.mxu0
    %v3753 = vadd.f32 %v3551, %v3752
    %v3754 = vpop.f32.mrf.mxu0
    %3755 = vdwg.mxu0
    %3756 = vmatpush.bf16.msra.mxu0 %v3684
    %3757 = vmatpush.bf16.msra.mxu0 %v3680
    %3758 = vmatpush.bf16.msra.mxu0 %v3676
    %3759 = vmatpush.bf16.msra.mxu0 %v3672
    %3760 = vmatpush.bf16.msra.mxu0 %v3668
    %3761 = vmatpush.bf16.msra.mxu0 %v3664
    %3762 = vmatpush.bf16.msra.mxu0 %v3660
    %3763 = vmatpush.bf16.msra.mxu0 %v3656
    %3764 = vmatmul.bf16.gmra.mxu0 %v3514
    %v3765 = vpop.f32.mrf.mxu0
    %v3766 = vadd.f32 %v3552, %v3765
    %v3767 = vpop.f32.mrf.mxu0
    %3768 = vdwg.mxu0
    %vm3769 = vcmp.gt.f32.partialorder %v3727, 0.0
    %vm3770 = vcmp.gt.f32.partialorder %v3740, 0.0
    %vm3771 = vcmp.gt.f32.partialorder %v3753, 0.0
    %vm3772 = vcmp.gt.f32.partialorder %v3766, 0.0
    %v3773 = vmul.f32 %v3727, 0.2
    %v3774 = vmul.f32 %v3740, 0.2
    %v3775 = vmul.f32 %v3753, 0.2
    %v3776 = vmul.f32 %v3766, 0.2
    %v3777 = vsel %vm3769, %v3727, %v3773
    %v3778 = vsel %vm3770, %v3740, %v3774
    %v3779 = vsel %vm3771, %v3753, %v3775
    %v3780 = vsel %vm3772, %v3766, %v3776
    %v3781 = vpack.c.bf16 %v3777, %v3777
    %v3782 = vpack.c.bf16 %v3778, %v3778
    %v3783 = vpack.c.bf16 %v3779, %v3779
    %v3784 = vpack.c.bf16 %v3780, %v3780
    %v3785 = vld [vmem:[#allocation16] sm:$0xff]
    %v3786 = vld [vmem:[#allocation16 + $0x8] sm:$0xff]
    %v3787 = vld [vmem:[#allocation16 + $0x10] sm:$0xff]
    %v3788 = vld [vmem:[#allocation16 + $0x18] sm:$0xff]
    %v3789 = vld [vmem:[#allocation16 + $0x20] sm:$0xff]
    %v3790 = vld [vmem:[#allocation16 + $0x28] sm:$0xff]
    %v3791 = vld [vmem:[#allocation16 + $0x30] sm:$0xff]
    %v3792 = vld [vmem:[#allocation16 + $0x38] sm:$0xff]
    %v3793 = vld [vmem:[#allocation16 + $0x40] sm:$0xff]
    %v3794 = vld [vmem:[#allocation16 + $0x48] sm:$0xff]
    %v3795 = vld [vmem:[#allocation16 + $0x50] sm:$0xff]
    %v3796 = vld [vmem:[#allocation16 + $0x58] sm:$0xff]
    %v3797 = vld [vmem:[#allocation16 + $0x60] sm:$0xff]
    %v3798 = vld [vmem:[#allocation16 + $0x68] sm:$0xff]
    %v3799 = vld [vmem:[#allocation16 + $0x70] sm:$0xff]
    %v3800 = vld [vmem:[#allocation16 + $0x78] sm:$0xff]
    %v3801 = vld [vmem:[#allocation16 + $0x80] sm:$0xff]
    %v3802 = vld [vmem:[#allocation16 + $0x88] sm:$0xff]
    %v3803 = vld [vmem:[#allocation16 + $0x90] sm:$0xff]
    %v3804 = vld [vmem:[#allocation16 + $0x98] sm:$0xff]
    %v3805 = vld [vmem:[#allocation16 + $0xa0] sm:$0xff]
    %v3806 = vld [vmem:[#allocation16 + $0xa8] sm:$0xff]
    %v3807 = vld [vmem:[#allocation16 + $0xb0] sm:$0xff]
    %v3808 = vld [vmem:[#allocation16 + $0xb8] sm:$0xff]
    %v3809 = vld [vmem:[#allocation16 + $0xc0] sm:$0xff]
    %v3810 = vld [vmem:[#allocation16 + $0xc8] sm:$0xff]
    %v3811 = vld [vmem:[#allocation16 + $0xd0] sm:$0xff]
    %v3812 = vld [vmem:[#allocation16 + $0xd8] sm:$0xff]
    %v3813 = vld [vmem:[#allocation16 + $0xe0] sm:$0xff]
    %v3814 = vld [vmem:[#allocation16 + $0xe8] sm:$0xff]
    %v3815 = vld [vmem:[#allocation16 + $0xf0] sm:$0xff]
    %v3816 = vld [vmem:[#allocation16 + $0xf8] sm:$0xff]
    %v3817 = vld [vmem:[#allocation16 + $0x100] sm:$0xff]
    %v3818 = vld [vmem:[#allocation16 + $0x108] sm:$0xff]
    %v3819 = vld [vmem:[#allocation16 + $0x110] sm:$0xff]
    %v3820 = vld [vmem:[#allocation16 + $0x118] sm:$0xff]
    %v3821 = vld [vmem:[#allocation16 + $0x120] sm:$0xff]
    %v3822 = vld [vmem:[#allocation16 + $0x128] sm:$0xff]
    %v3823 = vld [vmem:[#allocation16 + $0x130] sm:$0xff]
    %v3824 = vld [vmem:[#allocation16 + $0x138] sm:$0xff]
    %v3825 = vld [vmem:[#allocation16 + $0x140] sm:$0xff]
    %v3826 = vld [vmem:[#allocation16 + $0x148] sm:$0xff]
    %v3827 = vld [vmem:[#allocation16 + $0x150] sm:$0xff]
    %v3828 = vld [vmem:[#allocation16 + $0x158] sm:$0xff]
    %v3829 = vld [vmem:[#allocation16 + $0x160] sm:$0xff]
    %v3830 = vld [vmem:[#allocation16 + $0x168] sm:$0xff]
    %v3831 = vld [vmem:[#allocation16 + $0x170] sm:$0xff]
    %v3832 = vld [vmem:[#allocation16 + $0x178] sm:$0xff]
    %v3833 = vld [vmem:[#allocation16 + $0x180] sm:$0xff]
    %v3834 = vld [vmem:[#allocation16 + $0x188] sm:$0xff]
    %v3835 = vld [vmem:[#allocation16 + $0x190] sm:$0xff]
    %v3836 = vld [vmem:[#allocation16 + $0x198] sm:$0xff]
    %v3837 = vld [vmem:[#allocation16 + $0x1a0] sm:$0xff]
    %v3838 = vld [vmem:[#allocation16 + $0x1a8] sm:$0xff]
    %v3839 = vld [vmem:[#allocation16 + $0x1b0] sm:$0xff]
    %v3840 = vld [vmem:[#allocation16 + $0x1b8] sm:$0xff]
    %v3841 = vld [vmem:[#allocation16 + $0x1c0] sm:$0xff]
    %v3842 = vld [vmem:[#allocation16 + $0x1c8] sm:$0xff]
    %v3843 = vld [vmem:[#allocation16 + $0x1d0] sm:$0xff]
    %v3844 = vld [vmem:[#allocation16 + $0x1d8] sm:$0xff]
    %v3845 = vld [vmem:[#allocation16 + $0x1e0] sm:$0xff]
    %v3846 = vld [vmem:[#allocation16 + $0x1e8] sm:$0xff]
    %v3847 = vld [vmem:[#allocation16 + $0x1f0] sm:$0xff]
    %v3848 = vld [vmem:[#allocation16 + $0x1f8] sm:$0xff]
    %v3849 = vld [vmem:[#allocation16 + $0x200] sm:$0xff]
    %v3850 = vld [vmem:[#allocation16 + $0x208] sm:$0xff]
    %v3851 = vld [vmem:[#allocation16 + $0x210] sm:$0xff]
    %v3852 = vld [vmem:[#allocation16 + $0x218] sm:$0xff]
    %v3853 = vld [vmem:[#allocation16 + $0x220] sm:$0xff]
    %v3854 = vld [vmem:[#allocation16 + $0x228] sm:$0xff]
    %v3855 = vld [vmem:[#allocation16 + $0x230] sm:$0xff]
    %v3856 = vld [vmem:[#allocation16 + $0x238] sm:$0xff]
    %v3857 = vld [vmem:[#allocation16 + $0x240] sm:$0xff]
    %v3858 = vld [vmem:[#allocation16 + $0x248] sm:$0xff]
    %v3859 = vld [vmem:[#allocation16 + $0x250] sm:$0xff]
    %v3860 = vld [vmem:[#allocation16 + $0x258] sm:$0xff]
    %v3861 = vld [vmem:[#allocation16 + $0x260] sm:$0xff]
    %v3862 = vld [vmem:[#allocation16 + $0x268] sm:$0xff]
    %v3863 = vld [vmem:[#allocation16 + $0x270] sm:$0xff]
    %v3864 = vld [vmem:[#allocation16 + $0x278] sm:$0xff]
    %v3865 = vld [vmem:[#allocation16 + $0x280] sm:$0xff]
    %v3866 = vld [vmem:[#allocation16 + $0x288] sm:$0xff]
    %v3867 = vld [vmem:[#allocation16 + $0x290] sm:$0xff]
    %v3868 = vld [vmem:[#allocation16 + $0x298] sm:$0xff]
    %v3869 = vld [vmem:[#allocation16 + $0x2a0] sm:$0xff]
    %v3870 = vld [vmem:[#allocation16 + $0x2a8] sm:$0xff]
    %v3871 = vld [vmem:[#allocation16 + $0x2b0] sm:$0xff]
    %v3872 = vld [vmem:[#allocation16 + $0x2b8] sm:$0xff]
    %v3873 = vld [vmem:[#allocation16 + $0x2c0] sm:$0xff]
    %v3874 = vld [vmem:[#allocation16 + $0x2c8] sm:$0xff]
    %v3875 = vld [vmem:[#allocation16 + $0x2d0] sm:$0xff]
    %v3876 = vld [vmem:[#allocation16 + $0x2d8] sm:$0xff]
    %v3877 = vld [vmem:[#allocation16 + $0x2e0] sm:$0xff]
    %v3878 = vld [vmem:[#allocation16 + $0x2e8] sm:$0xff]
    %v3879 = vld [vmem:[#allocation16 + $0x2f0] sm:$0xff]
    %v3880 = vld [vmem:[#allocation16 + $0x2f8] sm:$0xff]
    %v3881 = vld [vmem:[#allocation16 + $0x300] sm:$0xff]
    %v3882 = vld [vmem:[#allocation16 + $0x308] sm:$0xff]
    %v3883 = vld [vmem:[#allocation16 + $0x310] sm:$0xff]
    %v3884 = vld [vmem:[#allocation16 + $0x318] sm:$0xff]
    %v3885 = vld [vmem:[#allocation16 + $0x320] sm:$0xff]
    %v3886 = vld [vmem:[#allocation16 + $0x328] sm:$0xff]
    %v3887 = vld [vmem:[#allocation16 + $0x330] sm:$0xff]
    %v3888 = vld [vmem:[#allocation16 + $0x338] sm:$0xff]
    %v3889 = vld [vmem:[#allocation16 + $0x340] sm:$0xff]
    %v3890 = vld [vmem:[#allocation16 + $0x348] sm:$0xff]
    %v3891 = vld [vmem:[#allocation16 + $0x350] sm:$0xff]
    %v3892 = vld [vmem:[#allocation16 + $0x358] sm:$0xff]
    %v3893 = vld [vmem:[#allocation16 + $0x360] sm:$0xff]
    %v3894 = vld [vmem:[#allocation16 + $0x368] sm:$0xff]
    %v3895 = vld [vmem:[#allocation16 + $0x370] sm:$0xff]
    %v3896 = vld [vmem:[#allocation16 + $0x378] sm:$0xff]
    %v3897 = vld [vmem:[#allocation16 + $0x380] sm:$0xff]
    %v3898 = vld [vmem:[#allocation16 + $0x388] sm:$0xff]
    %v3899 = vld [vmem:[#allocation16 + $0x390] sm:$0xff]
    %v3900 = vld [vmem:[#allocation16 + $0x398] sm:$0xff]
    %v3901 = vld [vmem:[#allocation16 + $0x3a0] sm:$0xff]
    %v3902 = vld [vmem:[#allocation16 + $0x3a8] sm:$0xff]
    %v3903 = vld [vmem:[#allocation16 + $0x3b0] sm:$0xff]
    %v3904 = vld [vmem:[#allocation16 + $0x3b8] sm:$0xff]
    %v3905 = vld [vmem:[#allocation16 + $0x3c0] sm:$0xff]
    %v3906 = vld [vmem:[#allocation16 + $0x3c8] sm:$0xff]
    %v3907 = vld [vmem:[#allocation16 + $0x3d0] sm:$0xff]
    %v3908 = vld [vmem:[#allocation16 + $0x3d8] sm:$0xff]
    %v3909 = vld [vmem:[#allocation16 + $0x3e0] sm:$0xff]
    %v3910 = vld [vmem:[#allocation16 + $0x3e8] sm:$0xff]
    %v3911 = vld [vmem:[#allocation16 + $0x3f0] sm:$0xff]
    %v3912 = vld [vmem:[#allocation16 + $0x3f8] sm:$0xff]
    %v3913 = vld [vmem:[#allocation17] sm:$0xf]
    %v3915 = vperm.slane %v3913, 0
    %v3916 = vperm.slane %v3913, 1
    %v3917 = vperm.slane %v3913, 2
    %v3918 = vperm.slane %v3913, 3
    %v4051 = vunpack.c.l.b16 %v3785
    %v4052 = vunpack.c.h.b16 %v3785
    %v4053 = vunpack.c.l.b16 %v3786
    %v4054 = vunpack.c.h.b16 %v3786
    %v4055 = vunpack.c.l.b16 %v3787
    %v4056 = vunpack.c.h.b16 %v3787
    %v4057 = vunpack.c.l.b16 %v3788
    %v4058 = vunpack.c.h.b16 %v3788
    %v4059 = vunpack.c.l.b16 %v3789
    %v4060 = vunpack.c.h.b16 %v3789
    %v4061 = vunpack.c.l.b16 %v3790
    %v4062 = vunpack.c.h.b16 %v3790
    %v4063 = vunpack.c.l.b16 %v3791
    %v4064 = vunpack.c.h.b16 %v3791
    %v4065 = vunpack.c.l.b16 %v3792
    %v4066 = vunpack.c.h.b16 %v3792
    %v4067 = vunpack.c.l.b16 %v3793
    %v4068 = vunpack.c.h.b16 %v3793
    %v4069 = vunpack.c.l.b16 %v3794
    %v4070 = vunpack.c.h.b16 %v3794
    %v4071 = vunpack.c.l.b16 %v3795
    %v4072 = vunpack.c.h.b16 %v3795
    %v4073 = vunpack.c.l.b16 %v3796
    %v4074 = vunpack.c.h.b16 %v3796
    %v4075 = vunpack.c.l.b16 %v3797
    %v4076 = vunpack.c.h.b16 %v3797
    %v4077 = vunpack.c.l.b16 %v3798
    %v4078 = vunpack.c.h.b16 %v3798
    %v4079 = vunpack.c.l.b16 %v3799
    %v4080 = vunpack.c.h.b16 %v3799
    %v4081 = vunpack.c.l.b16 %v3800
    %v4082 = vunpack.c.h.b16 %v3800
    %v4083 = vunpack.c.l.b16 %v3801
    %v4084 = vunpack.c.h.b16 %v3801
    %v4085 = vunpack.c.l.b16 %v3802
    %v4086 = vunpack.c.h.b16 %v3802
    %v4087 = vunpack.c.l.b16 %v3803
    %v4088 = vunpack.c.h.b16 %v3803
    %v4089 = vunpack.c.l.b16 %v3804
    %v4090 = vunpack.c.h.b16 %v3804
    %v4091 = vunpack.c.l.b16 %v3805
    %v4092 = vunpack.c.h.b16 %v3805
    %v4093 = vunpack.c.l.b16 %v3806
    %v4094 = vunpack.c.h.b16 %v3806
    %v4095 = vunpack.c.l.b16 %v3807
    %v4096 = vunpack.c.h.b16 %v3807
    %v4097 = vunpack.c.l.b16 %v3808
    %v4098 = vunpack.c.h.b16 %v3808
    %v4099 = vunpack.c.l.b16 %v3809
    %v4100 = vunpack.c.h.b16 %v3809
    %v4101 = vunpack.c.l.b16 %v3810
    %v4102 = vunpack.c.h.b16 %v3810
    %v4103 = vunpack.c.l.b16 %v3811
    %v4104 = vunpack.c.h.b16 %v3811
    %v4105 = vunpack.c.l.b16 %v3812
    %v4106 = vunpack.c.h.b16 %v3812
    %v4107 = vunpack.c.l.b16 %v3813
    %v4108 = vunpack.c.h.b16 %v3813
    %v4109 = vunpack.c.l.b16 %v3814
    %v4110 = vunpack.c.h.b16 %v3814
    %v4111 = vunpack.c.l.b16 %v3815
    %v4112 = vunpack.c.h.b16 %v3815
    %v4113 = vunpack.c.l.b16 %v3816
    %v4114 = vunpack.c.h.b16 %v3816
    %v4115 = vunpack.c.l.b16 %v3817
    %v4116 = vunpack.c.h.b16 %v3817
    %v4117 = vunpack.c.l.b16 %v3818
    %v4118 = vunpack.c.h.b16 %v3818
    %v4119 = vunpack.c.l.b16 %v3819
    %v4120 = vunpack.c.h.b16 %v3819
    %v4121 = vunpack.c.l.b16 %v3820
    %v4122 = vunpack.c.h.b16 %v3820
    %v4123 = vunpack.c.l.b16 %v3821
    %v4124 = vunpack.c.h.b16 %v3821
    %v4125 = vunpack.c.l.b16 %v3822
    %v4126 = vunpack.c.h.b16 %v3822
    %v4127 = vunpack.c.l.b16 %v3823
    %v4128 = vunpack.c.h.b16 %v3823
    %v4129 = vunpack.c.l.b16 %v3824
    %v4130 = vunpack.c.h.b16 %v3824
    %v4131 = vunpack.c.l.b16 %v3825
    %v4132 = vunpack.c.h.b16 %v3825
    %v4133 = vunpack.c.l.b16 %v3826
    %v4134 = vunpack.c.h.b16 %v3826
    %v4135 = vunpack.c.l.b16 %v3827
    %v4136 = vunpack.c.h.b16 %v3827
    %v4137 = vunpack.c.l.b16 %v3828
    %v4138 = vunpack.c.h.b16 %v3828
    %v4139 = vunpack.c.l.b16 %v3829
    %v4140 = vunpack.c.h.b16 %v3829
    %v4141 = vunpack.c.l.b16 %v3830
    %v4142 = vunpack.c.h.b16 %v3830
    %v4143 = vunpack.c.l.b16 %v3831
    %v4144 = vunpack.c.h.b16 %v3831
    %v4145 = vunpack.c.l.b16 %v3832
    %v4146 = vunpack.c.h.b16 %v3832
    %v4147 = vunpack.c.l.b16 %v3833
    %v4148 = vunpack.c.h.b16 %v3833
    %v4149 = vunpack.c.l.b16 %v3834
    %v4150 = vunpack.c.h.b16 %v3834
    %v4151 = vunpack.c.l.b16 %v3835
    %v4152 = vunpack.c.h.b16 %v3835
    %v4153 = vunpack.c.l.b16 %v3836
    %v4154 = vunpack.c.h.b16 %v3836
    %v4155 = vunpack.c.l.b16 %v3837
    %v4156 = vunpack.c.h.b16 %v3837
    %v4157 = vunpack.c.l.b16 %v3838
    %v4158 = vunpack.c.h.b16 %v3838
    %v4159 = vunpack.c.l.b16 %v3839
    %v4160 = vunpack.c.h.b16 %v3839
    %v4161 = vunpack.c.l.b16 %v3840
    %v4162 = vunpack.c.h.b16 %v3840
    %v4163 = vunpack.c.l.b16 %v3841
    %v4164 = vunpack.c.h.b16 %v3841
    %v4165 = vunpack.c.l.b16 %v3842
    %v4166 = vunpack.c.h.b16 %v3842
    %v4167 = vunpack.c.l.b16 %v3843
    %v4168 = vunpack.c.h.b16 %v3843
    %v4169 = vunpack.c.l.b16 %v3844
    %v4170 = vunpack.c.h.b16 %v3844
    %v4171 = vunpack.c.l.b16 %v3845
    %v4172 = vunpack.c.h.b16 %v3845
    %v4173 = vunpack.c.l.b16 %v3846
    %v4174 = vunpack.c.h.b16 %v3846
    %v4175 = vunpack.c.l.b16 %v3847
    %v4176 = vunpack.c.h.b16 %v3847
    %v4177 = vunpack.c.l.b16 %v3848
    %v4178 = vunpack.c.h.b16 %v3848
    %v4179 = vunpack.c.l.b16 %v3849
    %v4180 = vunpack.c.h.b16 %v3849
    %v4181 = vunpack.c.l.b16 %v3850
    %v4182 = vunpack.c.h.b16 %v3850
    %v4183 = vunpack.c.l.b16 %v3851
    %v4184 = vunpack.c.h.b16 %v3851
    %v4185 = vunpack.c.l.b16 %v3852
    %v4186 = vunpack.c.h.b16 %v3852
    %v4187 = vunpack.c.l.b16 %v3853
    %v4188 = vunpack.c.h.b16 %v3853
    %v4189 = vunpack.c.l.b16 %v3854
    %v4190 = vunpack.c.h.b16 %v3854
    %v4191 = vunpack.c.l.b16 %v3855
    %v4192 = vunpack.c.h.b16 %v3855
    %v4193 = vunpack.c.l.b16 %v3856
    %v4194 = vunpack.c.h.b16 %v3856
    %v4195 = vunpack.c.l.b16 %v3857
    %v4196 = vunpack.c.h.b16 %v3857
    %v4197 = vunpack.c.l.b16 %v3858
    %v4198 = vunpack.c.h.b16 %v3858
    %v4199 = vunpack.c.l.b16 %v3859
    %v4200 = vunpack.c.h.b16 %v3859
    %v4201 = vunpack.c.l.b16 %v3860
    %v4202 = vunpack.c.h.b16 %v3860
    %v4203 = vunpack.c.l.b16 %v3861
    %v4204 = vunpack.c.h.b16 %v3861
    %v4205 = vunpack.c.l.b16 %v3862
    %v4206 = vunpack.c.h.b16 %v3862
    %v4207 = vunpack.c.l.b16 %v3863
    %v4208 = vunpack.c.h.b16 %v3863
    %v4209 = vunpack.c.l.b16 %v3864
    %v4210 = vunpack.c.h.b16 %v3864
    %v4211 = vunpack.c.l.b16 %v3865
    %v4212 = vunpack.c.h.b16 %v3865
    %v4213 = vunpack.c.l.b16 %v3866
    %v4214 = vunpack.c.h.b16 %v3866
    %v4215 = vunpack.c.l.b16 %v3867
    %v4216 = vunpack.c.h.b16 %v3867
    %v4217 = vunpack.c.l.b16 %v3868
    %v4218 = vunpack.c.h.b16 %v3868
    %v4219 = vunpack.c.l.b16 %v3869
    %v4220 = vunpack.c.h.b16 %v3869
    %v4221 = vunpack.c.l.b16 %v3870
    %v4222 = vunpack.c.h.b16 %v3870
    %v4223 = vunpack.c.l.b16 %v3871
    %v4224 = vunpack.c.h.b16 %v3871
    %v4225 = vunpack.c.l.b16 %v3872
    %v4226 = vunpack.c.h.b16 %v3872
    %v4227 = vunpack.c.l.b16 %v3873
    %v4228 = vunpack.c.h.b16 %v3873
    %v4229 = vunpack.c.l.b16 %v3874
    %v4230 = vunpack.c.h.b16 %v3874
    %v4231 = vunpack.c.l.b16 %v3875
    %v4232 = vunpack.c.h.b16 %v3875
    %v4233 = vunpack.c.l.b16 %v3876
    %v4234 = vunpack.c.h.b16 %v3876
    %v4235 = vunpack.c.l.b16 %v3877
    %v4236 = vunpack.c.h.b16 %v3877
    %v4237 = vunpack.c.l.b16 %v3878
    %v4238 = vunpack.c.h.b16 %v3878
    %v4239 = vunpack.c.l.b16 %v3879
    %v4240 = vunpack.c.h.b16 %v3879
    %v4241 = vunpack.c.l.b16 %v3880
    %v4242 = vunpack.c.h.b16 %v3880
    %v4243 = vunpack.c.l.b16 %v3881
    %v4244 = vunpack.c.h.b16 %v3881
    %v4245 = vunpack.c.l.b16 %v3882
    %v4246 = vunpack.c.h.b16 %v3882
    %v4247 = vunpack.c.l.b16 %v3883
    %v4248 = vunpack.c.h.b16 %v3883
    %v4249 = vunpack.c.l.b16 %v3884
    %v4250 = vunpack.c.h.b16 %v3884
    %v4251 = vunpack.c.l.b16 %v3885
    %v4252 = vunpack.c.h.b16 %v3885
    %v4253 = vunpack.c.l.b16 %v3886
    %v4254 = vunpack.c.h.b16 %v3886
    %v4255 = vunpack.c.l.b16 %v3887
    %v4256 = vunpack.c.h.b16 %v3887
    %v4257 = vunpack.c.l.b16 %v3888
    %v4258 = vunpack.c.h.b16 %v3888
    %v4259 = vunpack.c.l.b16 %v3889
    %v4260 = vunpack.c.h.b16 %v3889
    %v4261 = vunpack.c.l.b16 %v3890
    %v4262 = vunpack.c.h.b16 %v3890
    %v4263 = vunpack.c.l.b16 %v3891
    %v4264 = vunpack.c.h.b16 %v3891
    %v4265 = vunpack.c.l.b16 %v3892
    %v4266 = vunpack.c.h.b16 %v3892
    %v4267 = vunpack.c.l.b16 %v3893
    %v4268 = vunpack.c.h.b16 %v3893
    %v4269 = vunpack.c.l.b16 %v3894
    %v4270 = vunpack.c.h.b16 %v3894
    %v4271 = vunpack.c.l.b16 %v3895
    %v4272 = vunpack.c.h.b16 %v3895
    %v4273 = vunpack.c.l.b16 %v3896
    %v4274 = vunpack.c.h.b16 %v3896
    %v4275 = vunpack.c.l.b16 %v3897
    %v4276 = vunpack.c.h.b16 %v3897
    %v4277 = vunpack.c.l.b16 %v3898
    %v4278 = vunpack.c.h.b16 %v3898
    %v4279 = vunpack.c.l.b16 %v3899
    %v4280 = vunpack.c.h.b16 %v3899
    %v4281 = vunpack.c.l.b16 %v3900
    %v4282 = vunpack.c.h.b16 %v3900
    %v4283 = vunpack.c.l.b16 %v3901
    %v4284 = vunpack.c.h.b16 %v3901
    %v4285 = vunpack.c.l.b16 %v3902
    %v4286 = vunpack.c.h.b16 %v3902
    %v4287 = vunpack.c.l.b16 %v3903
    %v4288 = vunpack.c.h.b16 %v3903
    %v4289 = vunpack.c.l.b16 %v3904
    %v4290 = vunpack.c.h.b16 %v3904
    %v4291 = vunpack.c.l.b16 %v3905
    %v4292 = vunpack.c.h.b16 %v3905
    %v4293 = vunpack.c.l.b16 %v3906
    %v4294 = vunpack.c.h.b16 %v3906
    %v4295 = vunpack.c.l.b16 %v3907
    %v4296 = vunpack.c.h.b16 %v3907
    %v4297 = vunpack.c.l.b16 %v3908
    %v4298 = vunpack.c.h.b16 %v3908
    %v4299 = vunpack.c.l.b16 %v3909
    %v4300 = vunpack.c.h.b16 %v3909
    %v4301 = vunpack.c.l.b16 %v3910
    %v4302 = vunpack.c.h.b16 %v3910
    %v4303 = vunpack.c.l.b16 %v3911
    %v4304 = vunpack.c.h.b16 %v3911
    %v4305 = vunpack.c.l.b16 %v3912
    %v4306 = vunpack.c.h.b16 %v3912
    %v4307 = vpack.c.b16 %v4055, %v4051
    %v4308 = vpack.c.b16 %v4056, %v4052
    %v4309 = vpack.c.b16 %v4057, %v4053
    %v4310 = vpack.c.b16 %v4058, %v4054
    %v4311 = vpack.c.b16 %v4063, %v4059
    %v4312 = vpack.c.b16 %v4064, %v4060
    %v4313 = vpack.c.b16 %v4065, %v4061
    %v4314 = vpack.c.b16 %v4066, %v4062
    %v4315 = vpack.c.b16 %v4071, %v4067
    %v4316 = vpack.c.b16 %v4072, %v4068
    %v4317 = vpack.c.b16 %v4073, %v4069
    %v4318 = vpack.c.b16 %v4074, %v4070
    %v4319 = vpack.c.b16 %v4079, %v4075
    %v4320 = vpack.c.b16 %v4080, %v4076
    %v4321 = vpack.c.b16 %v4081, %v4077
    %v4322 = vpack.c.b16 %v4082, %v4078
    %v4323 = vpack.c.b16 %v4087, %v4083
    %v4324 = vpack.c.b16 %v4088, %v4084
    %v4325 = vpack.c.b16 %v4089, %v4085
    %v4326 = vpack.c.b16 %v4090, %v4086
    %v4327 = vpack.c.b16 %v4095, %v4091
    %v4328 = vpack.c.b16 %v4096, %v4092
    %v4329 = vpack.c.b16 %v4097, %v4093
    %v4330 = vpack.c.b16 %v4098, %v4094
    %v4331 = vpack.c.b16 %v4103, %v4099
    %v4332 = vpack.c.b16 %v4104, %v4100
    %v4333 = vpack.c.b16 %v4105, %v4101
    %v4334 = vpack.c.b16 %v4106, %v4102
    %v4335 = vpack.c.b16 %v4111, %v4107
    %v4336 = vpack.c.b16 %v4112, %v4108
    %v4337 = vpack.c.b16 %v4113, %v4109
    %v4338 = vpack.c.b16 %v4114, %v4110
    %v4339 = vpack.c.b16 %v4119, %v4115
    %v4340 = vpack.c.b16 %v4120, %v4116
    %v4341 = vpack.c.b16 %v4121, %v4117
    %v4342 = vpack.c.b16 %v4122, %v4118
    %v4343 = vpack.c.b16 %v4127, %v4123
    %v4344 = vpack.c.b16 %v4128, %v4124
    %v4345 = vpack.c.b16 %v4129, %v4125
    %v4346 = vpack.c.b16 %v4130, %v4126
    %v4347 = vpack.c.b16 %v4135, %v4131
    %v4348 = vpack.c.b16 %v4136, %v4132
    %v4349 = vpack.c.b16 %v4137, %v4133
    %v4350 = vpack.c.b16 %v4138, %v4134
    %v4351 = vpack.c.b16 %v4143, %v4139
    %v4352 = vpack.c.b16 %v4144, %v4140
    %v4353 = vpack.c.b16 %v4145, %v4141
    %v4354 = vpack.c.b16 %v4146, %v4142
    %v4355 = vpack.c.b16 %v4151, %v4147
    %v4356 = vpack.c.b16 %v4152, %v4148
    %v4357 = vpack.c.b16 %v4153, %v4149
    %v4358 = vpack.c.b16 %v4154, %v4150
    %v4359 = vpack.c.b16 %v4159, %v4155
    %v4360 = vpack.c.b16 %v4160, %v4156
    %v4361 = vpack.c.b16 %v4161, %v4157
    %v4362 = vpack.c.b16 %v4162, %v4158
    %v4363 = vpack.c.b16 %v4167, %v4163
    %v4364 = vpack.c.b16 %v4168, %v4164
    %v4365 = vpack.c.b16 %v4169, %v4165
    %v4366 = vpack.c.b16 %v4170, %v4166
    %v4367 = vpack.c.b16 %v4175, %v4171
    %v4368 = vpack.c.b16 %v4176, %v4172
    %v4369 = vpack.c.b16 %v4177, %v4173
    %v4370 = vpack.c.b16 %v4178, %v4174
    %v4371 = vpack.c.b16 %v4183, %v4179
    %v4372 = vpack.c.b16 %v4184, %v4180
    %v4373 = vpack.c.b16 %v4185, %v4181
    %v4374 = vpack.c.b16 %v4186, %v4182
    %v4375 = vpack.c.b16 %v4191, %v4187
    %v4376 = vpack.c.b16 %v4192, %v4188
    %v4377 = vpack.c.b16 %v4193, %v4189
    %v4378 = vpack.c.b16 %v4194, %v4190
    %v4379 = vpack.c.b16 %v4199, %v4195
    %v4380 = vpack.c.b16 %v4200, %v4196
    %v4381 = vpack.c.b16 %v4201, %v4197
    %v4382 = vpack.c.b16 %v4202, %v4198
    %v4383 = vpack.c.b16 %v4207, %v4203
    %v4384 = vpack.c.b16 %v4208, %v4204
    %v4385 = vpack.c.b16 %v4209, %v4205
    %v4386 = vpack.c.b16 %v4210, %v4206
    %v4387 = vpack.c.b16 %v4215, %v4211
    %v4388 = vpack.c.b16 %v4216, %v4212
    %v4389 = vpack.c.b16 %v4217, %v4213
    %v4390 = vpack.c.b16 %v4218, %v4214
    %v4391 = vpack.c.b16 %v4223, %v4219
    %v4392 = vpack.c.b16 %v4224, %v4220
    %v4393 = vpack.c.b16 %v4225, %v4221
    %v4394 = vpack.c.b16 %v4226, %v4222
    %v4395 = vpack.c.b16 %v4231, %v4227
    %v4396 = vpack.c.b16 %v4232, %v4228
    %v4397 = vpack.c.b16 %v4233, %v4229
    %v4398 = vpack.c.b16 %v4234, %v4230
    %v4399 = vpack.c.b16 %v4239, %v4235
    %v4400 = vpack.c.b16 %v4240, %v4236
    %v4401 = vpack.c.b16 %v4241, %v4237
    %v4402 = vpack.c.b16 %v4242, %v4238
    %v4403 = vpack.c.b16 %v4247, %v4243
    %v4404 = vpack.c.b16 %v4248, %v4244
    %v4405 = vpack.c.b16 %v4249, %v4245
    %v4406 = vpack.c.b16 %v4250, %v4246
    %v4407 = vpack.c.b16 %v4255, %v4251
    %v4408 = vpack.c.b16 %v4256, %v4252
    %v4409 = vpack.c.b16 %v4257, %v4253
    %v4410 = vpack.c.b16 %v4258, %v4254
    %v4411 = vpack.c.b16 %v4263, %v4259
    %v4412 = vpack.c.b16 %v4264, %v4260
    %v4413 = vpack.c.b16 %v4265, %v4261
    %v4414 = vpack.c.b16 %v4266, %v4262
    %v4415 = vpack.c.b16 %v4271, %v4267
    %v4416 = vpack.c.b16 %v4272, %v4268
    %v4417 = vpack.c.b16 %v4273, %v4269
    %v4418 = vpack.c.b16 %v4274, %v4270
    %v4419 = vpack.c.b16 %v4279, %v4275
    %v4420 = vpack.c.b16 %v4280, %v4276
    %v4421 = vpack.c.b16 %v4281, %v4277
    %v4422 = vpack.c.b16 %v4282, %v4278
    %v4423 = vpack.c.b16 %v4287, %v4283
    %v4424 = vpack.c.b16 %v4288, %v4284
    %v4425 = vpack.c.b16 %v4289, %v4285
    %v4426 = vpack.c.b16 %v4290, %v4286
    %v4427 = vpack.c.b16 %v4295, %v4291
    %v4428 = vpack.c.b16 %v4296, %v4292
    %v4429 = vpack.c.b16 %v4297, %v4293
    %v4430 = vpack.c.b16 %v4298, %v4294
    %v4431 = vpack.c.b16 %v4303, %v4299
    %v4432 = vpack.c.b16 %v4304, %v4300
    %v4433 = vpack.c.b16 %v4305, %v4301
    %v4434 = vpack.c.b16 %v4306, %v4302
    %4563 = vmatpush.bf16.msra.mxu0 %v4335
    %4564 = vmatpush.bf16.msra.mxu0 %v4331
    %4565 = vmatpush.bf16.msra.mxu0 %v4327
    %4566 = vmatpush.bf16.msra.mxu0 %v4323
    %4567 = vmatpush.bf16.msra.mxu0 %v4319
    %4568 = vmatpush.bf16.msra.mxu0 %v4315
    %4569 = vmatpush.bf16.msra.mxu0 %v4311
    %4570 = vmatpush.bf16.msra.mxu0 %v4307
    %4571 = vmatmul.bf16.gmra.mxu0 %v3781
    %v4572 = vpop.f32.mrf.mxu0
    %v4573 = vadd.f32 %v3915, %v4572
    %v4574 = vpop.f32.mrf.mxu0
    %4575 = vdwg.mxu0
    %4576 = vmatpush.bf16.msra.mxu0 %v4367
    %4577 = vmatpush.bf16.msra.mxu0 %v4363
    %4578 = vmatpush.bf16.msra.mxu0 %v4359
    %4579 = vmatpush.bf16.msra.mxu0 %v4355
    %4580 = vmatpush.bf16.msra.mxu0 %v4351
    %4581 = vmatpush.bf16.msra.mxu0 %v4347
    %4582 = vmatpush.bf16.msra.mxu0 %v4343
    %4583 = vmatpush.bf16.msra.mxu0 %v4339
    %4584 = vmatmul.bf16.gmra.mxu0 %v3782
    %v4585 = vpop.f32.mrf.mxu0
    %v4586 = vadd.f32 %v4573, %v4585
    %v4587 = vpop.f32.mrf.mxu0
    %4588 = vdwg.mxu0
    %4589 = vmatpush.bf16.msra.mxu0 %v4399
    %4590 = vmatpush.bf16.msra.mxu0 %v4395
    %4591 = vmatpush.bf16.msra.mxu0 %v4391
    %4592 = vmatpush.bf16.msra.mxu0 %v4387
    %4593 = vmatpush.bf16.msra.mxu0 %v4383
    %4594 = vmatpush.bf16.msra.mxu0 %v4379
    %4595 = vmatpush.bf16.msra.mxu0 %v4375
    %4596 = vmatpush.bf16.msra.mxu0 %v4371
    %4597 = vmatmul.bf16.gmra.mxu0 %v3783
    %v4598 = vpop.f32.mrf.mxu0
    %v4599 = vadd.f32 %v4586, %v4598
    %v4600 = vpop.f32.mrf.mxu0
    %4601 = vdwg.mxu0
    %4602 = vmatpush.bf16.msra.mxu0 %v4431
    %4603 = vmatpush.bf16.msra.mxu0 %v4427
    %4604 = vmatpush.bf16.msra.mxu0 %v4423
    %4605 = vmatpush.bf16.msra.mxu0 %v4419
    %4606 = vmatpush.bf16.msra.mxu0 %v4415
    %4607 = vmatpush.bf16.msra.mxu0 %v4411
    %4608 = vmatpush.bf16.msra.mxu0 %v4407
    %4609 = vmatpush.bf16.msra.mxu0 %v4403
    %4610 = vmatmul.bf16.gmra.mxu0 %v3784
    %v4611 = vpop.f32.mrf.mxu0
    %v4612 = vadd.f32 %v4599, %v4611
    %v4613 = vpop.f32.mrf.mxu0
    %4614 = vdwg.mxu0
    %4615 = vmatpush.bf16.msra.mxu0 %v4336
    %4616 = vmatpush.bf16.msra.mxu0 %v4332
    %4617 = vmatpush.bf16.msra.mxu0 %v4328
    %4618 = vmatpush.bf16.msra.mxu0 %v4324
    %4619 = vmatpush.bf16.msra.mxu0 %v4320
    %4620 = vmatpush.bf16.msra.mxu0 %v4316
    %4621 = vmatpush.bf16.msra.mxu0 %v4312
    %4622 = vmatpush.bf16.msra.mxu0 %v4308
    %4623 = vmatmul.bf16.gmra.mxu0 %v3781
    %v4624 = vpop.f32.mrf.mxu0
    %v4625 = vadd.f32 %v3916, %v4624
    %v4626 = vpop.f32.mrf.mxu0
    %4627 = vdwg.mxu0
    %4628 = vmatpush.bf16.msra.mxu0 %v4368
    %4629 = vmatpush.bf16.msra.mxu0 %v4364
    %4630 = vmatpush.bf16.msra.mxu0 %v4360
    %4631 = vmatpush.bf16.msra.mxu0 %v4356
    %4632 = vmatpush.bf16.msra.mxu0 %v4352
    %4633 = vmatpush.bf16.msra.mxu0 %v4348
    %4634 = vmatpush.bf16.msra.mxu0 %v4344
    %4635 = vmatpush.bf16.msra.mxu0 %v4340
    %4636 = vmatmul.bf16.gmra.mxu0 %v3782
    %v4637 = vpop.f32.mrf.mxu0
    %v4638 = vadd.f32 %v4625, %v4637
    %v4639 = vpop.f32.mrf.mxu0
    %4640 = vdwg.mxu0
    %4641 = vmatpush.bf16.msra.mxu0 %v4400
    %4642 = vmatpush.bf16.msra.mxu0 %v4396
    %4643 = vmatpush.bf16.msra.mxu0 %v4392
    %4644 = vmatpush.bf16.msra.mxu0 %v4388
    %4645 = vmatpush.bf16.msra.mxu0 %v4384
    %4646 = vmatpush.bf16.msra.mxu0 %v4380
    %4647 = vmatpush.bf16.msra.mxu0 %v4376
    %4648 = vmatpush.bf16.msra.mxu0 %v4372
    %4649 = vmatmul.bf16.gmra.mxu0 %v3783
    %v4650 = vpop.f32.mrf.mxu0
    %v4651 = vadd.f32 %v4638, %v4650
    %v4652 = vpop.f32.mrf.mxu0
    %4653 = vdwg.mxu0
    %4654 = vmatpush.bf16.msra.mxu0 %v4432
    %4655 = vmatpush.bf16.msra.mxu0 %v4428
    %4656 = vmatpush.bf16.msra.mxu0 %v4424
    %4657 = vmatpush.bf16.msra.mxu0 %v4420
    %4658 = vmatpush.bf16.msra.mxu0 %v4416
    %4659 = vmatpush.bf16.msra.mxu0 %v4412
    %4660 = vmatpush.bf16.msra.mxu0 %v4408
    %4661 = vmatpush.bf16.msra.mxu0 %v4404
    %4662 = vmatmul.bf16.gmra.mxu0 %v3784
    %v4663 = vpop.f32.mrf.mxu0
    %v4664 = vadd.f32 %v4651, %v4663
    %v4665 = vpop.f32.mrf.mxu0
    %4666 = vdwg.mxu0
    %4667 = vmatpush.bf16.msra.mxu0 %v4337
    %4668 = vmatpush.bf16.msra.mxu0 %v4333
    %4669 = vmatpush.bf16.msra.mxu0 %v4329
    %4670 = vmatpush.bf16.msra.mxu0 %v4325
    %4671 = vmatpush.bf16.msra.mxu0 %v4321
    %4672 = vmatpush.bf16.msra.mxu0 %v4317
    %4673 = vmatpush.bf16.msra.mxu0 %v4313
    %4674 = vmatpush.bf16.msra.mxu0 %v4309
    %4675 = vmatmul.bf16.gmra.mxu0 %v3781
    %v4676 = vpop.f32.mrf.mxu0
    %v4677 = vadd.f32 %v3917, %v4676
    %v4678 = vpop.f32.mrf.mxu0
    %4679 = vdwg.mxu0
    %4680 = vmatpush.bf16.msra.mxu0 %v4369
    %4681 = vmatpush.bf16.msra.mxu0 %v4365
    %4682 = vmatpush.bf16.msra.mxu0 %v4361
    %4683 = vmatpush.bf16.msra.mxu0 %v4357
    %4684 = vmatpush.bf16.msra.mxu0 %v4353
    %4685 = vmatpush.bf16.msra.mxu0 %v4349
    %4686 = vmatpush.bf16.msra.mxu0 %v4345
    %4687 = vmatpush.bf16.msra.mxu0 %v4341
    %4688 = vmatmul.bf16.gmra.mxu0 %v3782
    %v4689 = vpop.f32.mrf.mxu0
    %v4690 = vadd.f32 %v4677, %v4689
    %v4691 = vpop.f32.mrf.mxu0
    %4692 = vdwg.mxu0
    %4693 = vmatpush.bf16.msra.mxu0 %v4401
    %4694 = vmatpush.bf16.msra.mxu0 %v4397
    %4695 = vmatpush.bf16.msra.mxu0 %v4393
    %4696 = vmatpush.bf16.msra.mxu0 %v4389
    %4697 = vmatpush.bf16.msra.mxu0 %v4385
    %4698 = vmatpush.bf16.msra.mxu0 %v4381
    %4699 = vmatpush.bf16.msra.mxu0 %v4377
    %4700 = vmatpush.bf16.msra.mxu0 %v4373
    %4701 = vmatmul.bf16.gmra.mxu0 %v3783
    %v4702 = vpop.f32.mrf.mxu0
    %v4703 = vadd.f32 %v4690, %v4702
    %v4704 = vpop.f32.mrf.mxu0
    %4705 = vdwg.mxu0
    %4706 = vmatpush.bf16.msra.mxu0 %v4433
    %4707 = vmatpush.bf16.msra.mxu0 %v4429
    %4708 = vmatpush.bf16.msra.mxu0 %v4425
    %4709 = vmatpush.bf16.msra.mxu0 %v4421
    %4710 = vmatpush.bf16.msra.mxu0 %v4417
    %4711 = vmatpush.bf16.msra.mxu0 %v4413
    %4712 = vmatpush.bf16.msra.mxu0 %v4409
    %4713 = vmatpush.bf16.msra.mxu0 %v4405
    %4714 = vmatmul.bf16.gmra.mxu0 %v3784
    %v4715 = vpop.f32.mrf.mxu0
    %v4716 = vadd.f32 %v4703, %v4715
    %v4717 = vpop.f32.mrf.mxu0
    %4718 = vdwg.mxu0
    %4719 = vmatpush.bf16.msra.mxu0 %v4338
    %4720 = vmatpush.bf16.msra.mxu0 %v4334
    %4721 = vmatpush.bf16.msra.mxu0 %v4330
    %4722 = vmatpush.bf16.msra.mxu0 %v4326
    %4723 = vmatpush.bf16.msra.mxu0 %v4322
    %4724 = vmatpush.bf16.msra.mxu0 %v4318
    %4725 = vmatpush.bf16.msra.mxu0 %v4314
    %4726 = vmatpush.bf16.msra.mxu0 %v4310
    %4727 = vmatmul.bf16.gmra.mxu0 %v3781
    %v4728 = vpop.f32.mrf.mxu0
    %v4729 = vadd.f32 %v3918, %v4728
    %v4730 = vpop.f32.mrf.mxu0
    %4731 = vdwg.mxu0
    %4732 = vmatpush.bf16.msra.mxu0 %v4370
    %4733 = vmatpush.bf16.msra.mxu0 %v4366
    %4734 = vmatpush.bf16.msra.mxu0 %v4362
    %4735 = vmatpush.bf16.msra.mxu0 %v4358
    %4736 = vmatpush.bf16.msra.mxu0 %v4354
    %4737 = vmatpush.bf16.msra.mxu0 %v4350
    %4738 = vmatpush.bf16.msra.mxu0 %v4346
    %4739 = vmatpush.bf16.msra.mxu0 %v4342
    %4740 = vmatmul.bf16.gmra.mxu0 %v3782
    %v4741 = vpop.f32.mrf.mxu0
    %v4742 = vadd.f32 %v4729, %v4741
    %v4743 = vpop.f32.mrf.mxu0
    %4744 = vdwg.mxu0
    %4745 = vmatpush.bf16.msra.mxu0 %v4402
    %4746 = vmatpush.bf16.msra.mxu0 %v4398
    %4747 = vmatpush.bf16.msra.mxu0 %v4394
    %4748 = vmatpush.bf16.msra.mxu0 %v4390
    %4749 = vmatpush.bf16.msra.mxu0 %v4386
    %4750 = vmatpush.bf16.msra.mxu0 %v4382
    %4751 = vmatpush.bf16.msra.mxu0 %v4378
    %4752 = vmatpush.bf16.msra.mxu0 %v4374
    %4753 = vmatmul.bf16.gmra.mxu0 %v3783
    %v4754 = vpop.f32.mrf.mxu0
    %v4755 = vadd.f32 %v4742, %v4754
    %v4756 = vpop.f32.mrf.mxu0
    %4757 = vdwg.mxu0
    %4758 = vmatpush.bf16.msra.mxu0 %v4434
    %4759 = vmatpush.bf16.msra.mxu0 %v4430
    %4760 = vmatpush.bf16.msra.mxu0 %v4426
    %4761 = vmatpush.bf16.msra.mxu0 %v4422
    %4762 = vmatpush.bf16.msra.mxu0 %v4418
    %4763 = vmatpush.bf16.msra.mxu0 %v4414
    %4764 = vmatpush.bf16.msra.mxu0 %v4410
    %4765 = vmatpush.bf16.msra.mxu0 %v4406
    %4766 = vmatmul.bf16.gmra.mxu0 %v3784
    %v4767 = vpop.f32.mrf.mxu0
    %v4768 = vadd.f32 %v4755, %v4767
    %v4769 = vpop.f32.mrf.mxu0
    %4770 = vdwg.mxu0
    %vm4771 = vcmp.gt.f32.partialorder %v4612, 0.0
    %vm4772 = vcmp.gt.f32.partialorder %v4664, 0.0
    %vm4773 = vcmp.gt.f32.partialorder %v4716, 0.0
    %vm4774 = vcmp.gt.f32.partialorder %v4768, 0.0
    %v4775 = vmul.f32 %v4612, 0.2
    %v4776 = vmul.f32 %v4664, 0.2
    %v4777 = vmul.f32 %v4716, 0.2
    %v4778 = vmul.f32 %v4768, 0.2
    %v4779 = vsel %vm4771, %v4612, %v4775
    %v4780 = vsel %vm4772, %v4664, %v4776
    %v4781 = vsel %vm4773, %v4716, %v4777
    %v4782 = vsel %vm4774, %v4768, %v4778
    %v4783 = vpack.c.bf16 %v4779, %v4779
    %v4784 = vpack.c.bf16 %v4780, %v4780
    %v4785 = vpack.c.bf16 %v4781, %v4781
    %v4786 = vpack.c.bf16 %v4782, %v4782
    %v4787 = vld [vmem:[#allocation19] sm:$0xff]
    %v4788 = vld [vmem:[#allocation19 + $0x8] sm:$0xff]
    %v4789 = vld [vmem:[#allocation19 + $0x10] sm:$0xff]
    %v4790 = vld [vmem:[#allocation19 + $0x18] sm:$0xff]
    %v4791 = vld [vmem:[#allocation19 + $0x20] sm:$0xff]
    %v4792 = vld [vmem:[#allocation19 + $0x28] sm:$0xff]
    %v4793 = vld [vmem:[#allocation19 + $0x30] sm:$0xff]
    %v4794 = vld [vmem:[#allocation19 + $0x38] sm:$0xff]
    %v4795 = vld [vmem:[#allocation19 + $0x40] sm:$0xff]
    %v4796 = vld [vmem:[#allocation19 + $0x48] sm:$0xff]
    %v4797 = vld [vmem:[#allocation19 + $0x50] sm:$0xff]
    %v4798 = vld [vmem:[#allocation19 + $0x58] sm:$0xff]
    %v4799 = vld [vmem:[#allocation19 + $0x60] sm:$0xff]
    %v4800 = vld [vmem:[#allocation19 + $0x68] sm:$0xff]
    %v4801 = vld [vmem:[#allocation19 + $0x70] sm:$0xff]
    %v4802 = vld [vmem:[#allocation19 + $0x78] sm:$0xff]
    %v4803 = vld [vmem:[#allocation19 + $0x80] sm:$0xff]
    %v4804 = vld [vmem:[#allocation19 + $0x88] sm:$0xff]
    %v4805 = vld [vmem:[#allocation19 + $0x90] sm:$0xff]
    %v4806 = vld [vmem:[#allocation19 + $0x98] sm:$0xff]
    %v4807 = vld [vmem:[#allocation19 + $0xa0] sm:$0xff]
    %v4808 = vld [vmem:[#allocation19 + $0xa8] sm:$0xff]
    %v4809 = vld [vmem:[#allocation19 + $0xb0] sm:$0xff]
    %v4810 = vld [vmem:[#allocation19 + $0xb8] sm:$0xff]
    %v4811 = vld [vmem:[#allocation19 + $0xc0] sm:$0xff]
    %v4812 = vld [vmem:[#allocation19 + $0xc8] sm:$0xff]
    %v4813 = vld [vmem:[#allocation19 + $0xd0] sm:$0xff]
    %v4814 = vld [vmem:[#allocation19 + $0xd8] sm:$0xff]
    %v4815 = vld [vmem:[#allocation19 + $0xe0] sm:$0xff]
    %v4816 = vld [vmem:[#allocation19 + $0xe8] sm:$0xff]
    %v4817 = vld [vmem:[#allocation19 + $0xf0] sm:$0xff]
    %v4818 = vld [vmem:[#allocation19 + $0xf8] sm:$0xff]
    %v4819 = vld [vmem:[#allocation19 + $0x100] sm:$0xff]
    %v4820 = vld [vmem:[#allocation19 + $0x108] sm:$0xff]
    %v4821 = vld [vmem:[#allocation19 + $0x110] sm:$0xff]
    %v4822 = vld [vmem:[#allocation19 + $0x118] sm:$0xff]
    %v4823 = vld [vmem:[#allocation19 + $0x120] sm:$0xff]
    %v4824 = vld [vmem:[#allocation19 + $0x128] sm:$0xff]
    %v4825 = vld [vmem:[#allocation19 + $0x130] sm:$0xff]
    %v4826 = vld [vmem:[#allocation19 + $0x138] sm:$0xff]
    %v4827 = vld [vmem:[#allocation19 + $0x140] sm:$0xff]
    %v4828 = vld [vmem:[#allocation19 + $0x148] sm:$0xff]
    %v4829 = vld [vmem:[#allocation19 + $0x150] sm:$0xff]
    %v4830 = vld [vmem:[#allocation19 + $0x158] sm:$0xff]
    %v4831 = vld [vmem:[#allocation19 + $0x160] sm:$0xff]
    %v4832 = vld [vmem:[#allocation19 + $0x168] sm:$0xff]
    %v4833 = vld [vmem:[#allocation19 + $0x170] sm:$0xff]
    %v4834 = vld [vmem:[#allocation19 + $0x178] sm:$0xff]
    %v4835 = vld [vmem:[#allocation19 + $0x180] sm:$0xff]
    %v4836 = vld [vmem:[#allocation19 + $0x188] sm:$0xff]
    %v4837 = vld [vmem:[#allocation19 + $0x190] sm:$0xff]
    %v4838 = vld [vmem:[#allocation19 + $0x198] sm:$0xff]
    %v4839 = vld [vmem:[#allocation19 + $0x1a0] sm:$0xff]
    %v4840 = vld [vmem:[#allocation19 + $0x1a8] sm:$0xff]
    %v4841 = vld [vmem:[#allocation19 + $0x1b0] sm:$0xff]
    %v4842 = vld [vmem:[#allocation19 + $0x1b8] sm:$0xff]
    %v4843 = vld [vmem:[#allocation19 + $0x1c0] sm:$0xff]
    %v4844 = vld [vmem:[#allocation19 + $0x1c8] sm:$0xff]
    %v4845 = vld [vmem:[#allocation19 + $0x1d0] sm:$0xff]
    %v4846 = vld [vmem:[#allocation19 + $0x1d8] sm:$0xff]
    %v4847 = vld [vmem:[#allocation19 + $0x1e0] sm:$0xff]
    %v4848 = vld [vmem:[#allocation19 + $0x1e8] sm:$0xff]
    %v4849 = vld [vmem:[#allocation19 + $0x1f0] sm:$0xff]
    %v4850 = vld [vmem:[#allocation19 + $0x1f8] sm:$0xff]
    %v4851 = vld [vmem:[#allocation19 + $0x200] sm:$0xff]
    %v4852 = vld [vmem:[#allocation19 + $0x208] sm:$0xff]
    %v4853 = vld [vmem:[#allocation19 + $0x210] sm:$0xff]
    %v4854 = vld [vmem:[#allocation19 + $0x218] sm:$0xff]
    %v4855 = vld [vmem:[#allocation19 + $0x220] sm:$0xff]
    %v4856 = vld [vmem:[#allocation19 + $0x228] sm:$0xff]
    %v4857 = vld [vmem:[#allocation19 + $0x230] sm:$0xff]
    %v4858 = vld [vmem:[#allocation19 + $0x238] sm:$0xff]
    %v4859 = vld [vmem:[#allocation19 + $0x240] sm:$0xff]
    %v4860 = vld [vmem:[#allocation19 + $0x248] sm:$0xff]
    %v4861 = vld [vmem:[#allocation19 + $0x250] sm:$0xff]
    %v4862 = vld [vmem:[#allocation19 + $0x258] sm:$0xff]
    %v4863 = vld [vmem:[#allocation19 + $0x260] sm:$0xff]
    %v4864 = vld [vmem:[#allocation19 + $0x268] sm:$0xff]
    %v4865 = vld [vmem:[#allocation19 + $0x270] sm:$0xff]
    %v4866 = vld [vmem:[#allocation19 + $0x278] sm:$0xff]
    %v4867 = vld [vmem:[#allocation19 + $0x280] sm:$0xff]
    %v4868 = vld [vmem:[#allocation19 + $0x288] sm:$0xff]
    %v4869 = vld [vmem:[#allocation19 + $0x290] sm:$0xff]
    %v4870 = vld [vmem:[#allocation19 + $0x298] sm:$0xff]
    %v4871 = vld [vmem:[#allocation19 + $0x2a0] sm:$0xff]
    %v4872 = vld [vmem:[#allocation19 + $0x2a8] sm:$0xff]
    %v4873 = vld [vmem:[#allocation19 + $0x2b0] sm:$0xff]
    %v4874 = vld [vmem:[#allocation19 + $0x2b8] sm:$0xff]
    %v4875 = vld [vmem:[#allocation19 + $0x2c0] sm:$0xff]
    %v4876 = vld [vmem:[#allocation19 + $0x2c8] sm:$0xff]
    %v4877 = vld [vmem:[#allocation19 + $0x2d0] sm:$0xff]
    %v4878 = vld [vmem:[#allocation19 + $0x2d8] sm:$0xff]
    %v4879 = vld [vmem:[#allocation19 + $0x2e0] sm:$0xff]
    %v4880 = vld [vmem:[#allocation19 + $0x2e8] sm:$0xff]
    %v4881 = vld [vmem:[#allocation19 + $0x2f0] sm:$0xff]
    %v4882 = vld [vmem:[#allocation19 + $0x2f8] sm:$0xff]
    %v4883 = vld [vmem:[#allocation19 + $0x300] sm:$0xff]
    %v4884 = vld [vmem:[#allocation19 + $0x308] sm:$0xff]
    %v4885 = vld [vmem:[#allocation19 + $0x310] sm:$0xff]
    %v4886 = vld [vmem:[#allocation19 + $0x318] sm:$0xff]
    %v4887 = vld [vmem:[#allocation19 + $0x320] sm:$0xff]
    %v4888 = vld [vmem:[#allocation19 + $0x328] sm:$0xff]
    %v4889 = vld [vmem:[#allocation19 + $0x330] sm:$0xff]
    %v4890 = vld [vmem:[#allocation19 + $0x338] sm:$0xff]
    %v4891 = vld [vmem:[#allocation19 + $0x340] sm:$0xff]
    %v4892 = vld [vmem:[#allocation19 + $0x348] sm:$0xff]
    %v4893 = vld [vmem:[#allocation19 + $0x350] sm:$0xff]
    %v4894 = vld [vmem:[#allocation19 + $0x358] sm:$0xff]
    %v4895 = vld [vmem:[#allocation19 + $0x360] sm:$0xff]
    %v4896 = vld [vmem:[#allocation19 + $0x368] sm:$0xff]
    %v4897 = vld [vmem:[#allocation19 + $0x370] sm:$0xff]
    %v4898 = vld [vmem:[#allocation19 + $0x378] sm:$0xff]
    %v4899 = vld [vmem:[#allocation19 + $0x380] sm:$0xff]
    %v4900 = vld [vmem:[#allocation19 + $0x388] sm:$0xff]
    %v4901 = vld [vmem:[#allocation19 + $0x390] sm:$0xff]
    %v4902 = vld [vmem:[#allocation19 + $0x398] sm:$0xff]
    %v4903 = vld [vmem:[#allocation19 + $0x3a0] sm:$0xff]
    %v4904 = vld [vmem:[#allocation19 + $0x3a8] sm:$0xff]
    %v4905 = vld [vmem:[#allocation19 + $0x3b0] sm:$0xff]
    %v4906 = vld [vmem:[#allocation19 + $0x3b8] sm:$0xff]
    %v4907 = vld [vmem:[#allocation19 + $0x3c0] sm:$0xff]
    %v4908 = vld [vmem:[#allocation19 + $0x3c8] sm:$0xff]
    %v4909 = vld [vmem:[#allocation19 + $0x3d0] sm:$0xff]
    %v4910 = vld [vmem:[#allocation19 + $0x3d8] sm:$0xff]
    %v4911 = vld [vmem:[#allocation19 + $0x3e0] sm:$0xff]
    %v4912 = vld [vmem:[#allocation19 + $0x3e8] sm:$0xff]
    %v4913 = vld [vmem:[#allocation19 + $0x3f0] sm:$0xff]
    %v4914 = vld [vmem:[#allocation19 + $0x3f8] sm:$0xff]
    %v4915 = vld [vmem:[#allocation19 + $0x400] sm:$0xff]
    %v4916 = vld [vmem:[#allocation19 + $0x408] sm:$0xff]
    %v4917 = vld [vmem:[#allocation19 + $0x410] sm:$0xff]
    %v4918 = vld [vmem:[#allocation19 + $0x418] sm:$0xff]
    %v4919 = vld [vmem:[#allocation19 + $0x420] sm:$0xff]
    %v4920 = vld [vmem:[#allocation19 + $0x428] sm:$0xff]
    %v4921 = vld [vmem:[#allocation19 + $0x430] sm:$0xff]
    %v4922 = vld [vmem:[#allocation19 + $0x438] sm:$0xff]
    %v4923 = vld [vmem:[#allocation19 + $0x440] sm:$0xff]
    %v4924 = vld [vmem:[#allocation19 + $0x448] sm:$0xff]
    %v4925 = vld [vmem:[#allocation19 + $0x450] sm:$0xff]
    %v4926 = vld [vmem:[#allocation19 + $0x458] sm:$0xff]
    %v4927 = vld [vmem:[#allocation19 + $0x460] sm:$0xff]
    %v4928 = vld [vmem:[#allocation19 + $0x468] sm:$0xff]
    %v4929 = vld [vmem:[#allocation19 + $0x470] sm:$0xff]
    %v4930 = vld [vmem:[#allocation19 + $0x478] sm:$0xff]
    %v4931 = vld [vmem:[#allocation19 + $0x480] sm:$0xff]
    %v4932 = vld [vmem:[#allocation19 + $0x488] sm:$0xff]
    %v4933 = vld [vmem:[#allocation19 + $0x490] sm:$0xff]
    %v4934 = vld [vmem:[#allocation19 + $0x498] sm:$0xff]
    %v4935 = vld [vmem:[#allocation19 + $0x4a0] sm:$0xff]
    %v4936 = vld [vmem:[#allocation19 + $0x4a8] sm:$0xff]
    %v4937 = vld [vmem:[#allocation19 + $0x4b0] sm:$0xff]
    %v4938 = vld [vmem:[#allocation19 + $0x4b8] sm:$0xff]
    %v4939 = vld [vmem:[#allocation19 + $0x4c0] sm:$0xff]
    %v4940 = vld [vmem:[#allocation19 + $0x4c8] sm:$0xff]
    %v4941 = vld [vmem:[#allocation19 + $0x4d0] sm:$0xff]
    %v4942 = vld [vmem:[#allocation19 + $0x4d8] sm:$0xff]
    %v4943 = vld [vmem:[#allocation19 + $0x4e0] sm:$0xff]
    %v4944 = vld [vmem:[#allocation19 + $0x4e8] sm:$0xff]
    %v4945 = vld [vmem:[#allocation19 + $0x4f0] sm:$0xff]
    %v4946 = vld [vmem:[#allocation19 + $0x4f8] sm:$0xff]
    %v4947 = vld [vmem:[#allocation19 + $0x500] sm:$0xff]
    %v4948 = vld [vmem:[#allocation19 + $0x508] sm:$0xff]
    %v4949 = vld [vmem:[#allocation19 + $0x510] sm:$0xff]
    %v4950 = vld [vmem:[#allocation19 + $0x518] sm:$0xff]
    %v4951 = vld [vmem:[#allocation19 + $0x520] sm:$0xff]
    %v4952 = vld [vmem:[#allocation19 + $0x528] sm:$0xff]
    %v4953 = vld [vmem:[#allocation19 + $0x530] sm:$0xff]
    %v4954 = vld [vmem:[#allocation19 + $0x538] sm:$0xff]
    %v4955 = vld [vmem:[#allocation19 + $0x540] sm:$0xff]
    %v4956 = vld [vmem:[#allocation19 + $0x548] sm:$0xff]
    %v4957 = vld [vmem:[#allocation19 + $0x550] sm:$0xff]
    %v4958 = vld [vmem:[#allocation19 + $0x558] sm:$0xff]
    %v4959 = vld [vmem:[#allocation19 + $0x560] sm:$0xff]
    %v4960 = vld [vmem:[#allocation19 + $0x568] sm:$0xff]
    %v4961 = vld [vmem:[#allocation19 + $0x570] sm:$0xff]
    %v4962 = vld [vmem:[#allocation19 + $0x578] sm:$0xff]
    %v4963 = vld [vmem:[#allocation19 + $0x580] sm:$0xff]
    %v4964 = vld [vmem:[#allocation19 + $0x588] sm:$0xff]
    %v4965 = vld [vmem:[#allocation19 + $0x590] sm:$0xff]
    %v4966 = vld [vmem:[#allocation19 + $0x598] sm:$0xff]
    %v4967 = vld [vmem:[#allocation19 + $0x5a0] sm:$0xff]
    %v4968 = vld [vmem:[#allocation19 + $0x5a8] sm:$0xff]
    %v4969 = vld [vmem:[#allocation19 + $0x5b0] sm:$0xff]
    %v4970 = vld [vmem:[#allocation19 + $0x5b8] sm:$0xff]
    %v4971 = vld [vmem:[#allocation19 + $0x5c0] sm:$0xff]
    %v4972 = vld [vmem:[#allocation19 + $0x5c8] sm:$0xff]
    %v4973 = vld [vmem:[#allocation19 + $0x5d0] sm:$0xff]
    %v4974 = vld [vmem:[#allocation19 + $0x5d8] sm:$0xff]
    %v4975 = vld [vmem:[#allocation19 + $0x5e0] sm:$0xff]
    %v4976 = vld [vmem:[#allocation19 + $0x5e8] sm:$0xff]
    %v4977 = vld [vmem:[#allocation19 + $0x5f0] sm:$0xff]
    %v4978 = vld [vmem:[#allocation19 + $0x5f8] sm:$0xff]
    %v4979 = vld [vmem:[#allocation19 + $0x600] sm:$0xff]
    %v4980 = vld [vmem:[#allocation19 + $0x608] sm:$0xff]
    %v4981 = vld [vmem:[#allocation19 + $0x610] sm:$0xff]
    %v4982 = vld [vmem:[#allocation19 + $0x618] sm:$0xff]
    %v4983 = vld [vmem:[#allocation19 + $0x620] sm:$0xff]
    %v4984 = vld [vmem:[#allocation19 + $0x628] sm:$0xff]
    %v4985 = vld [vmem:[#allocation19 + $0x630] sm:$0xff]
    %v4986 = vld [vmem:[#allocation19 + $0x638] sm:$0xff]
    %v4987 = vld [vmem:[#allocation19 + $0x640] sm:$0xff]
    %v4988 = vld [vmem:[#allocation19 + $0x648] sm:$0xff]
    %v4989 = vld [vmem:[#allocation19 + $0x650] sm:$0xff]
    %v4990 = vld [vmem:[#allocation19 + $0x658] sm:$0xff]
    %v4991 = vld [vmem:[#allocation19 + $0x660] sm:$0xff]
    %v4992 = vld [vmem:[#allocation19 + $0x668] sm:$0xff]
    %v4993 = vld [vmem:[#allocation19 + $0x670] sm:$0xff]
    %v4994 = vld [vmem:[#allocation19 + $0x678] sm:$0xff]
    %v4995 = vld [vmem:[#allocation19 + $0x680] sm:$0xff]
    %v4996 = vld [vmem:[#allocation19 + $0x688] sm:$0xff]
    %v4997 = vld [vmem:[#allocation19 + $0x690] sm:$0xff]
    %v4998 = vld [vmem:[#allocation19 + $0x698] sm:$0xff]
    %v4999 = vld [vmem:[#allocation19 + $0x6a0] sm:$0xff]
    %v5000 = vld [vmem:[#allocation19 + $0x6a8] sm:$0xff]
    %v5001 = vld [vmem:[#allocation19 + $0x6b0] sm:$0xff]
    %v5002 = vld [vmem:[#allocation19 + $0x6b8] sm:$0xff]
    %v5003 = vld [vmem:[#allocation19 + $0x6c0] sm:$0xff]
    %v5004 = vld [vmem:[#allocation19 + $0x6c8] sm:$0xff]
    %v5005 = vld [vmem:[#allocation19 + $0x6d0] sm:$0xff]
    %v5006 = vld [vmem:[#allocation19 + $0x6d8] sm:$0xff]
    %v5007 = vld [vmem:[#allocation19 + $0x6e0] sm:$0xff]
    %v5008 = vld [vmem:[#allocation19 + $0x6e8] sm:$0xff]
    %v5009 = vld [vmem:[#allocation19 + $0x6f0] sm:$0xff]
    %v5010 = vld [vmem:[#allocation19 + $0x6f8] sm:$0xff]
    %v5011 = vld [vmem:[#allocation19 + $0x700] sm:$0xff]
    %v5012 = vld [vmem:[#allocation19 + $0x708] sm:$0xff]
    %v5013 = vld [vmem:[#allocation19 + $0x710] sm:$0xff]
    %v5014 = vld [vmem:[#allocation19 + $0x718] sm:$0xff]
    %v5015 = vld [vmem:[#allocation19 + $0x720] sm:$0xff]
    %v5016 = vld [vmem:[#allocation19 + $0x728] sm:$0xff]
    %v5017 = vld [vmem:[#allocation19 + $0x730] sm:$0xff]
    %v5018 = vld [vmem:[#allocation19 + $0x738] sm:$0xff]
    %v5019 = vld [vmem:[#allocation19 + $0x740] sm:$0xff]
    %v5020 = vld [vmem:[#allocation19 + $0x748] sm:$0xff]
    %v5021 = vld [vmem:[#allocation19 + $0x750] sm:$0xff]
    %v5022 = vld [vmem:[#allocation19 + $0x758] sm:$0xff]
    %v5023 = vld [vmem:[#allocation19 + $0x760] sm:$0xff]
    %v5024 = vld [vmem:[#allocation19 + $0x768] sm:$0xff]
    %v5025 = vld [vmem:[#allocation19 + $0x770] sm:$0xff]
    %v5026 = vld [vmem:[#allocation19 + $0x778] sm:$0xff]
    %v5027 = vld [vmem:[#allocation19 + $0x780] sm:$0xff]
    %v5028 = vld [vmem:[#allocation19 + $0x788] sm:$0xff]
    %v5029 = vld [vmem:[#allocation19 + $0x790] sm:$0xff]
    %v5030 = vld [vmem:[#allocation19 + $0x798] sm:$0xff]
    %v5031 = vld [vmem:[#allocation19 + $0x7a0] sm:$0xff]
    %v5032 = vld [vmem:[#allocation19 + $0x7a8] sm:$0xff]
    %v5033 = vld [vmem:[#allocation19 + $0x7b0] sm:$0xff]
    %v5034 = vld [vmem:[#allocation19 + $0x7b8] sm:$0xff]
    %v5035 = vld [vmem:[#allocation19 + $0x7c0] sm:$0xff]
    %v5036 = vld [vmem:[#allocation19 + $0x7c8] sm:$0xff]
    %v5037 = vld [vmem:[#allocation19 + $0x7d0] sm:$0xff]
    %v5038 = vld [vmem:[#allocation19 + $0x7d8] sm:$0xff]
    %v5039 = vld [vmem:[#allocation19 + $0x7e0] sm:$0xff]
    %v5040 = vld [vmem:[#allocation19 + $0x7e8] sm:$0xff]
    %v5041 = vld [vmem:[#allocation19 + $0x7f0] sm:$0xff]
    %v5042 = vld [vmem:[#allocation19 + $0x7f8] sm:$0xff]
    %v5043 = vld [vmem:[%s12] sm:$0xff]
    %v5045 = vperm.slane %v5043, 0
    %v5046 = vperm.slane %v5043, 1
    %v5047 = vperm.slane %v5043, 2
    %v5048 = vperm.slane %v5043, 3
    %v5049 = vperm.slane %v5043, 4
    %v5050 = vperm.slane %v5043, 5
    %v5051 = vperm.slane %v5043, 6
    %v5052 = vperm.slane %v5043, 7
    %v5317 = vunpack.c.l.b16 %v4787
    %v5318 = vunpack.c.h.b16 %v4787
    %v5319 = vunpack.c.l.b16 %v4788
    %v5320 = vunpack.c.h.b16 %v4788
    %v5321 = vunpack.c.l.b16 %v4789
    %v5322 = vunpack.c.h.b16 %v4789
    %v5323 = vunpack.c.l.b16 %v4790
    %v5324 = vunpack.c.h.b16 %v4790
    %v5325 = vunpack.c.l.b16 %v4791
    %v5326 = vunpack.c.h.b16 %v4791
    %v5327 = vunpack.c.l.b16 %v4792
    %v5328 = vunpack.c.h.b16 %v4792
    %v5329 = vunpack.c.l.b16 %v4793
    %v5330 = vunpack.c.h.b16 %v4793
    %v5331 = vunpack.c.l.b16 %v4794
    %v5332 = vunpack.c.h.b16 %v4794
    %v5333 = vunpack.c.l.b16 %v4795
    %v5334 = vunpack.c.h.b16 %v4795
    %v5335 = vunpack.c.l.b16 %v4796
    %v5336 = vunpack.c.h.b16 %v4796
    %v5337 = vunpack.c.l.b16 %v4797
    %v5338 = vunpack.c.h.b16 %v4797
    %v5339 = vunpack.c.l.b16 %v4798
    %v5340 = vunpack.c.h.b16 %v4798
    %v5341 = vunpack.c.l.b16 %v4799
    %v5342 = vunpack.c.h.b16 %v4799
    %v5343 = vunpack.c.l.b16 %v4800
    %v5344 = vunpack.c.h.b16 %v4800
    %v5345 = vunpack.c.l.b16 %v4801
    %v5346 = vunpack.c.h.b16 %v4801
    %v5347 = vunpack.c.l.b16 %v4802
    %v5348 = vunpack.c.h.b16 %v4802
    %v5349 = vunpack.c.l.b16 %v4803
    %v5350 = vunpack.c.h.b16 %v4803
    %v5351 = vunpack.c.l.b16 %v4804
    %v5352 = vunpack.c.h.b16 %v4804
    %v5353 = vunpack.c.l.b16 %v4805
    %v5354 = vunpack.c.h.b16 %v4805
    %v5355 = vunpack.c.l.b16 %v4806
    %v5356 = vunpack.c.h.b16 %v4806
    %v5357 = vunpack.c.l.b16 %v4807
    %v5358 = vunpack.c.h.b16 %v4807
    %v5359 = vunpack.c.l.b16 %v4808
    %v5360 = vunpack.c.h.b16 %v4808
    %v5361 = vunpack.c.l.b16 %v4809
    %v5362 = vunpack.c.h.b16 %v4809
    %v5363 = vunpack.c.l.b16 %v4810
    %v5364 = vunpack.c.h.b16 %v4810
    %v5365 = vunpack.c.l.b16 %v4811
    %v5366 = vunpack.c.h.b16 %v4811
    %v5367 = vunpack.c.l.b16 %v4812
    %v5368 = vunpack.c.h.b16 %v4812
    %v5369 = vunpack.c.l.b16 %v4813
    %v5370 = vunpack.c.h.b16 %v4813
    %v5371 = vunpack.c.l.b16 %v4814
    %v5372 = vunpack.c.h.b16 %v4814
    %v5373 = vunpack.c.l.b16 %v4815
    %v5374 = vunpack.c.h.b16 %v4815
    %v5375 = vunpack.c.l.b16 %v4816
    %v5376 = vunpack.c.h.b16 %v4816
    %v5377 = vunpack.c.l.b16 %v4817
    %v5378 = vunpack.c.h.b16 %v4817
    %v5379 = vunpack.c.l.b16 %v4818
    %v5380 = vunpack.c.h.b16 %v4818
    %v5381 = vunpack.c.l.b16 %v4819
    %v5382 = vunpack.c.h.b16 %v4819
    %v5383 = vunpack.c.l.b16 %v4820
    %v5384 = vunpack.c.h.b16 %v4820
    %v5385 = vunpack.c.l.b16 %v4821
    %v5386 = vunpack.c.h.b16 %v4821
    %v5387 = vunpack.c.l.b16 %v4822
    %v5388 = vunpack.c.h.b16 %v4822
    %v5389 = vunpack.c.l.b16 %v4823
    %v5390 = vunpack.c.h.b16 %v4823
    %v5391 = vunpack.c.l.b16 %v4824
    %v5392 = vunpack.c.h.b16 %v4824
    %v5393 = vunpack.c.l.b16 %v4825
    %v5394 = vunpack.c.h.b16 %v4825
    %v5395 = vunpack.c.l.b16 %v4826
    %v5396 = vunpack.c.h.b16 %v4826
    %v5397 = vunpack.c.l.b16 %v4827
    %v5398 = vunpack.c.h.b16 %v4827
    %v5399 = vunpack.c.l.b16 %v4828
    %v5400 = vunpack.c.h.b16 %v4828
    %v5401 = vunpack.c.l.b16 %v4829
    %v5402 = vunpack.c.h.b16 %v4829
    %v5403 = vunpack.c.l.b16 %v4830
    %v5404 = vunpack.c.h.b16 %v4830
    %v5405 = vunpack.c.l.b16 %v4831
    %v5406 = vunpack.c.h.b16 %v4831
    %v5407 = vunpack.c.l.b16 %v4832
    %v5408 = vunpack.c.h.b16 %v4832
    %v5409 = vunpack.c.l.b16 %v4833
    %v5410 = vunpack.c.h.b16 %v4833
    %v5411 = vunpack.c.l.b16 %v4834
    %v5412 = vunpack.c.h.b16 %v4834
    %v5413 = vunpack.c.l.b16 %v4835
    %v5414 = vunpack.c.h.b16 %v4835
    %v5415 = vunpack.c.l.b16 %v4836
    %v5416 = vunpack.c.h.b16 %v4836
    %v5417 = vunpack.c.l.b16 %v4837
    %v5418 = vunpack.c.h.b16 %v4837
    %v5419 = vunpack.c.l.b16 %v4838
    %v5420 = vunpack.c.h.b16 %v4838
    %v5421 = vunpack.c.l.b16 %v4839
    %v5422 = vunpack.c.h.b16 %v4839
    %v5423 = vunpack.c.l.b16 %v4840
    %v5424 = vunpack.c.h.b16 %v4840
    %v5425 = vunpack.c.l.b16 %v4841
    %v5426 = vunpack.c.h.b16 %v4841
    %v5427 = vunpack.c.l.b16 %v4842
    %v5428 = vunpack.c.h.b16 %v4842
    %v5429 = vunpack.c.l.b16 %v4843
    %v5430 = vunpack.c.h.b16 %v4843
    %v5431 = vunpack.c.l.b16 %v4844
    %v5432 = vunpack.c.h.b16 %v4844
    %v5433 = vunpack.c.l.b16 %v4845
    %v5434 = vunpack.c.h.b16 %v4845
    %v5435 = vunpack.c.l.b16 %v4846
    %v5436 = vunpack.c.h.b16 %v4846
    %v5437 = vunpack.c.l.b16 %v4847
    %v5438 = vunpack.c.h.b16 %v4847
    %v5439 = vunpack.c.l.b16 %v4848
    %v5440 = vunpack.c.h.b16 %v4848
    %v5441 = vunpack.c.l.b16 %v4849
    %v5442 = vunpack.c.h.b16 %v4849
    %v5443 = vunpack.c.l.b16 %v4850
    %v5444 = vunpack.c.h.b16 %v4850
    %v5445 = vunpack.c.l.b16 %v4851
    %v5446 = vunpack.c.h.b16 %v4851
    %v5447 = vunpack.c.l.b16 %v4852
    %v5448 = vunpack.c.h.b16 %v4852
    %v5449 = vunpack.c.l.b16 %v4853
    %v5450 = vunpack.c.h.b16 %v4853
    %v5451 = vunpack.c.l.b16 %v4854
    %v5452 = vunpack.c.h.b16 %v4854
    %v5453 = vunpack.c.l.b16 %v4855
    %v5454 = vunpack.c.h.b16 %v4855
    %v5455 = vunpack.c.l.b16 %v4856
    %v5456 = vunpack.c.h.b16 %v4856
    %v5457 = vunpack.c.l.b16 %v4857
    %v5458 = vunpack.c.h.b16 %v4857
    %v5459 = vunpack.c.l.b16 %v4858
    %v5460 = vunpack.c.h.b16 %v4858
    %v5461 = vunpack.c.l.b16 %v4859
    %v5462 = vunpack.c.h.b16 %v4859
    %v5463 = vunpack.c.l.b16 %v4860
    %v5464 = vunpack.c.h.b16 %v4860
    %v5465 = vunpack.c.l.b16 %v4861
    %v5466 = vunpack.c.h.b16 %v4861
    %v5467 = vunpack.c.l.b16 %v4862
    %v5468 = vunpack.c.h.b16 %v4862
    %v5469 = vunpack.c.l.b16 %v4863
    %v5470 = vunpack.c.h.b16 %v4863
    %v5471 = vunpack.c.l.b16 %v4864
    %v5472 = vunpack.c.h.b16 %v4864
    %v5473 = vunpack.c.l.b16 %v4865
    %v5474 = vunpack.c.h.b16 %v4865
    %v5475 = vunpack.c.l.b16 %v4866
    %v5476 = vunpack.c.h.b16 %v4866
    %v5477 = vunpack.c.l.b16 %v4867
    %v5478 = vunpack.c.h.b16 %v4867
    %v5479 = vunpack.c.l.b16 %v4868
    %v5480 = vunpack.c.h.b16 %v4868
    %v5481 = vunpack.c.l.b16 %v4869
    %v5482 = vunpack.c.h.b16 %v4869
    %v5483 = vunpack.c.l.b16 %v4870
    %v5484 = vunpack.c.h.b16 %v4870
    %v5485 = vunpack.c.l.b16 %v4871
    %v5486 = vunpack.c.h.b16 %v4871
    %v5487 = vunpack.c.l.b16 %v4872
    %v5488 = vunpack.c.h.b16 %v4872
    %v5489 = vunpack.c.l.b16 %v4873
    %v5490 = vunpack.c.h.b16 %v4873
    %v5491 = vunpack.c.l.b16 %v4874
    %v5492 = vunpack.c.h.b16 %v4874
    %v5493 = vunpack.c.l.b16 %v4875
    %v5494 = vunpack.c.h.b16 %v4875
    %v5495 = vunpack.c.l.b16 %v4876
    %v5496 = vunpack.c.h.b16 %v4876
    %v5497 = vunpack.c.l.b16 %v4877
    %v5498 = vunpack.c.h.b16 %v4877
    %v5499 = vunpack.c.l.b16 %v4878
    %v5500 = vunpack.c.h.b16 %v4878
    %v5501 = vunpack.c.l.b16 %v4879
    %v5502 = vunpack.c.h.b16 %v4879
    %v5503 = vunpack.c.l.b16 %v4880
    %v5504 = vunpack.c.h.b16 %v4880
    %v5505 = vunpack.c.l.b16 %v4881
    %v5506 = vunpack.c.h.b16 %v4881
    %v5507 = vunpack.c.l.b16 %v4882
    %v5508 = vunpack.c.h.b16 %v4882
    %v5509 = vunpack.c.l.b16 %v4883
    %v5510 = vunpack.c.h.b16 %v4883
    %v5511 = vunpack.c.l.b16 %v4884
    %v5512 = vunpack.c.h.b16 %v4884
    %v5513 = vunpack.c.l.b16 %v4885
    %v5514 = vunpack.c.h.b16 %v4885
    %v5515 = vunpack.c.l.b16 %v4886
    %v5516 = vunpack.c.h.b16 %v4886
    %v5517 = vunpack.c.l.b16 %v4887
    %v5518 = vunpack.c.h.b16 %v4887
    %v5519 = vunpack.c.l.b16 %v4888
    %v5520 = vunpack.c.h.b16 %v4888
    %v5521 = vunpack.c.l.b16 %v4889
    %v5522 = vunpack.c.h.b16 %v4889
    %v5523 = vunpack.c.l.b16 %v4890
    %v5524 = vunpack.c.h.b16 %v4890
    %v5525 = vunpack.c.l.b16 %v4891
    %v5526 = vunpack.c.h.b16 %v4891
    %v5527 = vunpack.c.l.b16 %v4892
    %v5528 = vunpack.c.h.b16 %v4892
    %v5529 = vunpack.c.l.b16 %v4893
    %v5530 = vunpack.c.h.b16 %v4893
    %v5531 = vunpack.c.l.b16 %v4894
    %v5532 = vunpack.c.h.b16 %v4894
    %v5533 = vunpack.c.l.b16 %v4895
    %v5534 = vunpack.c.h.b16 %v4895
    %v5535 = vunpack.c.l.b16 %v4896
    %v5536 = vunpack.c.h.b16 %v4896
    %v5537 = vunpack.c.l.b16 %v4897
    %v5538 = vunpack.c.h.b16 %v4897
    %v5539 = vunpack.c.l.b16 %v4898
    %v5540 = vunpack.c.h.b16 %v4898
    %v5541 = vunpack.c.l.b16 %v4899
    %v5542 = vunpack.c.h.b16 %v4899
    %v5543 = vunpack.c.l.b16 %v4900
    %v5544 = vunpack.c.h.b16 %v4900
    %v5545 = vunpack.c.l.b16 %v4901
    %v5546 = vunpack.c.h.b16 %v4901
    %v5547 = vunpack.c.l.b16 %v4902
    %v5548 = vunpack.c.h.b16 %v4902
    %v5549 = vunpack.c.l.b16 %v4903
    %v5550 = vunpack.c.h.b16 %v4903
    %v5551 = vunpack.c.l.b16 %v4904
    %v5552 = vunpack.c.h.b16 %v4904
    %v5553 = vunpack.c.l.b16 %v4905
    %v5554 = vunpack.c.h.b16 %v4905
    %v5555 = vunpack.c.l.b16 %v4906
    %v5556 = vunpack.c.h.b16 %v4906
    %v5557 = vunpack.c.l.b16 %v4907
    %v5558 = vunpack.c.h.b16 %v4907
    %v5559 = vunpack.c.l.b16 %v4908
    %v5560 = vunpack.c.h.b16 %v4908
    %v5561 = vunpack.c.l.b16 %v4909
    %v5562 = vunpack.c.h.b16 %v4909
    %v5563 = vunpack.c.l.b16 %v4910
    %v5564 = vunpack.c.h.b16 %v4910
    %v5565 = vunpack.c.l.b16 %v4911
    %v5566 = vunpack.c.h.b16 %v4911
    %v5567 = vunpack.c.l.b16 %v4912
    %v5568 = vunpack.c.h.b16 %v4912
    %v5569 = vunpack.c.l.b16 %v4913
    %v5570 = vunpack.c.h.b16 %v4913
    %v5571 = vunpack.c.l.b16 %v4914
    %v5572 = vunpack.c.h.b16 %v4914
    %v5573 = vunpack.c.l.b16 %v4915
    %v5574 = vunpack.c.h.b16 %v4915
    %v5575 = vunpack.c.l.b16 %v4916
    %v5576 = vunpack.c.h.b16 %v4916
    %v5577 = vunpack.c.l.b16 %v4917
    %v5578 = vunpack.c.h.b16 %v4917
    %v5579 = vunpack.c.l.b16 %v4918
    %v5580 = vunpack.c.h.b16 %v4918
    %v5581 = vunpack.c.l.b16 %v4919
    %v5582 = vunpack.c.h.b16 %v4919
    %v5583 = vunpack.c.l.b16 %v4920
    %v5584 = vunpack.c.h.b16 %v4920
    %v5585 = vunpack.c.l.b16 %v4921
    %v5586 = vunpack.c.h.b16 %v4921
    %v5587 = vunpack.c.l.b16 %v4922
    %v5588 = vunpack.c.h.b16 %v4922
    %v5589 = vunpack.c.l.b16 %v4923
    %v5590 = vunpack.c.h.b16 %v4923
    %v5591 = vunpack.c.l.b16 %v4924
    %v5592 = vunpack.c.h.b16 %v4924
    %v5593 = vunpack.c.l.b16 %v4925
    %v5594 = vunpack.c.h.b16 %v4925
    %v5595 = vunpack.c.l.b16 %v4926
    %v5596 = vunpack.c.h.b16 %v4926
    %v5597 = vunpack.c.l.b16 %v4927
    %v5598 = vunpack.c.h.b16 %v4927
    %v5599 = vunpack.c.l.b16 %v4928
    %v5600 = vunpack.c.h.b16 %v4928
    %v5601 = vunpack.c.l.b16 %v4929
    %v5602 = vunpack.c.h.b16 %v4929
    %v5603 = vunpack.c.l.b16 %v4930
    %v5604 = vunpack.c.h.b16 %v4930
    %v5605 = vunpack.c.l.b16 %v4931
    %v5606 = vunpack.c.h.b16 %v4931
    %v5607 = vunpack.c.l.b16 %v4932
    %v5608 = vunpack.c.h.b16 %v4932
    %v5609 = vunpack.c.l.b16 %v4933
    %v5610 = vunpack.c.h.b16 %v4933
    %v5611 = vunpack.c.l.b16 %v4934
    %v5612 = vunpack.c.h.b16 %v4934
    %v5613 = vunpack.c.l.b16 %v4935
    %v5614 = vunpack.c.h.b16 %v4935
    %v5615 = vunpack.c.l.b16 %v4936
    %v5616 = vunpack.c.h.b16 %v4936
    %v5617 = vunpack.c.l.b16 %v4937
    %v5618 = vunpack.c.h.b16 %v4937
    %v5619 = vunpack.c.l.b16 %v4938
    %v5620 = vunpack.c.h.b16 %v4938
    %v5621 = vunpack.c.l.b16 %v4939
    %v5622 = vunpack.c.h.b16 %v4939
    %v5623 = vunpack.c.l.b16 %v4940
    %v5624 = vunpack.c.h.b16 %v4940
    %v5625 = vunpack.c.l.b16 %v4941
    %v5626 = vunpack.c.h.b16 %v4941
    %v5627 = vunpack.c.l.b16 %v4942
    %v5628 = vunpack.c.h.b16 %v4942
    %v5629 = vunpack.c.l.b16 %v4943
    %v5630 = vunpack.c.h.b16 %v4943
    %v5631 = vunpack.c.l.b16 %v4944
    %v5632 = vunpack.c.h.b16 %v4944
    %v5633 = vunpack.c.l.b16 %v4945
    %v5634 = vunpack.c.h.b16 %v4945
    %v5635 = vunpack.c.l.b16 %v4946
    %v5636 = vunpack.c.h.b16 %v4946
    %v5637 = vunpack.c.l.b16 %v4947
    %v5638 = vunpack.c.h.b16 %v4947
    %v5639 = vunpack.c.l.b16 %v4948
    %v5640 = vunpack.c.h.b16 %v4948
    %v5641 = vunpack.c.l.b16 %v4949
    %v5642 = vunpack.c.h.b16 %v4949
    %v5643 = vunpack.c.l.b16 %v4950
    %v5644 = vunpack.c.h.b16 %v4950
    %v5645 = vunpack.c.l.b16 %v4951
    %v5646 = vunpack.c.h.b16 %v4951
    %v5647 = vunpack.c.l.b16 %v4952
    %v5648 = vunpack.c.h.b16 %v4952
    %v5649 = vunpack.c.l.b16 %v4953
    %v5650 = vunpack.c.h.b16 %v4953
    %v5651 = vunpack.c.l.b16 %v4954
    %v5652 = vunpack.c.h.b16 %v4954
    %v5653 = vunpack.c.l.b16 %v4955
    %v5654 = vunpack.c.h.b16 %v4955
    %v5655 = vunpack.c.l.b16 %v4956
    %v5656 = vunpack.c.h.b16 %v4956
    %v5657 = vunpack.c.l.b16 %v4957
    %v5658 = vunpack.c.h.b16 %v4957
    %v5659 = vunpack.c.l.b16 %v4958
    %v5660 = vunpack.c.h.b16 %v4958
    %v5661 = vunpack.c.l.b16 %v4959
    %v5662 = vunpack.c.h.b16 %v4959
    %v5663 = vunpack.c.l.b16 %v4960
    %v5664 = vunpack.c.h.b16 %v4960
    %v5665 = vunpack.c.l.b16 %v4961
    %v5666 = vunpack.c.h.b16 %v4961
    %v5667 = vunpack.c.l.b16 %v4962
    %v5668 = vunpack.c.h.b16 %v4962
    %v5669 = vunpack.c.l.b16 %v4963
    %v5670 = vunpack.c.h.b16 %v4963
    %v5671 = vunpack.c.l.b16 %v4964
    %v5672 = vunpack.c.h.b16 %v4964
    %v5673 = vunpack.c.l.b16 %v4965
    %v5674 = vunpack.c.h.b16 %v4965
    %v5675 = vunpack.c.l.b16 %v4966
    %v5676 = vunpack.c.h.b16 %v4966
    %v5677 = vunpack.c.l.b16 %v4967
    %v5678 = vunpack.c.h.b16 %v4967
    %v5679 = vunpack.c.l.b16 %v4968
    %v5680 = vunpack.c.h.b16 %v4968
    %v5681 = vunpack.c.l.b16 %v4969
    %v5682 = vunpack.c.h.b16 %v4969
    %v5683 = vunpack.c.l.b16 %v4970
    %v5684 = vunpack.c.h.b16 %v4970
    %v5685 = vunpack.c.l.b16 %v4971
    %v5686 = vunpack.c.h.b16 %v4971
    %v5687 = vunpack.c.l.b16 %v4972
    %v5688 = vunpack.c.h.b16 %v4972
    %v5689 = vunpack.c.l.b16 %v4973
    %v5690 = vunpack.c.h.b16 %v4973
    %v5691 = vunpack.c.l.b16 %v4974
    %v5692 = vunpack.c.h.b16 %v4974
    %v5693 = vunpack.c.l.b16 %v4975
    %v5694 = vunpack.c.h.b16 %v4975
    %v5695 = vunpack.c.l.b16 %v4976
    %v5696 = vunpack.c.h.b16 %v4976
    %v5697 = vunpack.c.l.b16 %v4977
    %v5698 = vunpack.c.h.b16 %v4977
    %v5699 = vunpack.c.l.b16 %v4978
    %v5700 = vunpack.c.h.b16 %v4978
    %v5701 = vunpack.c.l.b16 %v4979
    %v5702 = vunpack.c.h.b16 %v4979
    %v5703 = vunpack.c.l.b16 %v4980
    %v5704 = vunpack.c.h.b16 %v4980
    %v5705 = vunpack.c.l.b16 %v4981
    %v5706 = vunpack.c.h.b16 %v4981
    %v5707 = vunpack.c.l.b16 %v4982
    %v5708 = vunpack.c.h.b16 %v4982
    %v5709 = vunpack.c.l.b16 %v4983
    %v5710 = vunpack.c.h.b16 %v4983
    %v5711 = vunpack.c.l.b16 %v4984
    %v5712 = vunpack.c.h.b16 %v4984
    %v5713 = vunpack.c.l.b16 %v4985
    %v5714 = vunpack.c.h.b16 %v4985
    %v5715 = vunpack.c.l.b16 %v4986
    %v5716 = vunpack.c.h.b16 %v4986
    %v5717 = vunpack.c.l.b16 %v4987
    %v5718 = vunpack.c.h.b16 %v4987
    %v5719 = vunpack.c.l.b16 %v4988
    %v5720 = vunpack.c.h.b16 %v4988
    %v5721 = vunpack.c.l.b16 %v4989
    %v5722 = vunpack.c.h.b16 %v4989
    %v5723 = vunpack.c.l.b16 %v4990
    %v5724 = vunpack.c.h.b16 %v4990
    %v5725 = vunpack.c.l.b16 %v4991
    %v5726 = vunpack.c.h.b16 %v4991
    %v5727 = vunpack.c.l.b16 %v4992
    %v5728 = vunpack.c.h.b16 %v4992
    %v5729 = vunpack.c.l.b16 %v4993
    %v5730 = vunpack.c.h.b16 %v4993
    %v5731 = vunpack.c.l.b16 %v4994
    %v5732 = vunpack.c.h.b16 %v4994
    %v5733 = vunpack.c.l.b16 %v4995
    %v5734 = vunpack.c.h.b16 %v4995
    %v5735 = vunpack.c.l.b16 %v4996
    %v5736 = vunpack.c.h.b16 %v4996
    %v5737 = vunpack.c.l.b16 %v4997
    %v5738 = vunpack.c.h.b16 %v4997
    %v5739 = vunpack.c.l.b16 %v4998
    %v5740 = vunpack.c.h.b16 %v4998
    %v5741 = vunpack.c.l.b16 %v4999
    %v5742 = vunpack.c.h.b16 %v4999
    %v5743 = vunpack.c.l.b16 %v5000
    %v5744 = vunpack.c.h.b16 %v5000
    %v5745 = vunpack.c.l.b16 %v5001
    %v5746 = vunpack.c.h.b16 %v5001
    %v5747 = vunpack.c.l.b16 %v5002
    %v5748 = vunpack.c.h.b16 %v5002
    %v5749 = vunpack.c.l.b16 %v5003
    %v5750 = vunpack.c.h.b16 %v5003
    %v5751 = vunpack.c.l.b16 %v5004
    %v5752 = vunpack.c.h.b16 %v5004
    %v5753 = vunpack.c.l.b16 %v5005
    %v5754 = vunpack.c.h.b16 %v5005
    %v5755 = vunpack.c.l.b16 %v5006
    %v5756 = vunpack.c.h.b16 %v5006
    %v5757 = vunpack.c.l.b16 %v5007
    %v5758 = vunpack.c.h.b16 %v5007
    %v5759 = vunpack.c.l.b16 %v5008
    %v5760 = vunpack.c.h.b16 %v5008
    %v5761 = vunpack.c.l.b16 %v5009
    %v5762 = vunpack.c.h.b16 %v5009
    %v5763 = vunpack.c.l.b16 %v5010
    %v5764 = vunpack.c.h.b16 %v5010
    %v5765 = vunpack.c.l.b16 %v5011
    %v5766 = vunpack.c.h.b16 %v5011
    %v5767 = vunpack.c.l.b16 %v5012
    %v5768 = vunpack.c.h.b16 %v5012
    %v5769 = vunpack.c.l.b16 %v5013
    %v5770 = vunpack.c.h.b16 %v5013
    %v5771 = vunpack.c.l.b16 %v5014
    %v5772 = vunpack.c.h.b16 %v5014
    %v5773 = vunpack.c.l.b16 %v5015
    %v5774 = vunpack.c.h.b16 %v5015
    %v5775 = vunpack.c.l.b16 %v5016
    %v5776 = vunpack.c.h.b16 %v5016
    %v5777 = vunpack.c.l.b16 %v5017
    %v5778 = vunpack.c.h.b16 %v5017
    %v5779 = vunpack.c.l.b16 %v5018
    %v5780 = vunpack.c.h.b16 %v5018
    %v5781 = vunpack.c.l.b16 %v5019
    %v5782 = vunpack.c.h.b16 %v5019
    %v5783 = vunpack.c.l.b16 %v5020
    %v5784 = vunpack.c.h.b16 %v5020
    %v5785 = vunpack.c.l.b16 %v5021
    %v5786 = vunpack.c.h.b16 %v5021
    %v5787 = vunpack.c.l.b16 %v5022
    %v5788 = vunpack.c.h.b16 %v5022
    %v5789 = vunpack.c.l.b16 %v5023
    %v5790 = vunpack.c.h.b16 %v5023
    %v5791 = vunpack.c.l.b16 %v5024
    %v5792 = vunpack.c.h.b16 %v5024
    %v5793 = vunpack.c.l.b16 %v5025
    %v5794 = vunpack.c.h.b16 %v5025
    %v5795 = vunpack.c.l.b16 %v5026
    %v5796 = vunpack.c.h.b16 %v5026
    %v5797 = vunpack.c.l.b16 %v5027
    %v5798 = vunpack.c.h.b16 %v5027
    %v5799 = vunpack.c.l.b16 %v5028
    %v5800 = vunpack.c.h.b16 %v5028
    %v5801 = vunpack.c.l.b16 %v5029
    %v5802 = vunpack.c.h.b16 %v5029
    %v5803 = vunpack.c.l.b16 %v5030
    %v5804 = vunpack.c.h.b16 %v5030
    %v5805 = vunpack.c.l.b16 %v5031
    %v5806 = vunpack.c.h.b16 %v5031
    %v5807 = vunpack.c.l.b16 %v5032
    %v5808 = vunpack.c.h.b16 %v5032
    %v5809 = vunpack.c.l.b16 %v5033
    %v5810 = vunpack.c.h.b16 %v5033
    %v5811 = vunpack.c.l.b16 %v5034
    %v5812 = vunpack.c.h.b16 %v5034
    %v5813 = vunpack.c.l.b16 %v5035
    %v5814 = vunpack.c.h.b16 %v5035
    %v5815 = vunpack.c.l.b16 %v5036
    %v5816 = vunpack.c.h.b16 %v5036
    %v5817 = vunpack.c.l.b16 %v5037
    %v5818 = vunpack.c.h.b16 %v5037
    %v5819 = vunpack.c.l.b16 %v5038
    %v5820 = vunpack.c.h.b16 %v5038
    %v5821 = vunpack.c.l.b16 %v5039
    %v5822 = vunpack.c.h.b16 %v5039
    %v5823 = vunpack.c.l.b16 %v5040
    %v5824 = vunpack.c.h.b16 %v5040
    %v5825 = vunpack.c.l.b16 %v5041
    %v5826 = vunpack.c.h.b16 %v5041
    %v5827 = vunpack.c.l.b16 %v5042
    %v5828 = vunpack.c.h.b16 %v5042
    %v5829 = vpack.c.b16 %v5325, %v5317
    %v5830 = vpack.c.b16 %v5326, %v5318
    %v5831 = vpack.c.b16 %v5327, %v5319
    %v5832 = vpack.c.b16 %v5328, %v5320
    %v5833 = vpack.c.b16 %v5329, %v5321
    %v5834 = vpack.c.b16 %v5330, %v5322
    %v5835 = vpack.c.b16 %v5331, %v5323
    %v5836 = vpack.c.b16 %v5332, %v5324
    %v5837 = vpack.c.b16 %v5341, %v5333
    %v5838 = vpack.c.b16 %v5342, %v5334
    %v5839 = vpack.c.b16 %v5343, %v5335
    %v5840 = vpack.c.b16 %v5344, %v5336
    %v5841 = vpack.c.b16 %v5345, %v5337
    %v5842 = vpack.c.b16 %v5346, %v5338
    %v5843 = vpack.c.b16 %v5347, %v5339
    %v5844 = vpack.c.b16 %v5348, %v5340
    %v5845 = vpack.c.b16 %v5357, %v5349
    %v5846 = vpack.c.b16 %v5358, %v5350
    %v5847 = vpack.c.b16 %v5359, %v5351
    %v5848 = vpack.c.b16 %v5360, %v5352
    %v5849 = vpack.c.b16 %v5361, %v5353
    %v5850 = vpack.c.b16 %v5362, %v5354
    %v5851 = vpack.c.b16 %v5363, %v5355
    %v5852 = vpack.c.b16 %v5364, %v5356
    %v5853 = vpack.c.b16 %v5373, %v5365
    %v5854 = vpack.c.b16 %v5374, %v5366
    %v5855 = vpack.c.b16 %v5375, %v5367
    %v5856 = vpack.c.b16 %v5376, %v5368
    %v5857 = vpack.c.b16 %v5377, %v5369
    %v5858 = vpack.c.b16 %v5378, %v5370
    %v5859 = vpack.c.b16 %v5379, %v5371
    %v5860 = vpack.c.b16 %v5380, %v5372
    %v5861 = vpack.c.b16 %v5389, %v5381
    %v5862 = vpack.c.b16 %v5390, %v5382
    %v5863 = vpack.c.b16 %v5391, %v5383
    %v5864 = vpack.c.b16 %v5392, %v5384
    %v5865 = vpack.c.b16 %v5393, %v5385
    %v5866 = vpack.c.b16 %v5394, %v5386
    %v5867 = vpack.c.b16 %v5395, %v5387
    %v5868 = vpack.c.b16 %v5396, %v5388
    %v5869 = vpack.c.b16 %v5405, %v5397
    %v5870 = vpack.c.b16 %v5406, %v5398
    %v5871 = vpack.c.b16 %v5407, %v5399
    %v5872 = vpack.c.b16 %v5408, %v5400
    %v5873 = vpack.c.b16 %v5409, %v5401
    %v5874 = vpack.c.b16 %v5410, %v5402
    %v5875 = vpack.c.b16 %v5411, %v5403
    %v5876 = vpack.c.b16 %v5412, %v5404
    %v5877 = vpack.c.b16 %v5421, %v5413
    %v5878 = vpack.c.b16 %v5422, %v5414
    %v5879 = vpack.c.b16 %v5423, %v5415
    %v5880 = vpack.c.b16 %v5424, %v5416
    %v5881 = vpack.c.b16 %v5425, %v5417
    %v5882 = vpack.c.b16 %v5426, %v5418
    %v5883 = vpack.c.b16 %v5427, %v5419
    %v5884 = vpack.c.b16 %v5428, %v5420
    %v5885 = vpack.c.b16 %v5437, %v5429
    %v5886 = vpack.c.b16 %v5438, %v5430
    %v5887 = vpack.c.b16 %v5439, %v5431
    %v5888 = vpack.c.b16 %v5440, %v5432
    %v5889 = vpack.c.b16 %v5441, %v5433
    %v5890 = vpack.c.b16 %v5442, %v5434
    %v5891 = vpack.c.b16 %v5443, %v5435
    %v5892 = vpack.c.b16 %v5444, %v5436
    %v5893 = vpack.c.b16 %v5453, %v5445
    %v5894 = vpack.c.b16 %v5454, %v5446
    %v5895 = vpack.c.b16 %v5455, %v5447
    %v5896 = vpack.c.b16 %v5456, %v5448
    %v5897 = vpack.c.b16 %v5457, %v5449
    %v5898 = vpack.c.b16 %v5458, %v5450
    %v5899 = vpack.c.b16 %v5459, %v5451
    %v5900 = vpack.c.b16 %v5460, %v5452
    %v5901 = vpack.c.b16 %v5469, %v5461
    %v5902 = vpack.c.b16 %v5470, %v5462
    %v5903 = vpack.c.b16 %v5471, %v5463
    %v5904 = vpack.c.b16 %v5472, %v5464
    %v5905 = vpack.c.b16 %v5473, %v5465
    %v5906 = vpack.c.b16 %v5474, %v5466
    %v5907 = vpack.c.b16 %v5475, %v5467
    %v5908 = vpack.c.b16 %v5476, %v5468
    %v5909 = vpack.c.b16 %v5485, %v5477
    %v5910 = vpack.c.b16 %v5486, %v5478
    %v5911 = vpack.c.b16 %v5487, %v5479
    %v5912 = vpack.c.b16 %v5488, %v5480
    %v5913 = vpack.c.b16 %v5489, %v5481
    %v5914 = vpack.c.b16 %v5490, %v5482
    %v5915 = vpack.c.b16 %v5491, %v5483
    %v5916 = vpack.c.b16 %v5492, %v5484
    %v5917 = vpack.c.b16 %v5501, %v5493
    %v5918 = vpack.c.b16 %v5502, %v5494
    %v5919 = vpack.c.b16 %v5503, %v5495
    %v5920 = vpack.c.b16 %v5504, %v5496
    %v5921 = vpack.c.b16 %v5505, %v5497
    %v5922 = vpack.c.b16 %v5506, %v5498
    %v5923 = vpack.c.b16 %v5507, %v5499
    %v5924 = vpack.c.b16 %v5508, %v5500
    %v5925 = vpack.c.b16 %v5517, %v5509
    %v5926 = vpack.c.b16 %v5518, %v5510
    %v5927 = vpack.c.b16 %v5519, %v5511
    %v5928 = vpack.c.b16 %v5520, %v5512
    %v5929 = vpack.c.b16 %v5521, %v5513
    %v5930 = vpack.c.b16 %v5522, %v5514
    %v5931 = vpack.c.b16 %v5523, %v5515
    %v5932 = vpack.c.b16 %v5524, %v5516
    %v5933 = vpack.c.b16 %v5533, %v5525
    %v5934 = vpack.c.b16 %v5534, %v5526
    %v5935 = vpack.c.b16 %v5535, %v5527
    %v5936 = vpack.c.b16 %v5536, %v5528
    %v5937 = vpack.c.b16 %v5537, %v5529
    %v5938 = vpack.c.b16 %v5538, %v5530
    %v5939 = vpack.c.b16 %v5539, %v5531
    %v5940 = vpack.c.b16 %v5540, %v5532
    %v5941 = vpack.c.b16 %v5549, %v5541
    %v5942 = vpack.c.b16 %v5550, %v5542
    %v5943 = vpack.c.b16 %v5551, %v5543
    %v5944 = vpack.c.b16 %v5552, %v5544
    %v5945 = vpack.c.b16 %v5553, %v5545
    %v5946 = vpack.c.b16 %v5554, %v5546
    %v5947 = vpack.c.b16 %v5555, %v5547
    %v5948 = vpack.c.b16 %v5556, %v5548
    %v5949 = vpack.c.b16 %v5565, %v5557
    %v5950 = vpack.c.b16 %v5566, %v5558
    %v5951 = vpack.c.b16 %v5567, %v5559
    %v5952 = vpack.c.b16 %v5568, %v5560
    %v5953 = vpack.c.b16 %v5569, %v5561
    %v5954 = vpack.c.b16 %v5570, %v5562
    %v5955 = vpack.c.b16 %v5571, %v5563
    %v5956 = vpack.c.b16 %v5572, %v5564
    %v5957 = vpack.c.b16 %v5581, %v5573
    %v5958 = vpack.c.b16 %v5582, %v5574
    %v5959 = vpack.c.b16 %v5583, %v5575
    %v5960 = vpack.c.b16 %v5584, %v5576
    %v5961 = vpack.c.b16 %v5585, %v5577
    %v5962 = vpack.c.b16 %v5586, %v5578
    %v5963 = vpack.c.b16 %v5587, %v5579
    %v5964 = vpack.c.b16 %v5588, %v5580
    %v5965 = vpack.c.b16 %v5597, %v5589
    %v5966 = vpack.c.b16 %v5598, %v5590
    %v5967 = vpack.c.b16 %v5599, %v5591
    %v5968 = vpack.c.b16 %v5600, %v5592
    %v5969 = vpack.c.b16 %v5601, %v5593
    %v5970 = vpack.c.b16 %v5602, %v5594
    %v5971 = vpack.c.b16 %v5603, %v5595
    %v5972 = vpack.c.b16 %v5604, %v5596
    %v5973 = vpack.c.b16 %v5613, %v5605
    %v5974 = vpack.c.b16 %v5614, %v5606
    %v5975 = vpack.c.b16 %v5615, %v5607
    %v5976 = vpack.c.b16 %v5616, %v5608
    %v5977 = vpack.c.b16 %v5617, %v5609
    %v5978 = vpack.c.b16 %v5618, %v5610
    %v5979 = vpack.c.b16 %v5619, %v5611
    %v5980 = vpack.c.b16 %v5620, %v5612
    %v5981 = vpack.c.b16 %v5629, %v5621
    %v5982 = vpack.c.b16 %v5630, %v5622
    %v5983 = vpack.c.b16 %v5631, %v5623
    %v5984 = vpack.c.b16 %v5632, %v5624
    %v5985 = vpack.c.b16 %v5633, %v5625
    %v5986 = vpack.c.b16 %v5634, %v5626
    %v5987 = vpack.c.b16 %v5635, %v5627
    %v5988 = vpack.c.b16 %v5636, %v5628
    %v5989 = vpack.c.b16 %v5645, %v5637
    %v5990 = vpack.c.b16 %v5646, %v5638
    %v5991 = vpack.c.b16 %v5647, %v5639
    %v5992 = vpack.c.b16 %v5648, %v5640
    %v5993 = vpack.c.b16 %v5649, %v5641
    %v5994 = vpack.c.b16 %v5650, %v5642
    %v5995 = vpack.c.b16 %v5651, %v5643
    %v5996 = vpack.c.b16 %v5652, %v5644
    %v5997 = vpack.c.b16 %v5661, %v5653
    %v5998 = vpack.c.b16 %v5662, %v5654
    %v5999 = vpack.c.b16 %v5663, %v5655
    %v6000 = vpack.c.b16 %v5664, %v5656
    %v6001 = vpack.c.b16 %v5665, %v5657
    %v6002 = vpack.c.b16 %v5666, %v5658
    %v6003 = vpack.c.b16 %v5667, %v5659
    %v6004 = vpack.c.b16 %v5668, %v5660
    %v6005 = vpack.c.b16 %v5677, %v5669
    %v6006 = vpack.c.b16 %v5678, %v5670
    %v6007 = vpack.c.b16 %v5679, %v5671
    %v6008 = vpack.c.b16 %v5680, %v5672
    %v6009 = vpack.c.b16 %v5681, %v5673
    %v6010 = vpack.c.b16 %v5682, %v5674
    %v6011 = vpack.c.b16 %v5683, %v5675
    %v6012 = vpack.c.b16 %v5684, %v5676
    %v6013 = vpack.c.b16 %v5693, %v5685
    %v6014 = vpack.c.b16 %v5694, %v5686
    %v6015 = vpack.c.b16 %v5695, %v5687
    %v6016 = vpack.c.b16 %v5696, %v5688
    %v6017 = vpack.c.b16 %v5697, %v5689
    %v6018 = vpack.c.b16 %v5698, %v5690
    %v6019 = vpack.c.b16 %v5699, %v5691
    %v6020 = vpack.c.b16 %v5700, %v5692
    %v6021 = vpack.c.b16 %v5709, %v5701
    %v6022 = vpack.c.b16 %v5710, %v5702
    %v6023 = vpack.c.b16 %v5711, %v5703
    %v6024 = vpack.c.b16 %v5712, %v5704
    %v6025 = vpack.c.b16 %v5713, %v5705
    %v6026 = vpack.c.b16 %v5714, %v5706
    %v6027 = vpack.c.b16 %v5715, %v5707
    %v6028 = vpack.c.b16 %v5716, %v5708
    %v6029 = vpack.c.b16 %v5725, %v5717
    %v6030 = vpack.c.b16 %v5726, %v5718
    %v6031 = vpack.c.b16 %v5727, %v5719
    %v6032 = vpack.c.b16 %v5728, %v5720
    %v6033 = vpack.c.b16 %v5729, %v5721
    %v6034 = vpack.c.b16 %v5730, %v5722
    %v6035 = vpack.c.b16 %v5731, %v5723
    %v6036 = vpack.c.b16 %v5732, %v5724
    %v6037 = vpack.c.b16 %v5741, %v5733
    %v6038 = vpack.c.b16 %v5742, %v5734
    %v6039 = vpack.c.b16 %v5743, %v5735
    %v6040 = vpack.c.b16 %v5744, %v5736
    %v6041 = vpack.c.b16 %v5745, %v5737
    %v6042 = vpack.c.b16 %v5746, %v5738
    %v6043 = vpack.c.b16 %v5747, %v5739
    %v6044 = vpack.c.b16 %v5748, %v5740
    %v6045 = vpack.c.b16 %v5757, %v5749
    %v6046 = vpack.c.b16 %v5758, %v5750
    %v6047 = vpack.c.b16 %v5759, %v5751
    %v6048 = vpack.c.b16 %v5760, %v5752
    %v6049 = vpack.c.b16 %v5761, %v5753
    %v6050 = vpack.c.b16 %v5762, %v5754
    %v6051 = vpack.c.b16 %v5763, %v5755
    %v6052 = vpack.c.b16 %v5764, %v5756
    %v6053 = vpack.c.b16 %v5773, %v5765
    %v6054 = vpack.c.b16 %v5774, %v5766
    %v6055 = vpack.c.b16 %v5775, %v5767
    %v6056 = vpack.c.b16 %v5776, %v5768
    %v6057 = vpack.c.b16 %v5777, %v5769
    %v6058 = vpack.c.b16 %v5778, %v5770
    %v6059 = vpack.c.b16 %v5779, %v5771
    %v6060 = vpack.c.b16 %v5780, %v5772
    %v6061 = vpack.c.b16 %v5789, %v5781
    %v6062 = vpack.c.b16 %v5790, %v5782
    %v6063 = vpack.c.b16 %v5791, %v5783
    %v6064 = vpack.c.b16 %v5792, %v5784
    %v6065 = vpack.c.b16 %v5793, %v5785
    %v6066 = vpack.c.b16 %v5794, %v5786
    %v6067 = vpack.c.b16 %v5795, %v5787
    %v6068 = vpack.c.b16 %v5796, %v5788
    %v6069 = vpack.c.b16 %v5805, %v5797
    %v6070 = vpack.c.b16 %v5806, %v5798
    %v6071 = vpack.c.b16 %v5807, %v5799
    %v6072 = vpack.c.b16 %v5808, %v5800
    %v6073 = vpack.c.b16 %v5809, %v5801
    %v6074 = vpack.c.b16 %v5810, %v5802
    %v6075 = vpack.c.b16 %v5811, %v5803
    %v6076 = vpack.c.b16 %v5812, %v5804
    %v6077 = vpack.c.b16 %v5821, %v5813
    %v6078 = vpack.c.b16 %v5822, %v5814
    %v6079 = vpack.c.b16 %v5823, %v5815
    %v6080 = vpack.c.b16 %v5824, %v5816
    %v6081 = vpack.c.b16 %v5825, %v5817
    %v6082 = vpack.c.b16 %v5826, %v5818
    %v6083 = vpack.c.b16 %v5827, %v5819
    %v6084 = vpack.c.b16 %v5828, %v5820
    %6341 = vmatpush.bf16.msra.mxu0 %v5885
    %6342 = vmatpush.bf16.msra.mxu0 %v5877
    %6343 = vmatpush.bf16.msra.mxu0 %v5869
    %6344 = vmatpush.bf16.msra.mxu0 %v5861
    %6345 = vmatpush.bf16.msra.mxu0 %v5853
    %6346 = vmatpush.bf16.msra.mxu0 %v5845
    %6347 = vmatpush.bf16.msra.mxu0 %v5837
    %6348 = vmatpush.bf16.msra.mxu0 %v5829
    %6349 = vmatmul.bf16.gmra.mxu0 %v4783
    %v6350 = vpop.f32.mrf.mxu0
    %v6351 = vadd.f32 %v5045, %v6350
    %v6352 = vpop.f32.mrf.mxu0
    %6353 = vdwg.mxu0
    %6354 = vmatpush.bf16.msra.mxu0 %v5949
    %6355 = vmatpush.bf16.msra.mxu0 %v5941
    %6356 = vmatpush.bf16.msra.mxu0 %v5933
    %6357 = vmatpush.bf16.msra.mxu0 %v5925
    %6358 = vmatpush.bf16.msra.mxu0 %v5917
    %6359 = vmatpush.bf16.msra.mxu0 %v5909
    %6360 = vmatpush.bf16.msra.mxu0 %v5901
    %6361 = vmatpush.bf16.msra.mxu0 %v5893
    %6362 = vmatmul.bf16.gmra.mxu0 %v4784
    %v6363 = vpop.f32.mrf.mxu0
    %v6364 = vadd.f32 %v6351, %v6363
    %v6365 = vpop.f32.mrf.mxu0
    %6366 = vdwg.mxu0
    %6367 = vmatpush.bf16.msra.mxu0 %v6013
    %6368 = vmatpush.bf16.msra.mxu0 %v6005
    %6369 = vmatpush.bf16.msra.mxu0 %v5997
    %6370 = vmatpush.bf16.msra.mxu0 %v5989
    %6371 = vmatpush.bf16.msra.mxu0 %v5981
    %6372 = vmatpush.bf16.msra.mxu0 %v5973
    %6373 = vmatpush.bf16.msra.mxu0 %v5965
    %6374 = vmatpush.bf16.msra.mxu0 %v5957
    %6375 = vmatmul.bf16.gmra.mxu0 %v4785
    %v6376 = vpop.f32.mrf.mxu0
    %v6377 = vadd.f32 %v6364, %v6376
    %v6378 = vpop.f32.mrf.mxu0
    %6379 = vdwg.mxu0
    %6380 = vmatpush.bf16.msra.mxu0 %v6077
    %6381 = vmatpush.bf16.msra.mxu0 %v6069
    %6382 = vmatpush.bf16.msra.mxu0 %v6061
    %6383 = vmatpush.bf16.msra.mxu0 %v6053
    %6384 = vmatpush.bf16.msra.mxu0 %v6045
    %6385 = vmatpush.bf16.msra.mxu0 %v6037
    %6386 = vmatpush.bf16.msra.mxu0 %v6029
    %6387 = vmatpush.bf16.msra.mxu0 %v6021
    %6388 = vmatmul.bf16.gmra.mxu0 %v4786
    %v6389 = vpop.f32.mrf.mxu0
    %v6390 = vadd.f32 %v6377, %v6389
    %v6391 = vpop.f32.mrf.mxu0
    %6392 = vdwg.mxu0
    %6393 = vmatpush.bf16.msra.mxu0 %v5886
    %6394 = vmatpush.bf16.msra.mxu0 %v5878
    %6395 = vmatpush.bf16.msra.mxu0 %v5870
    %6396 = vmatpush.bf16.msra.mxu0 %v5862
    %6397 = vmatpush.bf16.msra.mxu0 %v5854
    %6398 = vmatpush.bf16.msra.mxu0 %v5846
    %6399 = vmatpush.bf16.msra.mxu0 %v5838
    %6400 = vmatpush.bf16.msra.mxu0 %v5830
    %6401 = vmatmul.bf16.gmra.mxu0 %v4783
    %v6402 = vpop.f32.mrf.mxu0
    %v6403 = vadd.f32 %v5046, %v6402
    %v6404 = vpop.f32.mrf.mxu0
    %6405 = vdwg.mxu0
    %6406 = vmatpush.bf16.msra.mxu0 %v5950
    %6407 = vmatpush.bf16.msra.mxu0 %v5942
    %6408 = vmatpush.bf16.msra.mxu0 %v5934
    %6409 = vmatpush.bf16.msra.mxu0 %v5926
    %6410 = vmatpush.bf16.msra.mxu0 %v5918
    %6411 = vmatpush.bf16.msra.mxu0 %v5910
    %6412 = vmatpush.bf16.msra.mxu0 %v5902
    %6413 = vmatpush.bf16.msra.mxu0 %v5894
    %6414 = vmatmul.bf16.gmra.mxu0 %v4784
    %v6415 = vpop.f32.mrf.mxu0
    %v6416 = vadd.f32 %v6403, %v6415
    %v6417 = vpop.f32.mrf.mxu0
    %6418 = vdwg.mxu0
    %6419 = vmatpush.bf16.msra.mxu0 %v6014
    %6420 = vmatpush.bf16.msra.mxu0 %v6006
    %6421 = vmatpush.bf16.msra.mxu0 %v5998
    %6422 = vmatpush.bf16.msra.mxu0 %v5990
    %6423 = vmatpush.bf16.msra.mxu0 %v5982
    %6424 = vmatpush.bf16.msra.mxu0 %v5974
    %6425 = vmatpush.bf16.msra.mxu0 %v5966
    %6426 = vmatpush.bf16.msra.mxu0 %v5958
    %6427 = vmatmul.bf16.gmra.mxu0 %v4785
    %v6428 = vpop.f32.mrf.mxu0
    %v6429 = vadd.f32 %v6416, %v6428
    %v6430 = vpop.f32.mrf.mxu0
    %6431 = vdwg.mxu0
    %6432 = vmatpush.bf16.msra.mxu0 %v6078
    %6433 = vmatpush.bf16.msra.mxu0 %v6070
    %6434 = vmatpush.bf16.msra.mxu0 %v6062
    %6435 = vmatpush.bf16.msra.mxu0 %v6054
    %6436 = vmatpush.bf16.msra.mxu0 %v6046
    %6437 = vmatpush.bf16.msra.mxu0 %v6038
    %6438 = vmatpush.bf16.msra.mxu0 %v6030
    %6439 = vmatpush.bf16.msra.mxu0 %v6022
    %6440 = vmatmul.bf16.gmra.mxu0 %v4786
    %v6441 = vpop.f32.mrf.mxu0
    %v6442 = vadd.f32 %v6429, %v6441
    %v6443 = vpop.f32.mrf.mxu0
    %6444 = vdwg.mxu0
    %6445 = vmatpush.bf16.msra.mxu0 %v5887
    %6446 = vmatpush.bf16.msra.mxu0 %v5879
    %6447 = vmatpush.bf16.msra.mxu0 %v5871
    %6448 = vmatpush.bf16.msra.mxu0 %v5863
    %6449 = vmatpush.bf16.msra.mxu0 %v5855
    %6450 = vmatpush.bf16.msra.mxu0 %v5847
    %6451 = vmatpush.bf16.msra.mxu0 %v5839
    %6452 = vmatpush.bf16.msra.mxu0 %v5831
    %6453 = vmatmul.bf16.gmra.mxu0 %v4783
    %v6454 = vpop.f32.mrf.mxu0
    %v6455 = vadd.f32 %v5047, %v6454
    %v6456 = vpop.f32.mrf.mxu0
    %6457 = vdwg.mxu0
    %6458 = vmatpush.bf16.msra.mxu0 %v5951
    %6459 = vmatpush.bf16.msra.mxu0 %v5943
    %6460 = vmatpush.bf16.msra.mxu0 %v5935
    %6461 = vmatpush.bf16.msra.mxu0 %v5927
    %6462 = vmatpush.bf16.msra.mxu0 %v5919
    %6463 = vmatpush.bf16.msra.mxu0 %v5911
    %6464 = vmatpush.bf16.msra.mxu0 %v5903
    %6465 = vmatpush.bf16.msra.mxu0 %v5895
    %6466 = vmatmul.bf16.gmra.mxu0 %v4784
    %v6467 = vpop.f32.mrf.mxu0
    %v6468 = vadd.f32 %v6455, %v6467
    %v6469 = vpop.f32.mrf.mxu0
    %6470 = vdwg.mxu0
    %6471 = vmatpush.bf16.msra.mxu0 %v6015
    %6472 = vmatpush.bf16.msra.mxu0 %v6007
    %6473 = vmatpush.bf16.msra.mxu0 %v5999
    %6474 = vmatpush.bf16.msra.mxu0 %v5991
    %6475 = vmatpush.bf16.msra.mxu0 %v5983
    %6476 = vmatpush.bf16.msra.mxu0 %v5975
    %6477 = vmatpush.bf16.msra.mxu0 %v5967
    %6478 = vmatpush.bf16.msra.mxu0 %v5959
    %6479 = vmatmul.bf16.gmra.mxu0 %v4785
    %v6480 = vpop.f32.mrf.mxu0
    %v6481 = vadd.f32 %v6468, %v6480
    %v6482 = vpop.f32.mrf.mxu0
    %6483 = vdwg.mxu0
    %6484 = vmatpush.bf16.msra.mxu0 %v6079
    %6485 = vmatpush.bf16.msra.mxu0 %v6071
    %6486 = vmatpush.bf16.msra.mxu0 %v6063
    %6487 = vmatpush.bf16.msra.mxu0 %v6055
    %6488 = vmatpush.bf16.msra.mxu0 %v6047
    %6489 = vmatpush.bf16.msra.mxu0 %v6039
    %6490 = vmatpush.bf16.msra.mxu0 %v6031
    %6491 = vmatpush.bf16.msra.mxu0 %v6023
    %6492 = vmatmul.bf16.gmra.mxu0 %v4786
    %v6493 = vpop.f32.mrf.mxu0
    %v6494 = vadd.f32 %v6481, %v6493
    %v6495 = vpop.f32.mrf.mxu0
    %6496 = vdwg.mxu0
    %6497 = vmatpush.bf16.msra.mxu0 %v5888
    %6498 = vmatpush.bf16.msra.mxu0 %v5880
    %6499 = vmatpush.bf16.msra.mxu0 %v5872
    %6500 = vmatpush.bf16.msra.mxu0 %v5864
    %6501 = vmatpush.bf16.msra.mxu0 %v5856
    %6502 = vmatpush.bf16.msra.mxu0 %v5848
    %6503 = vmatpush.bf16.msra.mxu0 %v5840
    %6504 = vmatpush.bf16.msra.mxu0 %v5832
    %6505 = vmatmul.bf16.gmra.mxu0 %v4783
    %v6506 = vpop.f32.mrf.mxu0
    %v6507 = vadd.f32 %v5048, %v6506
    %v6508 = vpop.f32.mrf.mxu0
    %6509 = vdwg.mxu0
    %6510 = vmatpush.bf16.msra.mxu0 %v5952
    %6511 = vmatpush.bf16.msra.mxu0 %v5944
    %6512 = vmatpush.bf16.msra.mxu0 %v5936
    %6513 = vmatpush.bf16.msra.mxu0 %v5928
    %6514 = vmatpush.bf16.msra.mxu0 %v5920
    %6515 = vmatpush.bf16.msra.mxu0 %v5912
    %6516 = vmatpush.bf16.msra.mxu0 %v5904
    %6517 = vmatpush.bf16.msra.mxu0 %v5896
    %6518 = vmatmul.bf16.gmra.mxu0 %v4784
    %v6519 = vpop.f32.mrf.mxu0
    %v6520 = vadd.f32 %v6507, %v6519
    %v6521 = vpop.f32.mrf.mxu0
    %6522 = vdwg.mxu0
    %6523 = vmatpush.bf16.msra.mxu0 %v6016
    %6524 = vmatpush.bf16.msra.mxu0 %v6008
    %6525 = vmatpush.bf16.msra.mxu0 %v6000
    %6526 = vmatpush.bf16.msra.mxu0 %v5992
    %6527 = vmatpush.bf16.msra.mxu0 %v5984
    %6528 = vmatpush.bf16.msra.mxu0 %v5976
    %6529 = vmatpush.bf16.msra.mxu0 %v5968
    %6530 = vmatpush.bf16.msra.mxu0 %v5960
    %6531 = vmatmul.bf16.gmra.mxu0 %v4785
    %v6532 = vpop.f32.mrf.mxu0
    %v6533 = vadd.f32 %v6520, %v6532
    %v6534 = vpop.f32.mrf.mxu0
    %6535 = vdwg.mxu0
    %6536 = vmatpush.bf16.msra.mxu0 %v6080
    %6537 = vmatpush.bf16.msra.mxu0 %v6072
    %6538 = vmatpush.bf16.msra.mxu0 %v6064
    %6539 = vmatpush.bf16.msra.mxu0 %v6056
    %6540 = vmatpush.bf16.msra.mxu0 %v6048
    %6541 = vmatpush.bf16.msra.mxu0 %v6040
    %6542 = vmatpush.bf16.msra.mxu0 %v6032
    %6543 = vmatpush.bf16.msra.mxu0 %v6024
    %6544 = vmatmul.bf16.gmra.mxu0 %v4786
    %v6545 = vpop.f32.mrf.mxu0
    %v6546 = vadd.f32 %v6533, %v6545
    %v6547 = vpop.f32.mrf.mxu0
    %6548 = vdwg.mxu0
    %6549 = vmatpush.bf16.msra.mxu0 %v5889
    %6550 = vmatpush.bf16.msra.mxu0 %v5881
    %6551 = vmatpush.bf16.msra.mxu0 %v5873
    %6552 = vmatpush.bf16.msra.mxu0 %v5865
    %6553 = vmatpush.bf16.msra.mxu0 %v5857
    %6554 = vmatpush.bf16.msra.mxu0 %v5849
    %6555 = vmatpush.bf16.msra.mxu0 %v5841
    %6556 = vmatpush.bf16.msra.mxu0 %v5833
    %6557 = vmatmul.bf16.gmra.mxu0 %v4783
    %v6558 = vpop.f32.mrf.mxu0
    %v6559 = vadd.f32 %v5049, %v6558
    %v6560 = vpop.f32.mrf.mxu0
    %6561 = vdwg.mxu0
    %6562 = vmatpush.bf16.msra.mxu0 %v5953
    %6563 = vmatpush.bf16.msra.mxu0 %v5945
    %6564 = vmatpush.bf16.msra.mxu0 %v5937
    %6565 = vmatpush.bf16.msra.mxu0 %v5929
    %6566 = vmatpush.bf16.msra.mxu0 %v5921
    %6567 = vmatpush.bf16.msra.mxu0 %v5913
    %6568 = vmatpush.bf16.msra.mxu0 %v5905
    %6569 = vmatpush.bf16.msra.mxu0 %v5897
    %6570 = vmatmul.bf16.gmra.mxu0 %v4784
    %v6571 = vpop.f32.mrf.mxu0
    %v6572 = vadd.f32 %v6559, %v6571
    %v6573 = vpop.f32.mrf.mxu0
    %6574 = vdwg.mxu0
    %6575 = vmatpush.bf16.msra.mxu0 %v6017
    %6576 = vmatpush.bf16.msra.mxu0 %v6009
    %6577 = vmatpush.bf16.msra.mxu0 %v6001
    %6578 = vmatpush.bf16.msra.mxu0 %v5993
    %6579 = vmatpush.bf16.msra.mxu0 %v5985
    %6580 = vmatpush.bf16.msra.mxu0 %v5977
    %6581 = vmatpush.bf16.msra.mxu0 %v5969
    %6582 = vmatpush.bf16.msra.mxu0 %v5961
    %6583 = vmatmul.bf16.gmra.mxu0 %v4785
    %v6584 = vpop.f32.mrf.mxu0
    %v6585 = vadd.f32 %v6572, %v6584
    %v6586 = vpop.f32.mrf.mxu0
    %6587 = vdwg.mxu0
    %6588 = vmatpush.bf16.msra.mxu0 %v6081
    %6589 = vmatpush.bf16.msra.mxu0 %v6073
    %6590 = vmatpush.bf16.msra.mxu0 %v6065
    %6591 = vmatpush.bf16.msra.mxu0 %v6057
    %6592 = vmatpush.bf16.msra.mxu0 %v6049
    %6593 = vmatpush.bf16.msra.mxu0 %v6041
    %6594 = vmatpush.bf16.msra.mxu0 %v6033
    %6595 = vmatpush.bf16.msra.mxu0 %v6025
    %6596 = vmatmul.bf16.gmra.mxu0 %v4786
    %v6597 = vpop.f32.mrf.mxu0
    %v6598 = vadd.f32 %v6585, %v6597
    %v6599 = vpop.f32.mrf.mxu0
    %6600 = vdwg.mxu0
    %6601 = vmatpush.bf16.msra.mxu0 %v5890
    %6602 = vmatpush.bf16.msra.mxu0 %v5882
    %6603 = vmatpush.bf16.msra.mxu0 %v5874
    %6604 = vmatpush.bf16.msra.mxu0 %v5866
    %6605 = vmatpush.bf16.msra.mxu0 %v5858
    %6606 = vmatpush.bf16.msra.mxu0 %v5850
    %6607 = vmatpush.bf16.msra.mxu0 %v5842
    %6608 = vmatpush.bf16.msra.mxu0 %v5834
    %6609 = vmatmul.bf16.gmra.mxu0 %v4783
    %v6610 = vpop.f32.mrf.mxu0
    %v6611 = vadd.f32 %v5050, %v6610
    %v6612 = vpop.f32.mrf.mxu0
    %6613 = vdwg.mxu0
    %6614 = vmatpush.bf16.msra.mxu0 %v5954
    %6615 = vmatpush.bf16.msra.mxu0 %v5946
    %6616 = vmatpush.bf16.msra.mxu0 %v5938
    %6617 = vmatpush.bf16.msra.mxu0 %v5930
    %6618 = vmatpush.bf16.msra.mxu0 %v5922
    %6619 = vmatpush.bf16.msra.mxu0 %v5914
    %6620 = vmatpush.bf16.msra.mxu0 %v5906
    %6621 = vmatpush.bf16.msra.mxu0 %v5898
    %6622 = vmatmul.bf16.gmra.mxu0 %v4784
    %v6623 = vpop.f32.mrf.mxu0
    %v6624 = vadd.f32 %v6611, %v6623
    %v6625 = vpop.f32.mrf.mxu0
    %6626 = vdwg.mxu0
    %6627 = vmatpush.bf16.msra.mxu0 %v6018
    %6628 = vmatpush.bf16.msra.mxu0 %v6010
    %6629 = vmatpush.bf16.msra.mxu0 %v6002
    %6630 = vmatpush.bf16.msra.mxu0 %v5994
    %6631 = vmatpush.bf16.msra.mxu0 %v5986
    %6632 = vmatpush.bf16.msra.mxu0 %v5978
    %6633 = vmatpush.bf16.msra.mxu0 %v5970
    %6634 = vmatpush.bf16.msra.mxu0 %v5962
    %6635 = vmatmul.bf16.gmra.mxu0 %v4785
    %v6636 = vpop.f32.mrf.mxu0
    %v6637 = vadd.f32 %v6624, %v6636
    %v6638 = vpop.f32.mrf.mxu0
    %6639 = vdwg.mxu0
    %6640 = vmatpush.bf16.msra.mxu0 %v6082
    %6641 = vmatpush.bf16.msra.mxu0 %v6074
    %6642 = vmatpush.bf16.msra.mxu0 %v6066
    %6643 = vmatpush.bf16.msra.mxu0 %v6058
    %6644 = vmatpush.bf16.msra.mxu0 %v6050
    %6645 = vmatpush.bf16.msra.mxu0 %v6042
    %6646 = vmatpush.bf16.msra.mxu0 %v6034
    %6647 = vmatpush.bf16.msra.mxu0 %v6026
    %6648 = vmatmul.bf16.gmra.mxu0 %v4786
    %v6649 = vpop.f32.mrf.mxu0
    %v6650 = vadd.f32 %v6637, %v6649
    %v6651 = vpop.f32.mrf.mxu0
    %6652 = vdwg.mxu0
    %6653 = vmatpush.bf16.msra.mxu0 %v5891
    %6654 = vmatpush.bf16.msra.mxu0 %v5883
    %6655 = vmatpush.bf16.msra.mxu0 %v5875
    %6656 = vmatpush.bf16.msra.mxu0 %v5867
    %6657 = vmatpush.bf16.msra.mxu0 %v5859
    %6658 = vmatpush.bf16.msra.mxu0 %v5851
    %6659 = vmatpush.bf16.msra.mxu0 %v5843
    %6660 = vmatpush.bf16.msra.mxu0 %v5835
    %6661 = vmatmul.bf16.gmra.mxu0 %v4783
    %v6662 = vpop.f32.mrf.mxu0
    %v6663 = vadd.f32 %v5051, %v6662
    %v6664 = vpop.f32.mrf.mxu0
    %6665 = vdwg.mxu0
    %6666 = vmatpush.bf16.msra.mxu0 %v5955
    %6667 = vmatpush.bf16.msra.mxu0 %v5947
    %6668 = vmatpush.bf16.msra.mxu0 %v5939
    %6669 = vmatpush.bf16.msra.mxu0 %v5931
    %6670 = vmatpush.bf16.msra.mxu0 %v5923
    %6671 = vmatpush.bf16.msra.mxu0 %v5915
    %6672 = vmatpush.bf16.msra.mxu0 %v5907
    %6673 = vmatpush.bf16.msra.mxu0 %v5899
    %6674 = vmatmul.bf16.gmra.mxu0 %v4784
    %v6675 = vpop.f32.mrf.mxu0
    %v6676 = vadd.f32 %v6663, %v6675
    %v6677 = vpop.f32.mrf.mxu0
    %6678 = vdwg.mxu0
    %6679 = vmatpush.bf16.msra.mxu0 %v6019
    %6680 = vmatpush.bf16.msra.mxu0 %v6011
    %6681 = vmatpush.bf16.msra.mxu0 %v6003
    %6682 = vmatpush.bf16.msra.mxu0 %v5995
    %6683 = vmatpush.bf16.msra.mxu0 %v5987
    %6684 = vmatpush.bf16.msra.mxu0 %v5979
    %6685 = vmatpush.bf16.msra.mxu0 %v5971
    %6686 = vmatpush.bf16.msra.mxu0 %v5963
    %6687 = vmatmul.bf16.gmra.mxu0 %v4785
    %v6688 = vpop.f32.mrf.mxu0
    %v6689 = vadd.f32 %v6676, %v6688
    %v6690 = vpop.f32.mrf.mxu0
    %6691 = vdwg.mxu0
    %6692 = vmatpush.bf16.msra.mxu0 %v6083
    %6693 = vmatpush.bf16.msra.mxu0 %v6075
    %6694 = vmatpush.bf16.msra.mxu0 %v6067
    %6695 = vmatpush.bf16.msra.mxu0 %v6059
    %6696 = vmatpush.bf16.msra.mxu0 %v6051
    %6697 = vmatpush.bf16.msra.mxu0 %v6043
    %6698 = vmatpush.bf16.msra.mxu0 %v6035
    %6699 = vmatpush.bf16.msra.mxu0 %v6027
    %6700 = vmatmul.bf16.gmra.mxu0 %v4786
    %v6701 = vpop.f32.mrf.mxu0
    %v6702 = vadd.f32 %v6689, %v6701
    %v6703 = vpop.f32.mrf.mxu0
    %6704 = vdwg.mxu0
    %6705 = vmatpush.bf16.msra.mxu0 %v5892
    %6706 = vmatpush.bf16.msra.mxu0 %v5884
    %6707 = vmatpush.bf16.msra.mxu0 %v5876
    %6708 = vmatpush.bf16.msra.mxu0 %v5868
    %6709 = vmatpush.bf16.msra.mxu0 %v5860
    %6710 = vmatpush.bf16.msra.mxu0 %v5852
    %6711 = vmatpush.bf16.msra.mxu0 %v5844
    %6712 = vmatpush.bf16.msra.mxu0 %v5836
    %6713 = vmatmul.bf16.gmra.mxu0 %v4783
    %v6714 = vpop.f32.mrf.mxu0
    %v6715 = vadd.f32 %v5052, %v6714
    %v6716 = vpop.f32.mrf.mxu0
    %6717 = vdwg.mxu0
    %6718 = vmatpush.bf16.msra.mxu0 %v5956
    %6719 = vmatpush.bf16.msra.mxu0 %v5948
    %6720 = vmatpush.bf16.msra.mxu0 %v5940
    %6721 = vmatpush.bf16.msra.mxu0 %v5932
    %6722 = vmatpush.bf16.msra.mxu0 %v5924
    %6723 = vmatpush.bf16.msra.mxu0 %v5916
    %6724 = vmatpush.bf16.msra.mxu0 %v5908
    %6725 = vmatpush.bf16.msra.mxu0 %v5900
    %6726 = vmatmul.bf16.gmra.mxu0 %v4784
    %v6727 = vpop.f32.mrf.mxu0
    %v6728 = vadd.f32 %v6715, %v6727
    %v6729 = vpop.f32.mrf.mxu0
    %6730 = vdwg.mxu0
    %6731 = vmatpush.bf16.msra.mxu0 %v6020
    %6732 = vmatpush.bf16.msra.mxu0 %v6012
    %6733 = vmatpush.bf16.msra.mxu0 %v6004
    %6734 = vmatpush.bf16.msra.mxu0 %v5996
    %6735 = vmatpush.bf16.msra.mxu0 %v5988
    %6736 = vmatpush.bf16.msra.mxu0 %v5980
    %6737 = vmatpush.bf16.msra.mxu0 %v5972
    %6738 = vmatpush.bf16.msra.mxu0 %v5964
    %6739 = vmatmul.bf16.gmra.mxu0 %v4785
    %v6740 = vpop.f32.mrf.mxu0
    %v6741 = vadd.f32 %v6728, %v6740
    %v6742 = vpop.f32.mrf.mxu0
    %6743 = vdwg.mxu0
    %6744 = vmatpush.bf16.msra.mxu0 %v6084
    %6745 = vmatpush.bf16.msra.mxu0 %v6076
    %6746 = vmatpush.bf16.msra.mxu0 %v6068
    %6747 = vmatpush.bf16.msra.mxu0 %v6060
    %6748 = vmatpush.bf16.msra.mxu0 %v6052
    %6749 = vmatpush.bf16.msra.mxu0 %v6044
    %6750 = vmatpush.bf16.msra.mxu0 %v6036
    %6751 = vmatpush.bf16.msra.mxu0 %v6028
    %6752 = vmatmul.bf16.gmra.mxu0 %v4786
    %v6753 = vpop.f32.mrf.mxu0
    %v6754 = vadd.f32 %v6741, %v6753
    %v6755 = vpop.f32.mrf.mxu0
    %6756 = vdwg.mxu0
    %v6757 = vtanh.pop %v6390
    %v6758 = vtanh.pop %v6442
    %v6759 = vtanh.pop %v6494
    %v6760 = vtanh.pop %v6546
    %v6761 = vtanh.pop %v6598
    %v6762 = vtanh.pop %v6650
    %v6763 = vtanh.pop %v6702
    %v6764 = vtanh.pop %v6754
    %6765 = vst [vmem:[#allocation20] sm:$0xff] %v6757
    %6766 = vst [vmem:[#allocation20 + $0x8] sm:$0xff] %v6758
    %6767 = vst [vmem:[#allocation20 + $0x10] sm:$0xff] %v6759
    %6768 = vst [vmem:[#allocation20 + $0x18] sm:$0xff] %v6760
    %6769 = vst [vmem:[#allocation20 + $0x20] sm:$0xff] %v6761
    %6770 = vst [vmem:[#allocation20 + $0x28] sm:$0xff] %v6762
    %6771 = vst [vmem:[#allocation20 + $0x30] sm:$0xff] %v6763
    %6772 = vst [vmem:[#allocation20 + $0x38] sm:$0xff] %v6764
    // Predicated region
    $region98: #{_aae_recon_flat.1} parent=1 // pred_check
      _
    $region99: #{_aae_recon_flat.1} parent=1 // pred_check_branch
      %6774 = sbr.rel (0) target = $region101
    $region100: #{_aae_recon_flat.1} parent=1 // pred_region
      %6776 = vsyncadd [#allocation4], 0
      %s6778 = sshll.u32 [#allocation20], 4
      %s6779 = int_to_ptr.vmem [resolvable:$true] %s6778
      %s6780 = sshll.u32 %s13, 4
      %s6781 = int_to_ptr.hbm [resolvable:$true] %s6780
      %6783 = dma.vmem_to_hbm [thread:$0]  %s6779, 1024, %s6781, [#allocation4]
    $region101: #{_aae_recon_flat.1} parent=1 // pred_fallthru
      _
    // Predicated region
    $region102: #{_aae_recon_flat.1} parent=1 // pred_check
      _
    $region103: #{_aae_recon_flat.1} parent=1 // pred_check_branch
      %6785 = sbr.rel (0) target = $region105
    $region104: #{_aae_recon_flat.1} parent=1 // pred_region
      %6787 = dma.done [#allocation4], 1024
    $region105: #{_aae_recon_flat.1} parent=1 // pred_fallthru
      _
    %6788 = vsyncpa [#allocation3], 1
    %6789 = vsyncpa [#allocation6], 1
    %6790 = vsyncpa [#allocation9], 1
    %6791 = vsyncpa [#allocation12], 1
    %6792 = vsyncpa [#allocation15], 1
    %6793 = vsyncpa [#allocation18], 1
    %6794 = vsyncpa [#allocation4], 1

</llo_original>
